<compile_context>
chip_gen: v5e
topology: v5e:2x2
jax: 0.10.0
libtpu: 0.0.40
codegen_flags: <defaults>
</compile_context>

<pallas_src>
import functools

import jax
import jax.numpy as jnp
import numpy as np
from jax import lax
from jax.experimental import pallas as pl
from jax.experimental.pallas import tpu as pltpu

NUM_GROUPS = 32
EPS = 1e-5
_LANE = 128


def _round_up(v, m):
    return ((v + m - 1) // m) * m


def _vmem_limit_bytes():
    """Generation-aware scoped-VMEM limit (leave explicit headroom)."""
    cap = 64 * 2**20                      # conservative default (v7x per-core)
    try:
        info = pltpu.get_tpu_info()
        cap = int(getattr(info, "vmem_capacity_bytes", cap) or cap)
    except Exception:
        pass
    return max(32 * 2**20, min(int(cap * 0.85), cap - 8 * 2**20))


def _pick_chunk_rows(rows, W, target_flat=128):
    """Largest divisor of `rows` whose flat chunk (CR*W) stays near target_flat."""
    cap_r = max(1, target_flat // W)
    best = 1
    for r in range(1, rows + 1):
        if rows % r == 0 and r <= cap_r:
            best = r
    # TODO(synk): for very wide images (W >> 128) a single image row already
    # exceeds the register budget; accumulation then spills to VMEM (correct,
    # just slower).
    return best


# ---------------------------------------------------------------------------
# Shared 3x3-conv body (register-chunk accumulation, roll-on-output taps)
# ---------------------------------------------------------------------------
def _conv3x3_chunks(yext_ref, wc_ref, wlr_ref, bias_row, o_ref, *, rows, W, CR,
                    Cp, Cout):
    """3x3 SAME conv over the halo-extended activations in `yext_ref`.

    yext_ref : VMEM ((rows+2)*W, C) normalized activations, one halo image row
               above and below (already filled by the caller).
    wc_ref   : (3, C, Cp)    centre-tap weights (kx==1), Cout zero-padded to Cp.
    wlr_ref  : (3, C, 2*Cp)  [left | right] tap weights (kx==0 | kx==2) paired
               along the output dim (full 256-wide MXU on v6e/v7x).
    bias_row : (1, Cp) f32 value.
    o_ref    : (1, rows*W, Cout) output block (only real channels are stored).

    All 9 tap contributions of a CR-image-row chunk are accumulated in a live
    f32 value and stored once.  The +/-1 column taps are applied to the matmul
    output (roll on (CH, Cp) instead of the (CH, C) input); because every chunk
    starts on an image-row boundary, the w==0 / w==W-1 masks also cover the
    roll's chunk-boundary wrap.
    """
    CH = CR * W
    n_chunks = rows // CR
    out_dtype = o_ref.dtype

    col = lax.broadcasted_iota(jnp.int32, (CH, 1), 0) % W
    has_left = col > 0                 # position w has a left neighbour
    has_right = col < (W - 1)          # position w has a right neighbour

    def chunk_body(c, carry):
        m0 = pl.multiple_of(c * CH, 8)
        acc = jnp.broadcast_to(bias_row, (CH, Cp))            # f32, bias folded in
        for ky in range(3):                                    # static, unrolled
            slab = yext_ref[pl.ds(m0 + ky * W, CH), :]         # (CH, C)
            acc = acc + jnp.dot(slab, wc_ref[ky],
                                preferred_element_type=jnp.float32)
            p_lr = jnp.dot(slab, wlr_ref[ky],
                           preferred_element_type=jnp.float32)  # (CH, 2*Cp)
            acc = acc + jnp.where(
                has_left, pltpu.roll(p_lr[:, :Cp], shift=1, axis=0), 0.0)
            acc = acc + jnp.where(
                has_right, pltpu.roll(p_lr[:, Cp:], shift=CH - 1, axis=0), 0.0)
        res = acc if Cout == Cp else acc[:, :Cout]
        o_ref[0, pl.ds(m0, CH), :] = res.astype(out_dtype)
        return carry

    lax.fori_loop(0, n_chunks, chunk_body, 0)


# ---------------------------------------------------------------------------
# Fused single-pass kernel: stats + normalize + SiLU + conv for one image
# ---------------------------------------------------------------------------
def _fused_head_kernel(x_ref, gamma_ref, beta_ref, A_ref, wc_ref, wlr_ref,
                       bias_ref, o_ref, yext_ref, *, H, W, CR, Cp, Cout):
    C = x_ref.shape[2]
    CH = CR * W
    n_chunks = H // CR
    cdt = yext_ref.dtype

    # ---- group statistics (f32, shifted / two-pass variance) ----------------
    def s1_body(c, s1):
        m0 = pl.multiple_of(c * CH, 8)
        v = x_ref[0, pl.ds(m0, CH), :].astype(jnp.float32)
        return s1 + jnp.sum(v, axis=0, keepdims=True)

    s1 = lax.fori_loop(0, n_chunks, s1_body, jnp.zeros((1, C), jnp.float32))
    # A[i, j] = [group(i) == group(j)] / (H*W*Cg): one tiny matmul averages the
    # channel sums within each group and broadcasts the result back per channel.
    A = A_ref[...]
    mean8 = jnp.dot(jnp.broadcast_to(s1, (8, C)), A,
                    preferred_element_type=jnp.float32)
    mean_c = mean8[0:1, :]                                     # (1, C)

    def s2_body(c, s2):
        m0 = pl.multiple_of(c * CH, 8)
        d = x_ref[0, pl.ds(m0, CH), :].astype(jnp.float32) - mean_c
        return s2 + jnp.sum(d * d, axis=0, keepdims=True)

    s2 = lax.fori_loop(0, n_chunks, s2_body, jnp.zeros((1, C), jnp.float32))
    var8 = jnp.dot(jnp.broadcast_to(s2, (8, C)), A,
                   preferred_element_type=jnp.float32)
    var_c = var8[0:1, :]

    inv_c = lax.rsqrt(var_c + EPS)
    scale = gamma_ref[...].astype(jnp.float32) * inv_c         # (1, C)
    shift = beta_ref[...].astype(jnp.float32) - mean_c * scale

    # ---- normalize + SiLU into the halo-extended activation scratch ---------
    yext_ref[pl.ds(0, W), :] = jnp.zeros((W, C), cdt)            # top zero pad
    yext_ref[pl.ds((H + 1) * W, W), :] = jnp.zeros((W, C), cdt)  # bottom zero pad

    def norm_body(c, carry):
        m0 = pl.multiple_of(c * CH, 8)
        y = x_ref[0, pl.ds(m0, CH), :].astype(jnp.float32) * scale + shift
        yext_ref[pl.ds(W + m0, CH), :] = (y * jax.nn.sigmoid(y)).astype(cdt)
        return carry

    lax.fori_loop(0, n_chunks, norm_body, 0)

    # ---- 3x3 conv ------------------------------------------------------------
    bias_row = bias_ref[...].astype(jnp.float32)
    _conv3x3_chunks(yext_ref, wc_ref, wlr_ref, bias_row, o_ref,
                    rows=H, W=W, CR=CR, Cp=Cp, Cout=Cout)


# ---------------------------------------------------------------------------
# Fallback pass 1: per-channel sum / sum^2 over row strips (with partial-sum
# "parallel" axis so both v7x cores get work even at batch 1)
# ---------------------------------------------------------------------------
def _stats_kernel(x_ref, s1_ref, s2_ref, *, CH):
    @pl.when(pl.program_id(2) == 0)
    def _init():
        s1_ref[...] = jnp.zeros_like(s1_ref)
        s2_ref[...] = jnp.zeros_like(s2_ref)

    M, C = x_ref.shape[1], x_ref.shape[2]
    n_chunks = M // CH

    def body(c, carry):
        s1, s2 = carry
        m0 = pl.multiple_of(c * CH, 8)
        v = x_ref[0, pl.ds(m0, CH), :].astype(jnp.float32)
        return (s1 + jnp.sum(v, axis=0, keepdims=True),
                s2 + jnp.sum(v * v, axis=0, keepdims=True))

    s1, s2 = lax.fori_loop(0, n_chunks, body,
                           (jnp.zeros((1, C), jnp.float32),
                            jnp.zeros((1, C), jnp.float32)))
    s1_ref[0] = s1_ref[0] + s1
    s2_ref[0] = s2_ref[0] + s2


# ---------------------------------------------------------------------------
# Fallback pass 2: normalize + SiLU + conv, one row strip (1-row halo) / step
# ---------------------------------------------------------------------------
def _strip_head_kernel(scale_ref, shift_ref, x_ref, xt_ref, xb_ref,
                       wc_ref, wlr_ref, bias_ref, o_ref, yext_ref,
                       *, TH, W, CR, Cp, Cout):
    h = pl.program_id(1)
    n_strips = pl.num_programs(1)
    CH = CR * W
    n_chunks = TH // CR
    cdt = yext_ref.dtype

    scale = scale_ref[0]                                   # (1, C) f32
    shift = shift_ref[0]

    def norm_silu(v):                                      # (rows, C) -> f32
        y = v.astype(jnp.float32) * scale + shift
        return y * jax.nn.sigmoid(y)

    def norm_body(c, carry):
        m0 = pl.multiple_of(c * CH, 8)
        yext_ref[pl.ds(W + m0, CH), :] = norm_silu(
            x_ref[0, pl.ds(m0, CH), :]).astype(cdt)
        return carry

    lax.fori_loop(0, n_chunks, norm_body, 0)

    # Halo rows: real neighbouring image rows, or zeros at the image border
    # (the conv's zero padding along H).
    top = jnp.where(h > 0, norm_silu(xt_ref[0]), 0.0)
    bot = jnp.where(h < n_strips - 1, norm_silu(xb_ref[0]), 0.0)
    yext_ref[pl.ds(0, W), :] = top.astype(cdt)
    yext_ref[pl.ds((TH + 1) * W, W), :] = bot.astype(cdt)

    bias_row = bias_ref[...].astype(jnp.float32)
    _conv3x3_chunks(yext_ref, wc_ref, wlr_ref, bias_row, o_ref,
                    rows=TH, W=W, CR=CR, Cp=Cp, Cout=Cout)


# ---------------------------------------------------------------------------
# VMEM accounting
# ---------------------------------------------------------------------------
def _fused_vmem_estimate(H, W, C, Cp, in_bytes, out_bytes, conv_bytes):
    HW = H * W
    Cv = _round_up(C, _LANE)                 # lane padding of the channel axis
    return (2 * HW * Cv * in_bytes           # input image block, double-buffered
            + 2 * HW * Cp * out_bytes        # output block (lane-padded tiles)
            + (HW + 2 * W) * Cv * conv_bytes # halo-extended activation scratch
            + 2 * 9 * C * Cp * conv_bytes    # wc + wlr weights, double-buffered
            + 2 * C * Cv * 4                 # group-average matrix A
            + 2 * (2 * Cv + Cp) * 4 * 8)     # gamma/beta/bias rows


def _strip_vmem_estimate(TH, W, C, Cp, in_bytes, out_bytes, conv_bytes, CH):
    M = TH * W
    Cv = _round_up(C, _LANE)
    return (2 * M * Cv * in_bytes            # strip input, double-buffered
            + 4 * W * Cv * in_bytes          # two halo rows, double-buffered
            + 2 * M * Cp * out_bytes         # output strip (lane-padded tiles)
            + (M + 2 * W) * Cv * conv_bytes  # yext scratch
            + 2 * 9 * C * Cp * conv_bytes    # weights, double-buffered
            + 4 * 8 * Cv * 4                 # scale / shift rows
            + CH * (3 * Cp + 3 * Cv) * 4)    # chunk transients (acc, p_lr, slab)


def _pick_tile_h(H, W, C, Cp, in_bytes, out_bytes, conv_bytes, budget):
    best = 1
    for th in range(1, H + 1):
        if H % th:
            continue
        CH = _pick_chunk_rows(th, W) * W
        if _strip_vmem_estimate(th, W, C, Cp, in_bytes, out_bytes,
                                conv_bytes, CH) <= budget:
            best = th
    return best


# ---------------------------------------------------------------------------
# Wrapper
# ---------------------------------------------------------------------------
def head_forward(x, gamma, beta, w_hwio, b, *, conv_dtype=jnp.bfloat16,
                 tile_h=None, force_two_pass=False):
    """GroupNorm(32) -> SiLU -> Conv2d(3x3, pad=1), NHWC layout.

    x          : (N, H, W, C)
    gamma/beta : (C,) GroupNorm affine parameters
    w_hwio     : (3, 3, C, Cout) conv weight (torch OIHW -> transpose(2, 3, 1, 0))
    b          : (Cout,) conv bias
    conv_dtype : dtype of the conv matmul operands (activation scratch + weights);
                 stats, SiLU and accumulation stay f32.  Default bfloat16.
    tile_h     : rows per strip for the two-pass fallback (must divide H).
    """
    N, H, W, C = x.shape
    Cout = w_hwio.shape[-1]
    G = NUM_GROUPS
    if C % G:
        raise ValueError("in_channels must be divisible by 32")
    if W % 8:
        raise ValueError("W must be a multiple of 8")
    Cg = C // G
    Cp = _round_up(Cout, _LANE)
    out_dtype = x.dtype

    in_bytes = jnp.dtype(x.dtype).itemsize
    out_bytes = jnp.dtype(out_dtype).itemsize
    conv_bytes = jnp.dtype(conv_dtype).itemsize
    vmem_limit = _vmem_limit_bytes()

    # Conv weights: centre taps (3, C, Cp) and paired [left|right] taps
    # (3, C, 2*Cp).  The Cout->Cp lane padding never reaches HBM: the kernels
    # store only the first Cout lanes of the accumulator.
    w = w_hwio.astype(conv_dtype)                         # (ky, kx, cin, cout)

    def _pad_tap(t):                                      # (3, C, Cout) -> (3, C, Cp)
        return jnp.zeros((3, C, Cp), conv_dtype).at[..., :Cout].set(t)

    wc = _pad_tap(w[:, 1])
    wlr = jnp.concatenate([_pad_tap(w[:, 0]), _pad_tap(w[:, 2])], axis=-1)
    b_row = jnp.zeros((1, Cp), jnp.float32).at[0, :Cout].set(b.astype(jnp.float32))

    x3 = x.reshape(N, H * W, C)                           # metadata-only reshape

    CR = _pick_chunk_rows(H, W)
    fused_est = (_fused_vmem_estimate(H, W, C, Cp, in_bytes, out_bytes, conv_bytes)
                 + CR * W * (3 * Cp + 3 * _round_up(C, _LANE)) * 4
                 + 2 * 2**20)
    use_fused = ((not force_two_pass) and tile_h is None
                 and fused_est <= int(0.8 * vmem_limit))

    if use_fused:
        # ---- fused single pass: stats + norm + SiLU + conv, one image/step --
        gids = jnp.arange(C, dtype=jnp.int32) // Cg
        A = ((gids[:, None] == gids[None, :]).astype(jnp.float32)
             / float(H * W * Cg))                         # (C, C) group-average matrix
        gamma_row = gamma.reshape(1, C)
        beta_row = beta.reshape(1, C)

        out3 = pl.pallas_call(
            functools.partial(_fused_head_kernel, H=H, W=W, CR=CR, Cp=Cp, Cout=Cout),
            out_shape=jax.ShapeDtypeStruct((N, H * W, Cout), out_dtype),
            grid_spec=pltpu.PrefetchScalarGridSpec(
                num_scalar_prefetch=0,
                grid=(N,),
                in_specs=[
                    pl.BlockSpec((1, H * W, C), lambda n: (n, 0, 0)),   # x
                    pl.BlockSpec((1, C), lambda n: (0, 0)),             # gamma
                    pl.BlockSpec((1, C), lambda n: (0, 0)),             # beta
                    pl.BlockSpec((C, C), lambda n: (0, 0)),             # A
                    pl.BlockSpec((3, C, Cp), lambda n: (0, 0, 0)),      # wc
                    pl.BlockSpec((3, C, 2 * Cp), lambda n: (0, 0, 0)),  # wlr
                    pl.BlockSpec((1, Cp), lambda n: (0, 0)),            # bias
                ],
                out_specs=pl.BlockSpec((1, H * W, Cout), lambda n: (n, 0, 0)),
                scratch_shapes=[pltpu.VMEM(((H + 2) * W, C), conv_dtype)],
            ),
            compiler_params=pltpu.CompilerParams(
                dimension_semantics=("parallel",),
                vmem_limit_bytes=vmem_limit),
        )(x3, gamma_row, beta_row, A, wc, wlr, b_row)
        return out3.reshape(N, H, W, Cout)

    # ---- two-pass fallback (image too large for VMEM, or explicitly forced) --
    # pass 1: per-channel sums, strip tiled; SPLIT partial-sum outputs keep both
    # TensorCores busy on v7x even when N == 1.
    TH1 = 1
    row_bytes = W * _round_up(C, _LANE) * in_bytes
    for th in range(1, H + 1):
        if H % th == 0 and th * row_bytes <= 4 * 2**20:
            TH1 = th
    n1 = H // TH1
    SPLIT = 2 if n1 % 2 == 0 else 1
    HT1 = n1 // SPLIT
    M1 = TH1 * W
    CH1 = _pick_chunk_rows(TH1, W) * W

    s1, s2 = pl.pallas_call(
        functools.partial(_stats_kernel, CH=CH1),
        out_shape=(jax.ShapeDtypeStruct((N, SPLIT, C), jnp.float32),
                   jax.ShapeDtypeStruct((N, SPLIT, C), jnp.float32)),
        grid_spec=pltpu.PrefetchScalarGridSpec(
            num_scalar_prefetch=0,
            grid=(N, SPLIT, HT1),
            in_specs=[pl.BlockSpec((1, M1, C),
                                   lambda n, s, t: (n, s * HT1 + t, 0))],
            out_specs=[pl.BlockSpec((1, 1, C), lambda n, s, t: (n, s, 0)),
                       pl.BlockSpec((1, 1, C), lambda n, s, t: (n, s, 0))],
        ),
        compiler_params=pltpu.CompilerParams(
            dimension_semantics=("parallel", "parallel", "arbitrary"),
            vmem_limit_bytes=vmem_limit),
    )(x3)

    # tiny O(N*C) group-statistics math (plain JAX)
    cnt = float(H * W * Cg)
    s1t = s1.sum(axis=1)
    s2t = s2.sum(axis=1)
    mean_g = s1t.reshape(N, G, Cg).sum(-1) / cnt
    # TODO(synk): for very large H*W switch this path to a shifted two-pass
    # variance; the fused path above already uses the numerically safer form.
    var_g = jnp.maximum(s2t.reshape(N, G, Cg).sum(-1) / cnt - mean_g * mean_g, 0.0)
    inv_g = lax.rsqrt(var_g + EPS)
    mean_c = jnp.repeat(mean_g, Cg, axis=1)
    inv_c = jnp.repeat(inv_g, Cg, axis=1)
    scale_c = (gamma[None, :].astype(jnp.float32) * inv_c).reshape(N, 1, C)
    shift_c = (beta[None, :].astype(jnp.float32)
               - mean_c * gamma[None, :].astype(jnp.float32) * inv_c).reshape(N, 1, C)

    # pass 2: normalize + SiLU + 3x3 conv, one halo strip per grid step
    budget = int(0.6 * vmem_limit)
    TH = tile_h if tile_h is not None else _pick_tile_h(
        H, W, C, Cp, in_bytes, out_bytes, conv_bytes, budget)
    if H % TH:
        raise ValueError("tile_h must divide H")
    HT = H // TH
    M = TH * W
    CRs = _pick_chunk_rows(TH, W)

    out3 = pl.pallas_call(
        functools.partial(_strip_head_kernel, TH=TH, W=W, CR=CRs, Cp=Cp, Cout=Cout),
        out_shape=jax.ShapeDtypeStruct((N, H * W, Cout), out_dtype),
        grid_spec=pltpu.PrefetchScalarGridSpec(
            num_scalar_prefetch=0,
            grid=(N, HT),
            in_specs=[
                pl.BlockSpec((1, 1, C), lambda n, h: (n, 0, 0)),      # scale
                pl.BlockSpec((1, 1, C), lambda n, h: (n, 0, 0)),      # shift
                pl.BlockSpec((1, M, C), lambda n, h: (n, h, 0)),      # strip
                pl.BlockSpec((1, W, C),                               # row above (clamped)
                             lambda n, h: (n, jnp.maximum(h * TH - 1, 0), 0)),
                pl.BlockSpec((1, W, C),                               # row below (clamped)
                             lambda n, h: (n, jnp.minimum((h + 1) * TH, H - 1), 0)),
                pl.BlockSpec((3, C, Cp), lambda n, h: (0, 0, 0)),     # wc
                pl.BlockSpec((3, C, 2 * Cp), lambda n, h: (0, 0, 0)), # wlr
                pl.BlockSpec((1, Cp), lambda n, h: (0, 0)),           # bias
            ],
            out_specs=pl.BlockSpec((1, M, Cout), lambda n, h: (n, h, 0)),
            scratch_shapes=[pltpu.VMEM(((TH + 2) * W, C), conv_dtype)],
        ),
        compiler_params=pltpu.CompilerParams(
            dimension_semantics=("parallel", "parallel"),
            vmem_limit_bytes=vmem_limit),
    )(scale_c, shift_c, x3, x3, x3, wc, wlr, b_row)

    return out3.reshape(N, H, W, Cout)


def head_forward_nchw(x_nchw, gamma, beta, w_hwio, b, **kwargs):
    """Torch-layout (NCHW) adapter; the two transposes each cost an HBM round
    trip -- keep the surrounding model NHWC and call head_forward when possible."""
    x = jnp.transpose(x_nchw, (0, 2, 3, 1))
    out = head_forward(x, gamma, beta, w_hwio, b, **kwargs)
    return jnp.transpose(out, (0, 3, 1, 2))


# ---------------------------------------------------------------------------
# Plain-JAX reference (torch GroupNorm + SiLU + Conv2d semantics, NHWC)
# ---------------------------------------------------------------------------
def head_reference(x, gamma, beta, w_hwio, b):
    N, H, W, C = x.shape
    G = NUM_GROUPS
    Cg = C // G
    xg = x.astype(jnp.float32).reshape(N, H, W, G, Cg)
    mean = xg.mean(axis=(1, 2, 4), keepdims=True)
    var = xg.var(axis=(1, 2, 4), keepdims=True)
    xn = ((xg - mean) * lax.rsqrt(var + EPS)).reshape(N, H, W, C)
    xn = xn * gamma[None, None, None, :] + beta[None, None, None, :]
    y = xn * jax.nn.sigmoid(xn)
    out = lax.conv_general_dilated(
        y, w_hwio.astype(jnp.float32), window_strides=(1, 1), padding="SAME",
        dimension_numbers=("NHWC", "HWIO", "NHWC"))
    return (out + b[None, None, None, :]).astype(x.dtype)


if __name__ == "__main__":
    # Small shapes consistent with the module (in_channels divisible by 32).
    N, C, H, W, Cout = 2, 64, 16, 16, 8

    key = jax.random.PRNGKey(0)
    kx, kg, kb, kw, kc = jax.random.split(key, 5)
    x = jax.random.normal(kx, (N, H, W, C), jnp.float32)           # NHWC
    gamma = 1.0 + 0.1 * jax.random.normal(kg, (C,), jnp.float32)
    beta = 0.1 * jax.random.normal(kb, (C,), jnp.float32)
    w_hwio = jax.random.normal(kw, (3, 3, C, Cout), jnp.float32) / np.sqrt(9 * C)
    b = 0.01 * jax.random.normal(kc, (Cout,), jnp.float32)

    ref = jax.block_until_ready(head_reference(x, gamma, beta, w_hwio, b))

    # Fused single-pass kernel, f32 conv operands (tight tolerance).
    out_f32 = jax.block_until_ready(
        head_forward(x, gamma, beta, w_hwio, b, conv_dtype=jnp.float32))
    np.testing.assert_allclose(np.asarray(out_f32), np.asarray(ref),
                               rtol=2e-3, atol=2e-3)

    # Fused single-pass kernel, default bf16 conv operands (fast path).
    out_bf = jax.block_until_ready(head_forward(x, gamma, beta, w_hwio, b))
    np.testing.assert_allclose(np.asarray(out_bf), np.asarray(ref),
                               rtol=5e-2, atol=5e-2)

    # Forced two-pass strip fallback, two strips (exercises the halo path).
    out_2p = jax.block_until_ready(
        head_forward(x, gamma, beta, w_hwio, b, conv_dtype=jnp.float32,
                     force_two_pass=True, tile_h=8))
    np.testing.assert_allclose(np.asarray(out_2p), np.asarray(ref),
                               rtol=2e-3, atol=2e-3)

    # NCHW (torch-layout) adapter.
    x_nchw = jnp.transpose(x, (0, 3, 1, 2))
    out_nchw = jax.block_until_ready(
        head_forward_nchw(x_nchw, gamma, beta, w_hwio, b, conv_dtype=jnp.float32))
    np.testing.assert_allclose(np.asarray(out_nchw),
                               np.asarray(jnp.transpose(ref, (0, 3, 1, 2))),
                               rtol=2e-3, atol=2e-3)

    print("KERNEL_OK")
</pallas_src>

<mosaic_0001>
module attributes {stable_mosaic.version = 11 : i64} {
  func.func @_fused_head_kernel(%arg0: i32, %arg1: memref<1x256x64xf32, #tpu.memory_space<vmem>>, %arg2: memref<1x64xf32, #tpu.memory_space<vmem>>, %arg3: memref<1x64xf32, #tpu.memory_space<vmem>>, %arg4: memref<64x64xf32, #tpu.memory_space<vmem>>, %arg5: memref<3x64x128xf32, #tpu.memory_space<vmem>>, %arg6: memref<3x64x256xf32, #tpu.memory_space<vmem>>, %arg7: memref<1x128xf32, #tpu.memory_space<vmem>>, %arg8: memref<1x256x8xf32, #tpu.memory_space<vmem>>, %arg9: memref<288x64xf32, #tpu.memory_space<vmem>>) attributes {dimension_semantics = [#tpu.dimension_semantics<parallel>], iteration_bounds = array<i64: 2>, scalar_prefetch = 0 : i64, scratch_operands = 1 : i64, tpu.core_type = #tpu.core_type<tc>, window_params = [{transform_indices = @transform_0, window_bounds = array<i64: 1, 256, 64>}, {pipeline_mode = #tpu.pipeline_mode<synchronous>, transform_indices = @transform_1, window_bounds = array<i64: 1, 64>}, {pipeline_mode = #tpu.pipeline_mode<synchronous>, transform_indices = @transform_2, window_bounds = array<i64: 1, 64>}, {pipeline_mode = #tpu.pipeline_mode<synchronous>, transform_indices = @transform_3, window_bounds = array<i64: 64, 64>}, {pipeline_mode = #tpu.pipeline_mode<synchronous>, transform_indices = @transform_4, window_bounds = array<i64: 3, 64, 128>}, {pipeline_mode = #tpu.pipeline_mode<synchronous>, transform_indices = @transform_5, window_bounds = array<i64: 3, 64, 256>}, {pipeline_mode = #tpu.pipeline_mode<synchronous>, transform_indices = @transform_6, window_bounds = array<i64: 1, 128>}, {transform_indices = @transform_7, window_bounds = array<i64: 1, 256, 8>}]} {
    %cst = arith.constant 0.000000e+00 : f32
    %0 = vector.broadcast %cst : f32 to vector<1x64xf32>
    %c0_i32 = arith.constant 0 : i32
    %c2_i32 = arith.constant 2 : i32
    %1 = arith.addi %c0_i32, %c2_i32 : i32
    %c1_i32 = arith.constant 1 : i32
    %2 = scf.for %arg10 = %c0_i32 to %1 step %c1_i32 iter_args(%arg11 = %0) -> (vector<1x64xf32>)  : i32 {
      %c128_i32 = arith.constant 128 : i32
      %51 = arith.muli %arg10, %c128_i32 : i32
      %52 = tpu.assume_multiple %51, 8 : i32
      %c0_35 = arith.constant 0 : index
      %53 = arith.index_cast %52 : i32 to index
      %c0_36 = arith.constant 0 : index
      %54 = vector.load %arg1[%c0_35, %53, %c0_36] : memref<1x256x64xf32, #tpu.memory_space<vmem>>, vector<1x128x64xf32>
      %55 = vector.shape_cast %54 : vector<1x128x64xf32> to vector<128x64xf32>
      %cst_37 = arith.constant dense<0.000000e+00> : vector<64xf32>
      %56 = vector.multi_reduction <add>, %55, %cst_37 [0] : vector<128x64xf32> to vector<64xf32>
      %57 = vector.shape_cast %56 : vector<64xf32> to vector<1x64xf32>
      %58 = arith.addf %arg11, %57 : vector<1x64xf32>
      scf.yield %58 : vector<1x64xf32>
    }
    %c2_i32_0 = arith.constant 2 : i32
    %c0 = arith.constant 0 : index
    %c0_1 = arith.constant 0 : index
    %3 = vector.load %arg4[%c0, %c0_1] : memref<64x64xf32, #tpu.memory_space<vmem>>, vector<64x64xf32>
    %4 = vector.shape_cast %2 : vector<1x64xf32> to vector<1x64xf32>
    %5 = vector.broadcast %4 : vector<1x64xf32> to vector<8x64xf32>
    %cst_2 = arith.constant dense<0.000000e+00> : vector<8x64xf32>
    %6 = tpu.matmul %5, %3, %cst_2 {dimension_numbers = #tpu.dot_dimension_numbers<[1], [0], [0], [1], [0, 0, 1, 1], [], []>} : vector<8x64xf32>, vector<64x64xf32>, vector<8x64xf32> -> vector<8x64xf32>
    %7 = vector.extract_strided_slice %6 {offsets = [0, 0], sizes = [1, 64], strides = [1, 1]} : vector<8x64xf32> to vector<1x64xf32>
    %cst_3 = arith.constant 0.000000e+00 : f32
    %8 = vector.broadcast %cst_3 : f32 to vector<1x64xf32>
    %c0_i32_4 = arith.constant 0 : i32
    %c2_i32_5 = arith.constant 2 : i32
    %9 = arith.addi %c0_i32_4, %c2_i32_5 : i32
    %c1_i32_6 = arith.constant 1 : i32
    %10 = scf.for %arg10 = %c0_i32_4 to %9 step %c1_i32_6 iter_args(%arg11 = %8) -> (vector<1x64xf32>)  : i32 {
      %c128_i32 = arith.constant 128 : i32
      %51 = arith.muli %arg10, %c128_i32 : i32
      %52 = tpu.assume_multiple %51, 8 : i32
      %c0_35 = arith.constant 0 : index
      %53 = arith.index_cast %52 : i32 to index
      %c0_36 = arith.constant 0 : index
      %54 = vector.load %arg1[%c0_35, %53, %c0_36] : memref<1x256x64xf32, #tpu.memory_space<vmem>>, vector<1x128x64xf32>
      %55 = vector.shape_cast %54 : vector<1x128x64xf32> to vector<128x64xf32>
      %56 = vector.broadcast %7 : vector<1x64xf32> to vector<128x64xf32>
      %57 = arith.subf %55, %56 : vector<128x64xf32>
      %58 = arith.mulf %57, %57 : vector<128x64xf32>
      %cst_37 = arith.constant dense<0.000000e+00> : vector<64xf32>
      %59 = vector.multi_reduction <add>, %58, %cst_37 [0] : vector<128x64xf32> to vector<64xf32>
      %60 = vector.shape_cast %59 : vector<64xf32> to vector<1x64xf32>
      %61 = arith.addf %arg11, %60 : vector<1x64xf32>
      scf.yield %61 : vector<1x64xf32>
    }
    %c2_i32_7 = arith.constant 2 : i32
    %11 = vector.shape_cast %10 : vector<1x64xf32> to vector<1x64xf32>
    %12 = vector.broadcast %11 : vector<1x64xf32> to vector<8x64xf32>
    %cst_8 = arith.constant dense<0.000000e+00> : vector<8x64xf32>
    %13 = tpu.matmul %12, %3, %cst_8 {dimension_numbers = #tpu.dot_dimension_numbers<[1], [0], [0], [1], [0, 0, 1, 1], [], []>} : vector<8x64xf32>, vector<64x64xf32>, vector<8x64xf32> -> vector<8x64xf32>
    %14 = vector.extract_strided_slice %13 {offsets = [0, 0], sizes = [1, 64], strides = [1, 1]} : vector<8x64xf32> to vector<1x64xf32>
    %cst_9 = arith.constant 9.99999974E-6 : f32
    %15 = vector.broadcast %cst_9 : f32 to vector<1x64xf32>
    %16 = arith.addf %14, %15 : vector<1x64xf32>
    %17 = math.rsqrt %16 : vector<1x64xf32>
    %c0_10 = arith.constant 0 : index
    %c0_11 = arith.constant 0 : index
    %18 = vector.load %arg2[%c0_10, %c0_11] : memref<1x64xf32, #tpu.memory_space<vmem>>, vector<1x64xf32>
    %19 = arith.mulf %18, %17 : vector<1x64xf32>
    %c0_12 = arith.constant 0 : index
    %c0_13 = arith.constant 0 : index
    %20 = vector.load %arg3[%c0_12, %c0_13] : memref<1x64xf32, #tpu.memory_space<vmem>>, vector<1x64xf32>
    %21 = arith.mulf %7, %19 : vector<1x64xf32>
    %22 = arith.subf %20, %21 : vector<1x64xf32>
    %cst_14 = arith.constant 0.000000e+00 : f32
    %23 = vector.broadcast %cst_14 : f32 to vector<16x64xf32>
    %c0_15 = arith.constant 0 : index
    %c0_16 = arith.constant 0 : index
    %24 = vector.load %arg9[%c0_15, %c0_16] : memref<288x64xf32, #tpu.memory_space<vmem>>, vector<16x64xf32>
    tpu.vector_store %arg9[%c0_15, %c0_16], %23 {strides = array<i32>} : memref<288x64xf32, #tpu.memory_space<vmem>>, vector<16x64xf32>,
    %cst_17 = arith.constant 0.000000e+00 : f32
    %25 = vector.broadcast %cst_17 : f32 to vector<16x64xf32>
    %c272 = arith.constant 272 : index
    %c0_18 = arith.constant 0 : index
    %26 = vector.load %arg9[%c272, %c0_18] : memref<288x64xf32, #tpu.memory_space<vmem>>, vector<16x64xf32>
    tpu.vector_store %arg9[%c272, %c0_18], %25 {strides = array<i32>} : memref<288x64xf32, #tpu.memory_space<vmem>>, vector<16x64xf32>,
    %c0_i32_19 = arith.constant 0 : i32
    %c2_i32_20 = arith.constant 2 : i32
    %27 = arith.addi %c0_i32_19, %c2_i32_20 : i32
    %c1_i32_21 = arith.constant 1 : i32
    scf.for %arg10 = %c0_i32_19 to %27 step %c1_i32_21  : i32 {
      %c128_i32 = arith.constant 128 : i32
      %51 = arith.muli %arg10, %c128_i32 : i32
      %52 = tpu.assume_multiple %51, 8 : i32
      %c0_35 = arith.constant 0 : index
      %53 = arith.index_cast %52 : i32 to index
      %c0_36 = arith.constant 0 : index
      %54 = vector.load %arg1[%c0_35, %53, %c0_36] : memref<1x256x64xf32, #tpu.memory_space<vmem>>, vector<1x128x64xf32>
      %55 = vector.shape_cast %54 : vector<1x128x64xf32> to vector<128x64xf32>
      %56 = vector.broadcast %19 : vector<1x64xf32> to vector<128x64xf32>
      %57 = arith.mulf %55, %56 : vector<128x64xf32>
      %58 = vector.broadcast %22 : vector<1x64xf32> to vector<128x64xf32>
      %59 = arith.addf %57, %58 : vector<128x64xf32>
      %60 = arith.negf %59 : vector<128x64xf32>
      %61 = math.exp %60 : vector<128x64xf32>
      %cst_37 = arith.constant 1.000000e+00 : f32
      %62 = vector.broadcast %cst_37 : f32 to vector<128x64xf32>
      %63 = arith.addf %62, %61 : vector<128x64xf32>
      %64 = arith.divf %62, %63 : vector<128x64xf32>
      %65 = arith.mulf %59, %64 : vector<128x64xf32>
      %c16_i32_38 = arith.constant 16 : i32
      %66 = arith.addi %c16_i32_38, %52 : i32
      %67 = arith.index_cast %66 : i32 to index
      %c0_39 = arith.constant 0 : index
      %68 = vector.load %arg9[%67, %c0_39] : memref<288x64xf32, #tpu.memory_space<vmem>>, vector<128x64xf32>
      tpu.vector_store %arg9[%67, %c0_39], %65 {strides = array<i32>} : memref<288x64xf32, #tpu.memory_space<vmem>>, vector<128x64xf32>,
    }
    %c2_i32_22 = arith.constant 2 : i32
    %c0_23 = arith.constant 0 : index
    %c0_24 = arith.constant 0 : index
    %28 = vector.load %arg7[%c0_23, %c0_24] : memref<1x128xf32, #tpu.memory_space<vmem>>, vector<1x128xf32>
    %29 = tpu.iota {dimensions = array<i32: 0>} : vector<128x1xi32>
    %c16_i32 = arith.constant 16 : i32
    %c0_i32_25 = arith.constant 0 : i32
    %30 = arith.cmpi eq, %c16_i32, %c0_i32_25 : i32
    %c1_i32_26 = arith.constant 1 : i32
    %31 = arith.select %30, %c1_i32_26, %c16_i32 : i32
    %32 = vector.broadcast %31 : i32 to vector<128x1xi32>
    %33 = arith.remsi %29, %32 : vector<128x1xi32>
    %c0_i32_27 = arith.constant 0 : i32
    %34 = vector.broadcast %c0_i32_27 : i32 to vector<128x1xi32>
    %35 = arith.cmpi ne, %33, %34 : vector<128x1xi32>
    %c0_i32_28 = arith.constant 0 : i32
    %36 = vector.broadcast %c0_i32_28 : i32 to vector<128x1xi32>
    %37 = arith.cmpi slt, %33, %36 : vector<128x1xi32>
    %c0_i32_29 = arith.constant 0 : i32
    %38 = arith.cmpi slt, %31, %c0_i32_29 : i32
    %39 = vector.broadcast %38 : i1 to vector<128x1xi1>
    %40 = vector.broadcast %39 : vector<128x1xi1> to vector<128x1xi1>
    %41 = arith.xori %37, %40 : vector<128x1xi1>
    %42 = arith.andi %41, %35 : vector<128x1xi1>
    %43 = vector.broadcast %31 : i32 to vector<128x1xi32>
    %44 = arith.addi %33, %43 : vector<128x1xi32>
    %45 = arith.select %42, %44, %33 : vector<128x1xi1>, vector<128x1xi32>
    %c0_i32_30 = arith.constant 0 : i32
    %46 = vector.broadcast %c0_i32_30 : i32 to vector<128x1xi32>
    %47 = arith.cmpi sgt, %45, %46 : vector<128x1xi32>
    %c15_i32 = arith.constant 15 : i32
    %48 = vector.broadcast %c15_i32 : i32 to vector<128x1xi32>
    %49 = arith.cmpi slt, %45, %48 : vector<128x1xi32>
    %c0_i32_31 = arith.constant 0 : i32
    %c2_i32_32 = arith.constant 2 : i32
    %50 = arith.addi %c0_i32_31, %c2_i32_32 : i32
    %c1_i32_33 = arith.constant 1 : i32
    scf.for %arg10 = %c0_i32_31 to %50 step %c1_i32_33  : i32 {
      %c128_i32 = arith.constant 128 : i32
      %51 = arith.muli %arg10, %c128_i32 : i32
      %52 = tpu.assume_multiple %51, 8 : i32
      %53 = vector.shape_cast %28 : vector<1x128xf32> to vector<1x128xf32>
      %54 = vector.broadcast %53 : vector<1x128xf32> to vector<128x128xf32>
      %c0_i32_35 = arith.constant 0 : i32
      %55 = arith.addi %52, %c0_i32_35 : i32
      %56 = arith.index_cast %55 : i32 to index
      %c0_36 = arith.constant 0 : index
      %57 = vector.load %arg9[%56, %c0_36] : memref<288x64xf32, #tpu.memory_space<vmem>>, vector<128x64xf32>
      %c0_37 = arith.constant 0 : index
      %c0_38 = arith.constant 0 : index
      %c0_39 = arith.constant 0 : index
      %58 = vector.load %arg5[%c0_37, %c0_38, %c0_39] : memref<3x64x128xf32, #tpu.memory_space<vmem>>, vector<1x64x128xf32>
      %59 = vector.shape_cast %58 : vector<1x64x128xf32> to vector<64x128xf32>
      %cst_40 = arith.constant dense<0.000000e+00> : vector<128x128xf32>
      %60 = tpu.matmul %57, %59, %cst_40 {dimension_numbers = #tpu.dot_dimension_numbers<[1], [0], [0], [1], [0, 0, 1, 1], [], []>} : vector<128x64xf32>, vector<64x128xf32>, vector<128x128xf32> -> vector<128x128xf32>
      %61 = arith.addf %54, %60 : vector<128x128xf32>
      %c0_41 = arith.constant 0 : index
      %c0_42 = arith.constant 0 : index
      %c0_43 = arith.constant 0 : index
      %62 = vector.load %arg6[%c0_41, %c0_42, %c0_43] : memref<3x64x256xf32, #tpu.memory_space<vmem>>, vector<1x64x256xf32>
      %63 = vector.shape_cast %62 : vector<1x64x256xf32> to vector<64x256xf32>
      %cst_44 = arith.constant dense<0.000000e+00> : vector<128x256xf32>
      %64 = tpu.matmul %57, %63, %cst_44 {dimension_numbers = #tpu.dot_dimension_numbers<[1], [0], [0], [1], [0, 0, 1, 1], [], []>} : vector<128x64xf32>, vector<64x256xf32>, vector<128x256xf32> -> vector<128x256xf32>
      %65 = vector.extract_strided_slice %64 {offsets = [0, 0], sizes = [128, 128], strides = [1, 1]} : vector<128x256xf32> to vector<128x128xf32>
      %c1_i32_45 = arith.constant 1 : i32
      %66 = tpu.dynamic_rotate %65 by %c1_i32_45 dim 0 : vector<128x128xf32>, i32 -> vector<128x128xf32>
      %cst_46 = arith.constant 0.000000e+00 : f32
      %67 = vector.shape_cast %47 : vector<128x1xi1> to vector<128x1xi1>
      %68 = vector.broadcast %67 : vector<128x1xi1> to vector<128x128xi1>
      %69 = vector.broadcast %cst_46 : f32 to vector<128x128xf32>
      %70 = arith.select %68, %66, %69 : vector<128x128xi1>, vector<128x128xf32>
      %71 = arith.addf %61, %70 : vector<128x128xf32>
      %72 = vector.extract_strided_slice %64 {offsets = [0, 128], sizes = [128, 128], strides = [1, 1]} : vector<128x256xf32> to vector<128x128xf32>
      %c127_i32 = arith.constant 127 : i32
      %73 = tpu.dynamic_rotate %72 by %c127_i32 dim 0 : vector<128x128xf32>, i32 -> vector<128x128xf32>
      %cst_47 = arith.constant 0.000000e+00 : f32
      %74 = vector.shape_cast %49 : vector<128x1xi1> to vector<128x1xi1>
      %75 = vector.broadcast %74 : vector<128x1xi1> to vector<128x128xi1>
      %76 = vector.broadcast %cst_47 : f32 to vector<128x128xf32>
      %77 = arith.select %75, %73, %76 : vector<128x128xi1>, vector<128x128xf32>
      %78 = arith.addf %71, %77 : vector<128x128xf32>
      %c16_i32_48 = arith.constant 16 : i32
      %79 = arith.addi %52, %c16_i32_48 : i32
      %80 = arith.index_cast %79 : i32 to index
      %c0_49 = arith.constant 0 : index
      %81 = vector.load %arg9[%80, %c0_49] : memref<288x64xf32, #tpu.memory_space<vmem>>, vector<128x64xf32>
      %c1 = arith.constant 1 : index
      %c0_50 = arith.constant 0 : index
      %c0_51 = arith.constant 0 : index
      %82 = vector.load %arg5[%c1, %c0_50, %c0_51] : memref<3x64x128xf32, #tpu.memory_space<vmem>>, vector<1x64x128xf32>
      %83 = vector.shape_cast %82 : vector<1x64x128xf32> to vector<64x128xf32>
      %cst_52 = arith.constant dense<0.000000e+00> : vector<128x128xf32>
      %84 = tpu.matmul %81, %83, %cst_52 {dimension_numbers = #tpu.dot_dimension_numbers<[1], [0], [0], [1], [0, 0, 1, 1], [], []>} : vector<128x64xf32>, vector<64x128xf32>, vector<128x128xf32> -> vector<128x128xf32>
      %85 = arith.addf %78, %84 : vector<128x128xf32>
      %c1_53 = arith.constant 1 : index
      %c0_54 = arith.constant 0 : index
      %c0_55 = arith.constant 0 : index
      %86 = vector.load %arg6[%c1_53, %c0_54, %c0_55] : memref<3x64x256xf32, #tpu.memory_space<vmem>>, vector<1x64x256xf32>
      %87 = vector.shape_cast %86 : vector<1x64x256xf32> to vector<64x256xf32>
      %cst_56 = arith.constant dense<0.000000e+00> : vector<128x256xf32>
      %88 = tpu.matmul %81, %87, %cst_56 {dimension_numbers = #tpu.dot_dimension_numbers<[1], [0], [0], [1], [0, 0, 1, 1], [], []>} : vector<128x64xf32>, vector<64x256xf32>, vector<128x256xf32> -> vector<128x256xf32>
      %89 = vector.extract_strided_slice %88 {offsets = [0, 0], sizes = [128, 128], strides = [1, 1]} : vector<128x256xf32> to vector<128x128xf32>
      %c1_i32_57 = arith.constant 1 : i32
      %90 = tpu.dynamic_rotate %89 by %c1_i32_57 dim 0 : vector<128x128xf32>, i32 -> vector<128x128xf32>
      %cst_58 = arith.constant 0.000000e+00 : f32
      %91 = vector.shape_cast %47 : vector<128x1xi1> to vector<128x1xi1>
      %92 = vector.broadcast %91 : vector<128x1xi1> to vector<128x128xi1>
      %93 = vector.broadcast %cst_58 : f32 to vector<128x128xf32>
      %94 = arith.select %92, %90, %93 : vector<128x128xi1>, vector<128x128xf32>
      %95 = arith.addf %85, %94 : vector<128x128xf32>
      %96 = vector.extract_strided_slice %88 {offsets = [0, 128], sizes = [128, 128], strides = [1, 1]} : vector<128x256xf32> to vector<128x128xf32>
      %c127_i32_59 = arith.constant 127 : i32
      %97 = tpu.dynamic_rotate %96 by %c127_i32_59 dim 0 : vector<128x128xf32>, i32 -> vector<128x128xf32>
      %cst_60 = arith.constant 0.000000e+00 : f32
      %98 = vector.shape_cast %49 : vector<128x1xi1> to vector<128x1xi1>
      %99 = vector.broadcast %98 : vector<128x1xi1> to vector<128x128xi1>
      %100 = vector.broadcast %cst_60 : f32 to vector<128x128xf32>
      %101 = arith.select %99, %97, %100 : vector<128x128xi1>, vector<128x128xf32>
      %102 = arith.addf %95, %101 : vector<128x128xf32>
      %c32_i32 = arith.constant 32 : i32
      %103 = arith.addi %52, %c32_i32 : i32
      %104 = arith.index_cast %103 : i32 to index
      %c0_61 = arith.constant 0 : index
      %105 = vector.load %arg9[%104, %c0_61] : memref<288x64xf32, #tpu.memory_space<vmem>>, vector<128x64xf32>
      %c2 = arith.constant 2 : index
      %c0_62 = arith.constant 0 : index
      %c0_63 = arith.constant 0 : index
      %106 = vector.load %arg5[%c2, %c0_62, %c0_63] : memref<3x64x128xf32, #tpu.memory_space<vmem>>, vector<1x64x128xf32>
      %107 = vector.shape_cast %106 : vector<1x64x128xf32> to vector<64x128xf32>
      %cst_64 = arith.constant dense<0.000000e+00> : vector<128x128xf32>
      %108 = tpu.matmul %105, %107, %cst_64 {dimension_numbers = #tpu.dot_dimension_numbers<[1], [0], [0], [1], [0, 0, 1, 1], [], []>} : vector<128x64xf32>, vector<64x128xf32>, vector<128x128xf32> -> vector<128x128xf32>
      %109 = arith.addf %102, %108 : vector<128x128xf32>
      %c2_65 = arith.constant 2 : index
      %c0_66 = arith.constant 0 : index
      %c0_67 = arith.constant 0 : index
      %110 = vector.load %arg6[%c2_65, %c0_66, %c0_67] : memref<3x64x256xf32, #tpu.memory_space<vmem>>, vector<1x64x256xf32>
      %111 = vector.shape_cast %110 : vector<1x64x256xf32> to vector<64x256xf32>
      %cst_68 = arith.constant dense<0.000000e+00> : vector<128x256xf32>
      %112 = tpu.matmul %105, %111, %cst_68 {dimension_numbers = #tpu.dot_dimension_numbers<[1], [0], [0], [1], [0, 0, 1, 1], [], []>} : vector<128x64xf32>, vector<64x256xf32>, vector<128x256xf32> -> vector<128x256xf32>
      %113 = vector.extract_strided_slice %112 {offsets = [0, 0], sizes = [128, 128], strides = [1, 1]} : vector<128x256xf32> to vector<128x128xf32>
      %c1_i32_69 = arith.constant 1 : i32
      %114 = tpu.dynamic_rotate %113 by %c1_i32_69 dim 0 : vector<128x128xf32>, i32 -> vector<128x128xf32>
      %cst_70 = arith.constant 0.000000e+00 : f32
      %115 = vector.shape_cast %47 : vector<128x1xi1> to vector<128x1xi1>
      %116 = vector.broadcast %115 : vector<128x1xi1> to vector<128x128xi1>
      %117 = vector.broadcast %cst_70 : f32 to vector<128x128xf32>
      %118 = arith.select %116, %114, %117 : vector<128x128xi1>, vector<128x128xf32>
      %119 = arith.addf %109, %118 : vector<128x128xf32>
      %120 = vector.extract_strided_slice %112 {offsets = [0, 128], sizes = [128, 128], strides = [1, 1]} : vector<128x256xf32> to vector<128x128xf32>
      %c127_i32_71 = arith.constant 127 : i32
      %121 = tpu.dynamic_rotate %120 by %c127_i32_71 dim 0 : vector<128x128xf32>, i32 -> vector<128x128xf32>
      %cst_72 = arith.constant 0.000000e+00 : f32
      %122 = vector.shape_cast %49 : vector<128x1xi1> to vector<128x1xi1>
      %123 = vector.broadcast %122 : vector<128x1xi1> to vector<128x128xi1>
      %124 = vector.broadcast %cst_72 : f32 to vector<128x128xf32>
      %125 = arith.select %123, %121, %124 : vector<128x128xi1>, vector<128x128xf32>
      %126 = arith.addf %119, %125 : vector<128x128xf32>
      %127 = vector.extract_strided_slice %126 {offsets = [0, 0], sizes = [128, 8], strides = [1, 1]} : vector<128x128xf32> to vector<128x8xf32>
      %c0_73 = arith.constant 0 : index
      %128 = arith.index_cast %52 : i32 to index
      %c0_74 = arith.constant 0 : index
      %129 = vector.load %arg8[%c0_73, %128, %c0_74] : memref<1x256x8xf32, #tpu.memory_space<vmem>>, vector<1x128x8xf32>
      %130 = vector.shape_cast %129 : vector<1x128x8xf32> to vector<128x8xf32>
      %131 = vector.shape_cast %127 : vector<128x8xf32> to vector<1x128x8xf32>
      tpu.vector_store %arg8[%c0_73, %128, %c0_74], %131 {strides = array<i32>} : memref<1x256x8xf32, #tpu.memory_space<vmem>>, vector<1x128x8xf32>,
    }
    %c2_i32_34 = arith.constant 2 : i32
    return
  }
  func.func @transform_0(%arg0: i32) -> (i32, i32, i32) {
    %c0_i32 = arith.constant 0 : i32
    %c0_i32_0 = arith.constant 0 : i32
    %c0_i32_1 = arith.constant 0 : i32
    return %arg0, %c0_i32, %c0_i32_0 : i32, i32, i32
  }
  func.func @transform_1(%arg0: i32) -> (i32, i32) {
    %c0_i32 = arith.constant 0 : i32
    %c0_i32_0 = arith.constant 0 : i32
    %c0_i32_1 = arith.constant 0 : i32
    return %c0_i32, %c0_i32_0 : i32, i32
  }
  func.func @transform_2(%arg0: i32) -> (i32, i32) {
    %c0_i32 = arith.constant 0 : i32
    %c0_i32_0 = arith.constant 0 : i32
    %c0_i32_1 = arith.constant 0 : i32
    return %c0_i32, %c0_i32_0 : i32, i32
  }
  func.func @transform_3(%arg0: i32) -> (i32, i32) {
    %c0_i32 = arith.constant 0 : i32
    %c0_i32_0 = arith.constant 0 : i32
    %c0_i32_1 = arith.constant 0 : i32
    return %c0_i32, %c0_i32_0 : i32, i32
  }
  func.func @transform_4(%arg0: i32) -> (i32, i32, i32) {
    %c0_i32 = arith.constant 0 : i32
    %c0_i32_0 = arith.constant 0 : i32
    %c0_i32_1 = arith.constant 0 : i32
    %c0_i32_2 = arith.constant 0 : i32
    return %c0_i32, %c0_i32_0, %c0_i32_1 : i32, i32, i32
  }
  func.func @transform_5(%arg0: i32) -> (i32, i32, i32) {
    %c0_i32 = arith.constant 0 : i32
    %c0_i32_0 = arith.constant 0 : i32
    %c0_i32_1 = arith.constant 0 : i32
    %c0_i32_2 = arith.constant 0 : i32
    return %c0_i32, %c0_i32_0, %c0_i32_1 : i32, i32, i32
  }
  func.func @transform_6(%arg0: i32) -> (i32, i32) {
    %c0_i32 = arith.constant 0 : i32
    %c0_i32_0 = arith.constant 0 : i32
    %c0_i32_1 = arith.constant 0 : i32
    return %c0_i32, %c0_i32_0 : i32, i32
  }
  func.func @transform_7(%arg0: i32) -> (i32, i32, i32) {
    %c0_i32 = arith.constant 0 : i32
    %c0_i32_0 = arith.constant 0 : i32
    %c0_i32_1 = arith.constant 0 : i32
    return %arg0, %c0_i32, %c0_i32_0 : i32, i32, i32
  }
}

</mosaic_0001>

<llo_original>
// kernel: tpu_custom_call.1
$region0: #{tpu_custom_call.1}
  #allocation0 [shape = 'u32[]', space=smem, size = 0x4, offset = 0x4, fixed_abs, tag = 'smem constant byte address 0x4 - core index']
  #allocation1 [shape = 'u32[72,128]{1,0:T(1,128)}', space=vmem, size = 0x9000, scoped, tag = 'internal scratch']
  #allocation2 [shape = 'f32[288,64]{1,0:T(8,128)}', space=vmem, size = 0x24000, scoped, tag = 'scratch operand']
  %s0 = inlined_call_operand.vmem [shape: f32[2,256,64], index: 0, kind: input, shape index: {}]
  %s1 = inlined_call_operand.vmem [shape: f32[1,64], index: 1, kind: input, shape index: {}]
  %s2 = inlined_call_operand.vmem [shape: f32[1,64], index: 2, kind: input, shape index: {}]
  %s3 = inlined_call_operand.vmem [shape: f32[64,64], index: 3, kind: input, shape index: {}]
  %s4 = inlined_call_operand.vmem [shape: f32[3,64,128], index: 4, kind: input, shape index: {}]
  %s5 = inlined_call_operand.vmem [shape: f32[3,64,256], index: 5, kind: input, shape index: {}]
  %s6 = inlined_call_operand.vmem [shape: f32[1,128], index: 6, kind: input, shape index: {}]
  %s7 = inlined_call_operand.vmem [shape: f32[2,256,8], index: 7, kind: output, shape index: {}]
  %s8 = sld [smem:[#allocation0]]
  $region89: #{tpu_custom_call.1} parent=0
    _
  %s10 = ssub.s32 1, %s8
  %s11 = scalar_select 0, %s10, %s8
  loop: start=0, step=1, limit=4
  $region2: #{tpu_custom_call.1} parent=0 // loop_pre_header
    _
  $region3: #{tpu_custom_call.1} parent=0 // loop_header
    %s13 = sphi 0, %s17
    %p14 = scmp.ge.s32.totalorder %s13, 4
    %s23 = sphi 0, %s25
    %s26 = sphi 0, %s23
    %s27 = sphi 0, %s26
    %s43 = sphi 0, %s27
    %s47 = sphi 0, %s47
    %s49 = sphi 0, %s47
    %s50 = sphi 0, %s49
    %s64 = sphi 0, %s50
    %s68 = sphi 0, %s68
    %s70 = sphi 0, %s68
    %s71 = sphi 0, %s70
    %s85 = sphi 0, %s71
    %s89 = sphi 0, %s89
    %s91 = sphi 0, %s89
    %s92 = sphi 0, %s91
    %s106 = sphi 0, %s92
    %s110 = sphi 0, %s110
    %s112 = sphi 0, %s110
    %s113 = sphi 0, %s112
    %s127 = sphi 0, %s113
    %s131 = sphi 0, %s131
    %s133 = sphi 0, %s131
    %s134 = sphi 0, %s133
    %s148 = sphi 0, %s134
    %s152 = sphi 0, %s152
    %s154 = sphi 0, %s152
    %s155 = sphi 0, %s154
    %s169 = sphi 0, %s155
    %s175 = sphi 0, %s177
    %s178 = sphi 0, %s175
    %s179 = sphi 0, %s178
    %s195 = sphi 0, %s179
  $region4: #{tpu_custom_call.1} parent=0 // loop_header_branch
    %16 = sbr.rel (%p14) target = $region8
  $region5: #{tpu_custom_call.1} parent=0 // loop_body
    %s18 = ssub.s32 %s13, 1
    %s19 = ssub.s32 %s13, 2
    %s20 = sadd.s32 %s13, 1
    %s21 = ssub.s32 %s13, %s20
    %p22 = scmp.eq.s32.totalorder %s21, 0
    %s24 = sadd.s32 %s23, 1
    %s25 = scalar_select %p22, %s23, %s24
    %p28 = pneg %p22
    %p29 = scmp.eq.s32.totalorder %s13, 1
    %p30 = por %p28, %p29
    %p31 = scmp.ne.s32.totalorder %s23, %s26
    %p32 = scmp.eq.s32.totalorder %s13, 0
    %p33 = por %p31, %p32
    %p34 = scmp.ne.s32.totalorder %s23, %s26
    %p35 = scmp.eq.s32.totalorder %s18, 1
    %p36 = por %p34, %p35
    %p37 = scmp.ne.s32.totalorder %s26, %s27
    %p38 = scmp.eq.s32.totalorder %s18, 0
    %p39 = por %p37, %p38
    %p40 = scmp.ne.s32.totalorder %s26, %s27
    %p41 = scmp.eq.s32.totalorder %s19, 1
    %p42 = por %p40, %p41
    %p44 = scmp.ne.s32.totalorder %s27, %s43
    %p45 = scmp.eq.s32.totalorder %s19, 0
    %p46 = por %p44, %p45
    %s48 = sadd.s32 %s47, 1
    %p51 = scmp.eq.s32.totalorder %s13, 1
    %p52 = scmp.ne.s32.totalorder %s47, %s49
    %p53 = scmp.eq.s32.totalorder %s13, 0
    %p54 = por %p52, %p53
    %p55 = scmp.ne.s32.totalorder %s47, %s49
    %p56 = scmp.eq.s32.totalorder %s18, 1
    %p57 = por %p55, %p56
    %p58 = scmp.ne.s32.totalorder %s49, %s50
    %p59 = scmp.eq.s32.totalorder %s18, 0
    %p60 = por %p58, %p59
    %p61 = scmp.ne.s32.totalorder %s49, %s50
    %p62 = scmp.eq.s32.totalorder %s19, 1
    %p63 = por %p61, %p62
    %p65 = scmp.ne.s32.totalorder %s50, %s64
    %p66 = scmp.eq.s32.totalorder %s19, 0
    %p67 = por %p65, %p66
    %s69 = sadd.s32 %s68, 1
    %p72 = scmp.eq.s32.totalorder %s13, 1
    %p73 = scmp.ne.s32.totalorder %s68, %s70
    %p74 = scmp.eq.s32.totalorder %s13, 0
    %p75 = por %p73, %p74
    %p76 = scmp.ne.s32.totalorder %s68, %s70
    %p77 = scmp.eq.s32.totalorder %s18, 1
    %p78 = por %p76, %p77
    %p79 = scmp.ne.s32.totalorder %s70, %s71
    %p80 = scmp.eq.s32.totalorder %s18, 0
    %p81 = por %p79, %p80
    %p82 = scmp.ne.s32.totalorder %s70, %s71
    %p83 = scmp.eq.s32.totalorder %s19, 1
    %p84 = por %p82, %p83
    %p86 = scmp.ne.s32.totalorder %s71, %s85
    %p87 = scmp.eq.s32.totalorder %s19, 0
    %p88 = por %p86, %p87
    %s90 = sadd.s32 %s89, 1
    %p93 = scmp.eq.s32.totalorder %s13, 1
    %p94 = scmp.ne.s32.totalorder %s89, %s91
    %p95 = scmp.eq.s32.totalorder %s13, 0
    %p96 = por %p94, %p95
    %p97 = scmp.ne.s32.totalorder %s89, %s91
    %p98 = scmp.eq.s32.totalorder %s18, 1
    %p99 = por %p97, %p98
    %p100 = scmp.ne.s32.totalorder %s91, %s92
    %p101 = scmp.eq.s32.totalorder %s18, 0
    %p102 = por %p100, %p101
    %p103 = scmp.ne.s32.totalorder %s91, %s92
    %p104 = scmp.eq.s32.totalorder %s19, 1
    %p105 = por %p103, %p104
    %p107 = scmp.ne.s32.totalorder %s92, %s106
    %p108 = scmp.eq.s32.totalorder %s19, 0
    %p109 = por %p107, %p108
    %s111 = sadd.s32 %s110, 1
    %p114 = scmp.eq.s32.totalorder %s13, 1
    %p115 = scmp.ne.s32.totalorder %s110, %s112
    %p116 = scmp.eq.s32.totalorder %s13, 0
    %p117 = por %p115, %p116
    %p118 = scmp.ne.s32.totalorder %s110, %s112
    %p119 = scmp.eq.s32.totalorder %s18, 1
    %p120 = por %p118, %p119
    %p121 = scmp.ne.s32.totalorder %s112, %s113
    %p122 = scmp.eq.s32.totalorder %s18, 0
    %p123 = por %p121, %p122
    %p124 = scmp.ne.s32.totalorder %s112, %s113
    %p125 = scmp.eq.s32.totalorder %s19, 1
    %p126 = por %p124, %p125
    %p128 = scmp.ne.s32.totalorder %s113, %s127
    %p129 = scmp.eq.s32.totalorder %s19, 0
    %p130 = por %p128, %p129
    %s132 = sadd.s32 %s131, 1
    %p135 = scmp.eq.s32.totalorder %s13, 1
    %p136 = scmp.ne.s32.totalorder %s131, %s133
    %p137 = scmp.eq.s32.totalorder %s13, 0
    %p138 = por %p136, %p137
    %p139 = scmp.ne.s32.totalorder %s131, %s133
    %p140 = scmp.eq.s32.totalorder %s18, 1
    %p141 = por %p139, %p140
    %p142 = scmp.ne.s32.totalorder %s133, %s134
    %p143 = scmp.eq.s32.totalorder %s18, 0
    %p144 = por %p142, %p143
    %p145 = scmp.ne.s32.totalorder %s133, %s134
    %p146 = scmp.eq.s32.totalorder %s19, 1
    %p147 = por %p145, %p146
    %p149 = scmp.ne.s32.totalorder %s134, %s148
    %p150 = scmp.eq.s32.totalorder %s19, 0
    %p151 = por %p149, %p150
    %s153 = sadd.s32 %s152, 1
    %p156 = scmp.eq.s32.totalorder %s13, 1
    %p157 = scmp.ne.s32.totalorder %s152, %s154
    %p158 = scmp.eq.s32.totalorder %s13, 0
    %p159 = por %p157, %p158
    %p160 = scmp.ne.s32.totalorder %s152, %s154
    %p161 = scmp.eq.s32.totalorder %s18, 1
    %p162 = por %p160, %p161
    %p163 = scmp.ne.s32.totalorder %s154, %s155
    %p164 = scmp.eq.s32.totalorder %s18, 0
    %p165 = por %p163, %p164
    %p166 = scmp.ne.s32.totalorder %s154, %s155
    %p167 = scmp.eq.s32.totalorder %s19, 1
    %p168 = por %p166, %p167
    %p170 = scmp.ne.s32.totalorder %s155, %s169
    %p171 = scmp.eq.s32.totalorder %s19, 0
    %p172 = por %p170, %p171
    %s173 = ssub.s32 %s13, %s20
    %p174 = scmp.eq.s32.totalorder %s173, 0
    %s176 = sadd.s32 %s175, 1
    %s177 = scalar_select %p174, %s175, %s176
    %p180 = pneg %p174
    %p181 = scmp.eq.s32.totalorder %s13, 1
    %p182 = por %p180, %p181
    %p183 = scmp.ne.s32.totalorder %s175, %s178
    %p184 = scmp.eq.s32.totalorder %s13, 0
    %p185 = por %p183, %p184
    %p186 = scmp.ne.s32.totalorder %s175, %s178
    %p187 = scmp.eq.s32.totalorder %s18, 1
    %p188 = por %p186, %p187
    %p189 = scmp.ne.s32.totalorder %s178, %s179
    %p190 = scmp.eq.s32.totalorder %s18, 0
    %p191 = por %p189, %p190
    %p192 = scmp.ne.s32.totalorder %s178, %s179
    %p193 = scmp.eq.s32.totalorder %s19, 1
    %p194 = por %p192, %p193
    %p196 = scmp.ne.s32.totalorder %s179, %s195
    %p197 = scmp.eq.s32.totalorder %s19, 0
    %p198 = por %p196, %p197
    %p199 = scmp.le.s32.totalorder 1, %s13
    %p200 = scmp.lt.s32.totalorder %s13, 3
    %p201 = pnand %p199, %p200
    %p202 = pneg %p201
    // Predicated region
    $region9: #{tpu_custom_call.1} parent=5 // pred_check
      _
    $region10: #{tpu_custom_call.1} parent=5 // pred_check_branch
      %204 = sbr.rel (%p201) target = $region12
    $region11: #{tpu_custom_call.1} parent=5 // pred_region
      %s205 = ssub.s32 %s13, 1
      // Predicated region
      $region13: #{tpu_custom_call.1} parent=11 // pred_check
        %p206 = pneg %p60
      $region14: #{tpu_custom_call.1} parent=11 // pred_check_branch
        %208 = sbr.rel (%p206) target = $region16
      $region15: #{tpu_custom_call.1} parent=11 // pred_region
        _
      $region16: #{tpu_custom_call.1} parent=11 // pred_fallthru
        _
      // Predicated region
      $region17: #{tpu_custom_call.1} parent=11 // pred_check
        %p209 = pneg %p81
      $region18: #{tpu_custom_call.1} parent=11 // pred_check_branch
        %211 = sbr.rel (%p209) target = $region20
      $region19: #{tpu_custom_call.1} parent=11 // pred_region
        _
      $region20: #{tpu_custom_call.1} parent=11 // pred_fallthru
        _
      // Predicated region
      $region21: #{tpu_custom_call.1} parent=11 // pred_check
        %p212 = pneg %p102
      $region22: #{tpu_custom_call.1} parent=11 // pred_check_branch
        %214 = sbr.rel (%p212) target = $region24
      $region23: #{tpu_custom_call.1} parent=11 // pred_region
        _
      $region24: #{tpu_custom_call.1} parent=11 // pred_fallthru
        _
      // Predicated region
      $region25: #{tpu_custom_call.1} parent=11 // pred_check
        %p215 = pneg %p123
      $region26: #{tpu_custom_call.1} parent=11 // pred_check_branch
        %217 = sbr.rel (%p215) target = $region28
      $region27: #{tpu_custom_call.1} parent=11 // pred_region
        _
      $region28: #{tpu_custom_call.1} parent=11 // pred_fallthru
        _
      // Predicated region
      $region29: #{tpu_custom_call.1} parent=11 // pred_check
        %p218 = pneg %p144
      $region30: #{tpu_custom_call.1} parent=11 // pred_check_branch
        %220 = sbr.rel (%p218) target = $region32
      $region31: #{tpu_custom_call.1} parent=11 // pred_region
        _
      $region32: #{tpu_custom_call.1} parent=11 // pred_fallthru
        _
      // Predicated region
      $region33: #{tpu_custom_call.1} parent=11 // pred_check
        %p221 = pneg %p165
      $region34: #{tpu_custom_call.1} parent=11 // pred_check_branch
        %223 = sbr.rel (%p221) target = $region36
      $region35: #{tpu_custom_call.1} parent=11 // pred_region
        _
      $region36: #{tpu_custom_call.1} parent=11 // pred_fallthru
        _
    $region12: #{tpu_custom_call.1} parent=5 // pred_fallthru
      _
    %p224 = scmp.lt.s32.totalorder %s13, 2
    // Predicated region
    $region37: #{tpu_custom_call.1} parent=5 // pred_check
      %p225 = pneg %p224
    $region38: #{tpu_custom_call.1} parent=5 // pred_check_branch
      %227 = sbr.rel (%p225) target = $region40
    $region39: #{tpu_custom_call.1} parent=5 // pred_region
      // Predicated region
      $region41: #{tpu_custom_call.1} parent=39 // pred_check
        %p228 = pneg %p33
      $region42: #{tpu_custom_call.1} parent=39 // pred_check_branch
        %230 = sbr.rel (%p228) target = $region44
      $region43: #{tpu_custom_call.1} parent=39 // pred_region
        %p231 = scmp.lt.s32.totalorder %s13, 1
        %s232 = scalar_select %p231, %s13, 1
        %s233 = smul.addr %s232, 32
        %s234 = smul.addr %s233, 8
        %s235 = scalar_lea.vmem %s0, %s234
      $region44: #{tpu_custom_call.1} parent=39 // pred_fallthru
        _
    $region40: #{tpu_custom_call.1} parent=5 // pred_fallthru
      _
    %p236 = scmp.le.s32.totalorder 1, %s13
    %p237 = scmp.lt.s32.totalorder %s13, 3
    %p238 = pnand %p236, %p237
    %p239 = pneg %p238
    // Predicated region
    $region45: #{tpu_custom_call.1} parent=5 // pred_check
      _
    $region46: #{tpu_custom_call.1} parent=5 // pred_check_branch
      %241 = sbr.rel (%p238) target = $region48
    $region47: #{tpu_custom_call.1} parent=5 // pred_region
      %s242 = ssub.s32 %s13, 1
      %p243 = scmp.lt.s32.totalorder %s18, 1
      %s244 = scalar_select %p243, %s18, 1
      %s245 = smul.addr %s244, 32
      %s246 = smul.addr %s245, 8
      %s247 = scalar_lea.vmem %s0, %s246
      %p248 = pneg %p39
      %p249 = pneg %p36
      %p250 = pneg %p60
      %p251 = pneg %p57
      %p252 = pneg %p81
      %p253 = pneg %p78
      %p254 = pneg %p102
      %p255 = pneg %p99
      %p256 = pneg %p123
      %p257 = pneg %p120
      %p258 = pneg %p144
      %p259 = pneg %p141
      %p260 = pneg %p165
      %p261 = pneg %p162
      %p262 = pneg %p191
      %p263 = pneg %p188
      %p264 = scmp.lt.s32.totalorder %s18, 1
      %s265 = scalar_select %p264, %s18, 1
      %s266 = smul.addr %s265, 32
      %s267 = smul.addr %s266, 8
      %s268 = scalar_lea.vmem %s7, %s267
      %p269 = scmp.lt.s32.totalorder %s18, 1
      %s270 = scalar_select %p269, %s18, 1
      %s271 = smul.addr %s270, 32
      %s272 = smul.addr %s271, 8
      %s273 = scalar_lea.vmem %s0, %s272
      %p274 = scmp.lt.s32.totalorder %s18, 1
      %s275 = scalar_select %p274, %s18, 1
      %s276 = smul.addr %s275, 32
      %s277 = smul.addr %s276, 8
      %s278 = scalar_lea.vmem %s7, %s277
      loop: start=0, step=1, limit=2
      $region49: #{tpu_custom_call.1} parent=47 // loop_pre_header
        _
      $region50: #{tpu_custom_call.1} parent=47 // loop_header
        %s280 = sphi 0, %s284
        %p281 = scmp.ge.s32.totalorder %s280, 2
        %v285 = vphi 0.0, %v342
      $region51: #{tpu_custom_call.1} parent=47 // loop_header_branch
        %283 = sbr.rel (%p281) target = $region55
      $region52: #{tpu_custom_call.1} parent=47 // loop_body
        %s286 = smul.u32 %s280, 128
        %s287 = scalar_lea.vmem %s273, %s286
        %v288 = vld [vmem:[%s287] sm:$0xff]
        %v289 = vld [vmem:[%s287 + $0x8] sm:$0xff]
        %v290 = vld [vmem:[%s287 + $0x10] sm:$0xff]
        %v291 = vld [vmem:[%s287 + $0x18] sm:$0xff]
        %v292 = vld [vmem:[%s287 + $0x20] sm:$0xff]
        %v293 = vld [vmem:[%s287 + $0x28] sm:$0xff]
        %v294 = vld [vmem:[%s287 + $0x30] sm:$0xff]
        %v295 = vld [vmem:[%s287 + $0x38] sm:$0xff]
        %v296 = vld [vmem:[%s287 + $0x40] sm:$0xff]
        %v297 = vld [vmem:[%s287 + $0x48] sm:$0xff]
        %v298 = vld [vmem:[%s287 + $0x50] sm:$0xff]
        %v299 = vld [vmem:[%s287 + $0x58] sm:$0xff]
        %v300 = vld [vmem:[%s287 + $0x60] sm:$0xff]
        %v301 = vld [vmem:[%s287 + $0x68] sm:$0xff]
        %v302 = vld [vmem:[%s287 + $0x70] sm:$0xff]
        %v303 = vld [vmem:[%s287 + $0x78] sm:$0xff]
        %vm304 = vcmask 523264
        %v305 = vsel %vm304, %v288, 0.0
        %v306 = vsel %vm304, %v289, 0.0
        %v307 = vadd.f32 %v305, %v306
        %v308 = vsel %vm304, %v290, 0.0
        %v309 = vadd.f32 %v307, %v308
        %v310 = vsel %vm304, %v291, 0.0
        %v311 = vadd.f32 %v309, %v310
        %v312 = vsel %vm304, %v292, 0.0
        %v313 = vadd.f32 %v311, %v312
        %v314 = vsel %vm304, %v293, 0.0
        %v315 = vadd.f32 %v313, %v314
        %v316 = vsel %vm304, %v294, 0.0
        %v317 = vadd.f32 %v315, %v316
        %v318 = vsel %vm304, %v295, 0.0
        %v319 = vadd.f32 %v317, %v318
        %v320 = vsel %vm304, %v296, 0.0
        %v321 = vadd.f32 %v319, %v320
        %v322 = vsel %vm304, %v297, 0.0
        %v323 = vadd.f32 %v321, %v322
        %v324 = vsel %vm304, %v298, 0.0
        %v325 = vadd.f32 %v323, %v324
        %v326 = vsel %vm304, %v299, 0.0
        %v327 = vadd.f32 %v325, %v326
        %v328 = vsel %vm304, %v300, 0.0
        %v329 = vadd.f32 %v327, %v328
        %v330 = vsel %vm304, %v301, 0.0
        %v331 = vadd.f32 %v329, %v330
        %v332 = vsel %vm304, %v302, 0.0
        %v333 = vadd.f32 %v331, %v332
        %v334 = vsel %vm304, %v303, 0.0
        %v335 = vadd.f32 %v333, %v334
        %v336 = vrot.slane %v335, 4
        %v337 = vadd.f32 %v335, %v336
        %v338 = vrot.slane %v337, 2
        %v339 = vadd.f32 %v337, %v338
        %v340 = vrot.slane %v339, 1
        %v341 = vadd.f32 %v339, %v340
        %v342 = vadd.f32 %v285, %v341
      $region53: #{tpu_custom_call.1} parent=47 // loop_footer
        %s284 = sadd.s32 1, %s280
      $region54: #{tpu_custom_call.1} parent=47 // loop_footer_branch
        %279 = sbr.rel target = $region50
      $region55: #{tpu_custom_call.1} parent=47 // loop_exit
        _
      %v343 = vld [vmem:[%s3] sm:$0xff]
      %v344 = vld [vmem:[%s3 + $0x8] sm:$0xff]
      %v345 = vld [vmem:[%s3 + $0x10] sm:$0xff]
      %v346 = vld [vmem:[%s3 + $0x18] sm:$0xff]
      %v347 = vld [vmem:[%s3 + $0x20] sm:$0xff]
      %v348 = vld [vmem:[%s3 + $0x28] sm:$0xff]
      %v349 = vld [vmem:[%s3 + $0x30] sm:$0xff]
      %v350 = vld [vmem:[%s3 + $0x38] sm:$0xff]
      %vm351 = vcmask 523264
      %v353 = vsel %vm351, %v285, 0
      %355 = vmatpush.msra.mxu0 0.0
      %356 = vmatpush.msra.mxu0 0.0
      %357 = vmatpush.msra.mxu0 0.0
      %358 = vmatpush.msra.mxu0 0.0
      %359 = vmatpush.msra.mxu0 0.0
      %360 = vmatpush.msra.mxu0 0.0
      %361 = vmatpush.msra.mxu0 0.0
      %362 = vmatpush.msra.mxu0 0.0
      %363 = vmatpush.msra.mxu0 %v350
      %364 = vmatpush.msra.mxu0 %v349
      %365 = vmatpush.msra.mxu0 %v348
      %366 = vmatpush.msra.mxu0 %v347
      %367 = vmatpush.msra.mxu0 %v346
      %368 = vmatpush.msra.mxu0 %v345
      %369 = vmatpush.msra.mxu0 %v344
      %370 = vmatpush.msra.mxu0 %v343
      %371 = vmatmul.f32.gmra.mxu0 %v353
      %v372 = vpop.f32.mrf.mxu0
      %v373 = vadd.f32 0.0, %v372
      %374 = vdwg.mxu0
      loop: start=0, step=1, limit=2
      $region56: #{tpu_custom_call.1} parent=47 // loop_pre_header
        _
      $region57: #{tpu_custom_call.1} parent=47 // loop_header
        %s376 = sphi 0, %s380
        %p377 = scmp.ge.s32.totalorder %s376, 2
        %v381 = vphi 0.0, %v470
      $region58: #{tpu_custom_call.1} parent=47 // loop_header_branch
        %379 = sbr.rel (%p377) target = $region62
      $region59: #{tpu_custom_call.1} parent=47 // loop_body
        %s382 = smul.u32 %s376, 128
        %s383 = scalar_lea.vmem %s273, %s382
        %v384 = vld [vmem:[%s383] sm:$0xff]
        %v385 = vld [vmem:[%s383 + $0x8] sm:$0xff]
        %v386 = vld [vmem:[%s383 + $0x10] sm:$0xff]
        %v387 = vld [vmem:[%s383 + $0x18] sm:$0xff]
        %v388 = vld [vmem:[%s383 + $0x20] sm:$0xff]
        %v389 = vld [vmem:[%s383 + $0x28] sm:$0xff]
        %v390 = vld [vmem:[%s383 + $0x30] sm:$0xff]
        %v391 = vld [vmem:[%s383 + $0x38] sm:$0xff]
        %v392 = vld [vmem:[%s383 + $0x40] sm:$0xff]
        %v393 = vld [vmem:[%s383 + $0x48] sm:$0xff]
        %v394 = vld [vmem:[%s383 + $0x50] sm:$0xff]
        %v395 = vld [vmem:[%s383 + $0x58] sm:$0xff]
        %v396 = vld [vmem:[%s383 + $0x60] sm:$0xff]
        %v397 = vld [vmem:[%s383 + $0x68] sm:$0xff]
        %v398 = vld [vmem:[%s383 + $0x70] sm:$0xff]
        %v399 = vld [vmem:[%s383 + $0x78] sm:$0xff]
        %v400 = vperm.slane %v373, 0
        %v401 = vsub.f32 %v384, %v400
        %v402 = vsub.f32 %v385, %v400
        %v403 = vsub.f32 %v386, %v400
        %v404 = vsub.f32 %v387, %v400
        %v405 = vsub.f32 %v388, %v400
        %v406 = vsub.f32 %v389, %v400
        %v407 = vsub.f32 %v390, %v400
        %v408 = vsub.f32 %v391, %v400
        %v409 = vsub.f32 %v392, %v400
        %v410 = vsub.f32 %v393, %v400
        %v411 = vsub.f32 %v394, %v400
        %v412 = vsub.f32 %v395, %v400
        %v413 = vsub.f32 %v396, %v400
        %v414 = vsub.f32 %v397, %v400
        %v415 = vsub.f32 %v398, %v400
        %v416 = vsub.f32 %v399, %v400
        %v417 = vmul.f32 %v401, %v401
        %v418 = vmul.f32 %v402, %v402
        %v419 = vmul.f32 %v403, %v403
        %v420 = vmul.f32 %v404, %v404
        %v421 = vmul.f32 %v405, %v405
        %v422 = vmul.f32 %v406, %v406
        %v423 = vmul.f32 %v407, %v407
        %v424 = vmul.f32 %v408, %v408
        %v425 = vmul.f32 %v409, %v409
        %v426 = vmul.f32 %v410, %v410
        %v427 = vmul.f32 %v411, %v411
        %v428 = vmul.f32 %v412, %v412
        %v429 = vmul.f32 %v413, %v413
        %v430 = vmul.f32 %v414, %v414
        %v431 = vmul.f32 %v415, %v415
        %v432 = vmul.f32 %v416, %v416
        %v433 = vsel %vm351, %v417, 0.0
        %v434 = vsel %vm351, %v418, 0.0
        %v435 = vadd.f32 %v433, %v434
        %v436 = vsel %vm351, %v419, 0.0
        %v437 = vadd.f32 %v435, %v436
        %v438 = vsel %vm351, %v420, 0.0
        %v439 = vadd.f32 %v437, %v438
        %v440 = vsel %vm351, %v421, 0.0
        %v441 = vadd.f32 %v439, %v440
        %v442 = vsel %vm351, %v422, 0.0
        %v443 = vadd.f32 %v441, %v442
        %v444 = vsel %vm351, %v423, 0.0
        %v445 = vadd.f32 %v443, %v444
        %v446 = vsel %vm351, %v424, 0.0
        %v447 = vadd.f32 %v445, %v446
        %v448 = vsel %vm351, %v425, 0.0
        %v449 = vadd.f32 %v447, %v448
        %v450 = vsel %vm351, %v426, 0.0
        %v451 = vadd.f32 %v449, %v450
        %v452 = vsel %vm351, %v427, 0.0
        %v453 = vadd.f32 %v451, %v452
        %v454 = vsel %vm351, %v428, 0.0
        %v455 = vadd.f32 %v453, %v454
        %v456 = vsel %vm351, %v429, 0.0
        %v457 = vadd.f32 %v455, %v456
        %v458 = vsel %vm351, %v430, 0.0
        %v459 = vadd.f32 %v457, %v458
        %v460 = vsel %vm351, %v431, 0.0
        %v461 = vadd.f32 %v459, %v460
        %v462 = vsel %vm351, %v432, 0.0
        %v463 = vadd.f32 %v461, %v462
        %v464 = vrot.slane %v463, 4
        %v465 = vadd.f32 %v463, %v464
        %v466 = vrot.slane %v465, 2
        %v467 = vadd.f32 %v465, %v466
        %v468 = vrot.slane %v467, 1
        %v469 = vadd.f32 %v467, %v468
        %v470 = vadd.f32 %v381, %v469
      $region60: #{tpu_custom_call.1} parent=47 // loop_footer
        %s380 = sadd.s32 1, %s376
      $region61: #{tpu_custom_call.1} parent=47 // loop_footer_branch
        %375 = sbr.rel target = $region57
      $region62: #{tpu_custom_call.1} parent=47 // loop_exit
        _
      %v472 = vsel %vm351, %v381, 0
      %474 = vmatpush.msra.mxu0 0.0
      %475 = vmatpush.msra.mxu0 0.0
      %476 = vmatpush.msra.mxu0 0.0
      %477 = vmatpush.msra.mxu0 0.0
      %478 = vmatpush.msra.mxu0 0.0
      %479 = vmatpush.msra.mxu0 0.0
      %480 = vmatpush.msra.mxu0 0.0
      %481 = vmatpush.msra.mxu0 0.0
      %482 = vmatpush.msra.mxu0 %v350
      %483 = vmatpush.msra.mxu0 %v349
      %484 = vmatpush.msra.mxu0 %v348
      %485 = vmatpush.msra.mxu0 %v347
      %486 = vmatpush.msra.mxu0 %v346
      %487 = vmatpush.msra.mxu0 %v345
      %488 = vmatpush.msra.mxu0 %v344
      %489 = vmatpush.msra.mxu0 %v343
      %490 = vmatmul.f32.gmra.mxu0 %v472
      %v491 = vpop.f32.mrf.mxu0
      %v492 = vadd.f32 0.0, %v491
      %493 = vdwg.mxu0
      %v494 = vadd.f32 %v492, 1e-05
      %v495 = vrsqrt.pop %v494
      %v496 = vmul.f32 %v495, %v494
      %v497 = vmul.f32 %v496, %v495
      %v498 = vmul.f32 0.5, %v497
      %v499 = vsub.f32 1.5, %v498
      %v500 = vmul.f32 %v495, %v499
      %vm501 = vweird.f32 %v494
      %vm502 = vweird.f32 %v495
      %vm503 = vmor %vm501, %vm502
      %v504 = vsel %vm503, %v495, %v500
      %v505 = vld [vmem:[%s1] sm:$0x1]
      %v506 = vmul.f32 %v505, %v504
      %v507 = vld [vmem:[%s2] sm:$0x1]
      %v508 = vmul.f32 %v373, %v506
      %v509 = vsub.f32 %v507, %v508
      %510 = vst.msk [vmem:[#allocation2] sm:$0xff] %vm351, 0.0
      %511 = vst.msk [vmem:[#allocation2 + $0x8] sm:$0xff] %vm351, 0.0
      %512 = vst.msk [vmem:[#allocation2 + $0x110] sm:$0xff] %vm351, 0.0
      %513 = vst.msk [vmem:[#allocation2 + $0x118] sm:$0xff] %vm351, 0.0
      loop: start=0, step=1, limit=2
      $region63: #{tpu_custom_call.1} parent=47 // loop_pre_header
        _
      $region64: #{tpu_custom_call.1} parent=47 // loop_header
        %s515 = sphi 0, %s519
        %p516 = scmp.ge.s32.totalorder %s515, 2
      $region65: #{tpu_custom_call.1} parent=47 // loop_header_branch
        %518 = sbr.rel (%p516) target = $region69
      $region66: #{tpu_custom_call.1} parent=47 // loop_body
        %s520 = smul.u32 %s515, 128
        %s521 = scalar_lea.vmem %s273, %s520
        %v522 = vld [vmem:[%s521] sm:$0xff]
        %v523 = vld [vmem:[%s521 + $0x8] sm:$0xff]
        %v524 = vld [vmem:[%s521 + $0x10] sm:$0xff]
        %v525 = vld [vmem:[%s521 + $0x18] sm:$0xff]
        %v526 = vld [vmem:[%s521 + $0x20] sm:$0xff]
        %v527 = vld [vmem:[%s521 + $0x28] sm:$0xff]
        %v528 = vld [vmem:[%s521 + $0x30] sm:$0xff]
        %v529 = vld [vmem:[%s521 + $0x38] sm:$0xff]
        %v530 = vld [vmem:[%s521 + $0x40] sm:$0xff]
        %v531 = vld [vmem:[%s521 + $0x48] sm:$0xff]
        %v532 = vld [vmem:[%s521 + $0x50] sm:$0xff]
        %v533 = vld [vmem:[%s521 + $0x58] sm:$0xff]
        %v534 = vld [vmem:[%s521 + $0x60] sm:$0xff]
        %v535 = vld [vmem:[%s521 + $0x68] sm:$0xff]
        %v536 = vld [vmem:[%s521 + $0x70] sm:$0xff]
        %v537 = vld [vmem:[%s521 + $0x78] sm:$0xff]
        %v539 = vperm.slane %v506, 0
        %v541 = vmul.f32 %v522, %v539
        %v542 = vmul.f32 %v523, %v539
        %v543 = vmul.f32 %v524, %v539
        %v544 = vmul.f32 %v525, %v539
        %v545 = vmul.f32 %v526, %v539
        %v546 = vmul.f32 %v527, %v539
        %v547 = vmul.f32 %v528, %v539
        %v548 = vmul.f32 %v529, %v539
        %v549 = vmul.f32 %v530, %v539
        %v550 = vmul.f32 %v531, %v539
        %v551 = vmul.f32 %v532, %v539
        %v552 = vmul.f32 %v533, %v539
        %v553 = vmul.f32 %v534, %v539
        %v554 = vmul.f32 %v535, %v539
        %v555 = vmul.f32 %v536, %v539
        %v556 = vmul.f32 %v537, %v539
        %v558 = vperm.slane %v509, 0
        %v560 = vadd.f32 %v541, %v558
        %v561 = vadd.f32 %v542, %v558
        %v562 = vadd.f32 %v543, %v558
        %v563 = vadd.f32 %v544, %v558
        %v564 = vadd.f32 %v545, %v558
        %v565 = vadd.f32 %v546, %v558
        %v566 = vadd.f32 %v547, %v558
        %v567 = vadd.f32 %v548, %v558
        %v568 = vadd.f32 %v549, %v558
        %v569 = vadd.f32 %v550, %v558
        %v570 = vadd.f32 %v551, %v558
        %v571 = vadd.f32 %v552, %v558
        %v572 = vadd.f32 %v553, %v558
        %v573 = vadd.f32 %v554, %v558
        %v574 = vadd.f32 %v555, %v558
        %v575 = vadd.f32 %v556, %v558
        %v576 = vxor.u32 %v560, 2147483648
        %v577 = vxor.u32 %v561, 2147483648
        %v578 = vxor.u32 %v562, 2147483648
        %v579 = vxor.u32 %v563, 2147483648
        %v580 = vxor.u32 %v564, 2147483648
        %v581 = vxor.u32 %v565, 2147483648
        %v582 = vxor.u32 %v566, 2147483648
        %v583 = vxor.u32 %v567, 2147483648
        %v584 = vxor.u32 %v568, 2147483648
        %v585 = vxor.u32 %v569, 2147483648
        %v586 = vxor.u32 %v570, 2147483648
        %v587 = vxor.u32 %v571, 2147483648
        %v588 = vxor.u32 %v572, 2147483648
        %v589 = vxor.u32 %v573, 2147483648
        %v590 = vxor.u32 %v574, 2147483648
        %v591 = vxor.u32 %v575, 2147483648
        %v592 = vmul.f32 %v576, 1.442695
        %v593 = vpow.pop %v592
        %v594 = vmul.f32 %v577, 1.442695
        %v595 = vpow.pop %v594
        %v596 = vmul.f32 %v578, 1.442695
        %v597 = vpow.pop %v596
        %v598 = vmul.f32 %v579, 1.442695
        %v599 = vpow.pop %v598
        %v600 = vmul.f32 %v580, 1.442695
        %v601 = vpow.pop %v600
        %v602 = vmul.f32 %v581, 1.442695
        %v603 = vpow.pop %v602
        %v604 = vmul.f32 %v582, 1.442695
        %v605 = vpow.pop %v604
        %v606 = vmul.f32 %v583, 1.442695
        %v607 = vpow.pop %v606
        %v608 = vmul.f32 %v584, 1.442695
        %v609 = vpow.pop %v608
        %v610 = vmul.f32 %v585, 1.442695
        %v611 = vpow.pop %v610
        %v612 = vmul.f32 %v586, 1.442695
        %v613 = vpow.pop %v612
        %v614 = vmul.f32 %v587, 1.442695
        %v615 = vpow.pop %v614
        %v616 = vmul.f32 %v588, 1.442695
        %v617 = vpow.pop %v616
        %v618 = vmul.f32 %v589, 1.442695
        %v619 = vpow.pop %v618
        %v620 = vmul.f32 %v590, 1.442695
        %v621 = vpow.pop %v620
        %v622 = vmul.f32 %v591, 1.442695
        %v623 = vpow.pop %v622
        %v624 = vadd.f32 %v593, 1.0
        %v625 = vadd.f32 %v595, 1.0
        %v626 = vadd.f32 %v597, 1.0
        %v627 = vadd.f32 %v599, 1.0
        %v628 = vadd.f32 %v601, 1.0
        %v629 = vadd.f32 %v603, 1.0
        %v630 = vadd.f32 %v605, 1.0
        %v631 = vadd.f32 %v607, 1.0
        %v632 = vadd.f32 %v609, 1.0
        %v633 = vadd.f32 %v611, 1.0
        %v634 = vadd.f32 %v613, 1.0
        %v635 = vadd.f32 %v615, 1.0
        %v636 = vadd.f32 %v617, 1.0
        %v637 = vadd.f32 %v619, 1.0
        %v638 = vadd.f32 %v621, 1.0
        %v639 = vadd.f32 %v623, 1.0
        %v640 = vrcp.pop %v624
        %v641 = vmul.f32 %v624, %v640
        %v642 = vsub.f32 1.0, %v641
        %v643 = vmul.f32 %v640, %v642
        %v644 = vadd.f32 %v640, %v643
        %vm645 = vweird.f32 %v624
        %vm646 = vweird.f32 %v640
        %vm647 = vmor %vm645, %vm646
        %v648 = vsel %vm647, %v640, %v644
        %v649 = vand.u32 2147483647, %v624
        %vm650 = vcmp.eq.f32.partialorder %v649, 8.507059e+37
        %v651 = vand.u32 %v624, 2147483648
        %v652 = vor.u32 1.1754944e-38, %v651
        %v653 = vsel %vm650, %v652, %v648
        %v654 = vmul.f32 1.0, %v653
        %v655 = vrcp.pop %v625
        %v656 = vmul.f32 %v625, %v655
        %v657 = vsub.f32 1.0, %v656
        %v658 = vmul.f32 %v655, %v657
        %v659 = vadd.f32 %v655, %v658
        %vm660 = vweird.f32 %v625
        %vm661 = vweird.f32 %v655
        %vm662 = vmor %vm660, %vm661
        %v663 = vsel %vm662, %v655, %v659
        %v664 = vand.u32 2147483647, %v625
        %vm665 = vcmp.eq.f32.partialorder %v664, 8.507059e+37
        %v666 = vand.u32 %v625, 2147483648
        %v667 = vor.u32 1.1754944e-38, %v666
        %v668 = vsel %vm665, %v667, %v663
        %v669 = vmul.f32 1.0, %v668
        %v670 = vrcp.pop %v626
        %v671 = vmul.f32 %v626, %v670
        %v672 = vsub.f32 1.0, %v671
        %v673 = vmul.f32 %v670, %v672
        %v674 = vadd.f32 %v670, %v673
        %vm675 = vweird.f32 %v626
        %vm676 = vweird.f32 %v670
        %vm677 = vmor %vm675, %vm676
        %v678 = vsel %vm677, %v670, %v674
        %v679 = vand.u32 2147483647, %v626
        %vm680 = vcmp.eq.f32.partialorder %v679, 8.507059e+37
        %v681 = vand.u32 %v626, 2147483648
        %v682 = vor.u32 1.1754944e-38, %v681
        %v683 = vsel %vm680, %v682, %v678
        %v684 = vmul.f32 1.0, %v683
        %v685 = vrcp.pop %v627
        %v686 = vmul.f32 %v627, %v685
        %v687 = vsub.f32 1.0, %v686
        %v688 = vmul.f32 %v685, %v687
        %v689 = vadd.f32 %v685, %v688
        %vm690 = vweird.f32 %v627
        %vm691 = vweird.f32 %v685
        %vm692 = vmor %vm690, %vm691
        %v693 = vsel %vm692, %v685, %v689
        %v694 = vand.u32 2147483647, %v627
        %vm695 = vcmp.eq.f32.partialorder %v694, 8.507059e+37
        %v696 = vand.u32 %v627, 2147483648
        %v697 = vor.u32 1.1754944e-38, %v696
        %v698 = vsel %vm695, %v697, %v693
        %v699 = vmul.f32 1.0, %v698
        %v700 = vrcp.pop %v628
        %v701 = vmul.f32 %v628, %v700
        %v702 = vsub.f32 1.0, %v701
        %v703 = vmul.f32 %v700, %v702
        %v704 = vadd.f32 %v700, %v703
        %vm705 = vweird.f32 %v628
        %vm706 = vweird.f32 %v700
        %vm707 = vmor %vm705, %vm706
        %v708 = vsel %vm707, %v700, %v704
        %v709 = vand.u32 2147483647, %v628
        %vm710 = vcmp.eq.f32.partialorder %v709, 8.507059e+37
        %v711 = vand.u32 %v628, 2147483648
        %v712 = vor.u32 1.1754944e-38, %v711
        %v713 = vsel %vm710, %v712, %v708
        %v714 = vmul.f32 1.0, %v713
        %v715 = vrcp.pop %v629
        %v716 = vmul.f32 %v629, %v715
        %v717 = vsub.f32 1.0, %v716
        %v718 = vmul.f32 %v715, %v717
        %v719 = vadd.f32 %v715, %v718
        %vm720 = vweird.f32 %v629
        %vm721 = vweird.f32 %v715
        %vm722 = vmor %vm720, %vm721
        %v723 = vsel %vm722, %v715, %v719
        %v724 = vand.u32 2147483647, %v629
        %vm725 = vcmp.eq.f32.partialorder %v724, 8.507059e+37
        %v726 = vand.u32 %v629, 2147483648
        %v727 = vor.u32 1.1754944e-38, %v726
        %v728 = vsel %vm725, %v727, %v723
        %v729 = vmul.f32 1.0, %v728
        %v730 = vrcp.pop %v630
        %v731 = vmul.f32 %v630, %v730
        %v732 = vsub.f32 1.0, %v731
        %v733 = vmul.f32 %v730, %v732
        %v734 = vadd.f32 %v730, %v733
        %vm735 = vweird.f32 %v630
        %vm736 = vweird.f32 %v730
        %vm737 = vmor %vm735, %vm736
        %v738 = vsel %vm737, %v730, %v734
        %v739 = vand.u32 2147483647, %v630
        %vm740 = vcmp.eq.f32.partialorder %v739, 8.507059e+37
        %v741 = vand.u32 %v630, 2147483648
        %v742 = vor.u32 1.1754944e-38, %v741
        %v743 = vsel %vm740, %v742, %v738
        %v744 = vmul.f32 1.0, %v743
        %v745 = vrcp.pop %v631
        %v746 = vmul.f32 %v631, %v745
        %v747 = vsub.f32 1.0, %v746
        %v748 = vmul.f32 %v745, %v747
        %v749 = vadd.f32 %v745, %v748
        %vm750 = vweird.f32 %v631
        %vm751 = vweird.f32 %v745
        %vm752 = vmor %vm750, %vm751
        %v753 = vsel %vm752, %v745, %v749
        %v754 = vand.u32 2147483647, %v631
        %vm755 = vcmp.eq.f32.partialorder %v754, 8.507059e+37
        %v756 = vand.u32 %v631, 2147483648
        %v757 = vor.u32 1.1754944e-38, %v756
        %v758 = vsel %vm755, %v757, %v753
        %v759 = vmul.f32 1.0, %v758
        %v760 = vrcp.pop %v632
        %v761 = vmul.f32 %v632, %v760
        %v762 = vsub.f32 1.0, %v761
        %v763 = vmul.f32 %v760, %v762
        %v764 = vadd.f32 %v760, %v763
        %vm765 = vweird.f32 %v632
        %vm766 = vweird.f32 %v760
        %vm767 = vmor %vm765, %vm766
        %v768 = vsel %vm767, %v760, %v764
        %v769 = vand.u32 2147483647, %v632
        %vm770 = vcmp.eq.f32.partialorder %v769, 8.507059e+37
        %v771 = vand.u32 %v632, 2147483648
        %v772 = vor.u32 1.1754944e-38, %v771
        %v773 = vsel %vm770, %v772, %v768
        %v774 = vmul.f32 1.0, %v773
        %v775 = vrcp.pop %v633
        %v776 = vmul.f32 %v633, %v775
        %v777 = vsub.f32 1.0, %v776
        %v778 = vmul.f32 %v775, %v777
        %v779 = vadd.f32 %v775, %v778
        %vm780 = vweird.f32 %v633
        %vm781 = vweird.f32 %v775
        %vm782 = vmor %vm780, %vm781
        %v783 = vsel %vm782, %v775, %v779
        %v784 = vand.u32 2147483647, %v633
        %vm785 = vcmp.eq.f32.partialorder %v784, 8.507059e+37
        %v786 = vand.u32 %v633, 2147483648
        %v787 = vor.u32 1.1754944e-38, %v786
        %v788 = vsel %vm785, %v787, %v783
        %v789 = vmul.f32 1.0, %v788
        %v790 = vrcp.pop %v634
        %v791 = vmul.f32 %v634, %v790
        %v792 = vsub.f32 1.0, %v791
        %v793 = vmul.f32 %v790, %v792
        %v794 = vadd.f32 %v790, %v793
        %vm795 = vweird.f32 %v634
        %vm796 = vweird.f32 %v790
        %vm797 = vmor %vm795, %vm796
        %v798 = vsel %vm797, %v790, %v794
        %v799 = vand.u32 2147483647, %v634
        %vm800 = vcmp.eq.f32.partialorder %v799, 8.507059e+37
        %v801 = vand.u32 %v634, 2147483648
        %v802 = vor.u32 1.1754944e-38, %v801
        %v803 = vsel %vm800, %v802, %v798
        %v804 = vmul.f32 1.0, %v803
        %v805 = vrcp.pop %v635
        %v806 = vmul.f32 %v635, %v805
        %v807 = vsub.f32 1.0, %v806
        %v808 = vmul.f32 %v805, %v807
        %v809 = vadd.f32 %v805, %v808
        %vm810 = vweird.f32 %v635
        %vm811 = vweird.f32 %v805
        %vm812 = vmor %vm810, %vm811
        %v813 = vsel %vm812, %v805, %v809
        %v814 = vand.u32 2147483647, %v635
        %vm815 = vcmp.eq.f32.partialorder %v814, 8.507059e+37
        %v816 = vand.u32 %v635, 2147483648
        %v817 = vor.u32 1.1754944e-38, %v816
        %v818 = vsel %vm815, %v817, %v813
        %v819 = vmul.f32 1.0, %v818
        %v820 = vrcp.pop %v636
        %v821 = vmul.f32 %v636, %v820
        %v822 = vsub.f32 1.0, %v821
        %v823 = vmul.f32 %v820, %v822
        %v824 = vadd.f32 %v820, %v823
        %vm825 = vweird.f32 %v636
        %vm826 = vweird.f32 %v820
        %vm827 = vmor %vm825, %vm826
        %v828 = vsel %vm827, %v820, %v824
        %v829 = vand.u32 2147483647, %v636
        %vm830 = vcmp.eq.f32.partialorder %v829, 8.507059e+37
        %v831 = vand.u32 %v636, 2147483648
        %v832 = vor.u32 1.1754944e-38, %v831
        %v833 = vsel %vm830, %v832, %v828
        %v834 = vmul.f32 1.0, %v833
        %v835 = vrcp.pop %v637
        %v836 = vmul.f32 %v637, %v835
        %v837 = vsub.f32 1.0, %v836
        %v838 = vmul.f32 %v835, %v837
        %v839 = vadd.f32 %v835, %v838
        %vm840 = vweird.f32 %v637
        %vm841 = vweird.f32 %v835
        %vm842 = vmor %vm840, %vm841
        %v843 = vsel %vm842, %v835, %v839
        %v844 = vand.u32 2147483647, %v637
        %vm845 = vcmp.eq.f32.partialorder %v844, 8.507059e+37
        %v846 = vand.u32 %v637, 2147483648
        %v847 = vor.u32 1.1754944e-38, %v846
        %v848 = vsel %vm845, %v847, %v843
        %v849 = vmul.f32 1.0, %v848
        %v850 = vrcp.pop %v638
        %v851 = vmul.f32 %v638, %v850
        %v852 = vsub.f32 1.0, %v851
        %v853 = vmul.f32 %v850, %v852
        %v854 = vadd.f32 %v850, %v853
        %vm855 = vweird.f32 %v638
        %vm856 = vweird.f32 %v850
        %vm857 = vmor %vm855, %vm856
        %v858 = vsel %vm857, %v850, %v854
        %v859 = vand.u32 2147483647, %v638
        %vm860 = vcmp.eq.f32.partialorder %v859, 8.507059e+37
        %v861 = vand.u32 %v638, 2147483648
        %v862 = vor.u32 1.1754944e-38, %v861
        %v863 = vsel %vm860, %v862, %v858
        %v864 = vmul.f32 1.0, %v863
        %v865 = vrcp.pop %v639
        %v866 = vmul.f32 %v639, %v865
        %v867 = vsub.f32 1.0, %v866
        %v868 = vmul.f32 %v865, %v867
        %v869 = vadd.f32 %v865, %v868
        %vm870 = vweird.f32 %v639
        %vm871 = vweird.f32 %v865
        %vm872 = vmor %vm870, %vm871
        %v873 = vsel %vm872, %v865, %v869
        %v874 = vand.u32 2147483647, %v639
        %vm875 = vcmp.eq.f32.partialorder %v874, 8.507059e+37
        %v876 = vand.u32 %v639, 2147483648
        %v877 = vor.u32 1.1754944e-38, %v876
        %v878 = vsel %vm875, %v877, %v873
        %v879 = vmul.f32 1.0, %v878
        %v880 = vmul.f32 %v560, %v654
        %v881 = vmul.f32 %v561, %v669
        %v882 = vmul.f32 %v562, %v684
        %v883 = vmul.f32 %v563, %v699
        %v884 = vmul.f32 %v564, %v714
        %v885 = vmul.f32 %v565, %v729
        %v886 = vmul.f32 %v566, %v744
        %v887 = vmul.f32 %v567, %v759
        %v888 = vmul.f32 %v568, %v774
        %v889 = vmul.f32 %v569, %v789
        %v890 = vmul.f32 %v570, %v804
        %v891 = vmul.f32 %v571, %v819
        %v892 = vmul.f32 %v572, %v834
        %v893 = vmul.f32 %v573, %v849
        %v894 = vmul.f32 %v574, %v864
        %v895 = vmul.f32 %v575, %v879
        %s896 = sadd.s32 %s520, 16
        %s897 = scalar_lea.vmem [#allocation2], %s896
        %898 = vst.msk [vmem:[%s897] sm:$0xff] %vm351, %v880
        %899 = vst.msk [vmem:[%s897 + $0x8] sm:$0xff] %vm351, %v881
        %900 = vst.msk [vmem:[%s897 + $0x10] sm:$0xff] %vm351, %v882
        %901 = vst.msk [vmem:[%s897 + $0x18] sm:$0xff] %vm351, %v883
        %902 = vst.msk [vmem:[%s897 + $0x20] sm:$0xff] %vm351, %v884
        %903 = vst.msk [vmem:[%s897 + $0x28] sm:$0xff] %vm351, %v885
        %904 = vst.msk [vmem:[%s897 + $0x30] sm:$0xff] %vm351, %v886
        %905 = vst.msk [vmem:[%s897 + $0x38] sm:$0xff] %vm351, %v887
        %906 = vst.msk [vmem:[%s897 + $0x40] sm:$0xff] %vm351, %v888
        %907 = vst.msk [vmem:[%s897 + $0x48] sm:$0xff] %vm351, %v889
        %908 = vst.msk [vmem:[%s897 + $0x50] sm:$0xff] %vm351, %v890
        %909 = vst.msk [vmem:[%s897 + $0x58] sm:$0xff] %vm351, %v891
        %910 = vst.msk [vmem:[%s897 + $0x60] sm:$0xff] %vm351, %v892
        %911 = vst.msk [vmem:[%s897 + $0x68] sm:$0xff] %vm351, %v893
        %912 = vst.msk [vmem:[%s897 + $0x70] sm:$0xff] %vm351, %v894
        %913 = vst.msk [vmem:[%s897 + $0x78] sm:$0xff] %vm351, %v895
      $region67: #{tpu_custom_call.1} parent=47 // loop_footer
        %s519 = sadd.s32 1, %s515
      $region68: #{tpu_custom_call.1} parent=47 // loop_footer_branch
        %514 = sbr.rel target = $region64
      $region69: #{tpu_custom_call.1} parent=47 // loop_exit
        _
      %v914 = vld [vmem:[%s6] sm:$0x1]
      %v915 = vlaneseq
      %v916 = vshrl.u32 %v915, 7
      %v917 = vadd.s32 %v916, 8
      %v918 = vadd.s32 %v916, 16
      %v919 = vadd.s32 %v916, 24
      %v920 = vadd.s32 %v916, 32
      %v921 = vadd.s32 %v916, 40
      %v922 = vadd.s32 %v916, 48
      %v923 = vadd.s32 %v916, 56
      %v924 = vadd.s32 %v916, 64
      %v925 = vadd.s32 %v916, 72
      %v926 = vadd.s32 %v916, 80
      %v927 = vadd.s32 %v916, 88
      %v928 = vadd.s32 %v916, 96
      %v929 = vadd.s32 %v916, 104
      %v930 = vadd.s32 %v916, 112
      %v931 = vadd.s32 %v916, 120
      %vm932 = vcmp.lt.s32.totalorder %v916, 0
      %v933 = vsub.s32 0, %v916
      %v934 = vsel %vm932, %v933, %v916
      %v935 = vshrl.u32 %v934, 4
      %v936 = vand.u32 %v934, 15
      %v937 = vsub.s32 0, %v936
      %v938 = vsel %vm932, %v937, %v936
      %vm939 = vcmp.lt.s32.totalorder %v917, 0
      %v940 = vsub.s32 0, %v917
      %v941 = vsel %vm939, %v940, %v917
      %v942 = vshrl.u32 %v941, 4
      %v943 = vand.u32 %v941, 15
      %v944 = vsub.s32 0, %v943
      %v945 = vsel %vm939, %v944, %v943
      %vm946 = vcmp.lt.s32.totalorder %v918, 0
      %v947 = vsub.s32 0, %v918
      %v948 = vsel %vm946, %v947, %v918
      %v949 = vshrl.u32 %v948, 4
      %v950 = vand.u32 %v948, 15
      %v951 = vsub.s32 0, %v950
      %v952 = vsel %vm946, %v951, %v950
      %vm953 = vcmp.lt.s32.totalorder %v919, 0
      %v954 = vsub.s32 0, %v919
      %v955 = vsel %vm953, %v954, %v919
      %v956 = vshrl.u32 %v955, 4
      %v957 = vand.u32 %v955, 15
      %v958 = vsub.s32 0, %v957
      %v959 = vsel %vm953, %v958, %v957
      %vm960 = vcmp.lt.s32.totalorder %v920, 0
      %v961 = vsub.s32 0, %v920
      %v962 = vsel %vm960, %v961, %v920
      %v963 = vshrl.u32 %v962, 4
      %v964 = vand.u32 %v962, 15
      %v965 = vsub.s32 0, %v964
      %v966 = vsel %vm960, %v965, %v964
      %vm967 = vcmp.lt.s32.totalorder %v921, 0
      %v968 = vsub.s32 0, %v921
      %v969 = vsel %vm967, %v968, %v921
      %v970 = vshrl.u32 %v969, 4
      %v971 = vand.u32 %v969, 15
      %v972 = vsub.s32 0, %v971
      %v973 = vsel %vm967, %v972, %v971
      %vm974 = vcmp.lt.s32.totalorder %v922, 0
      %v975 = vsub.s32 0, %v922
      %v976 = vsel %vm974, %v975, %v922
      %v977 = vshrl.u32 %v976, 4
      %v978 = vand.u32 %v976, 15
      %v979 = vsub.s32 0, %v978
      %v980 = vsel %vm974, %v979, %v978
      %vm981 = vcmp.lt.s32.totalorder %v923, 0
      %v982 = vsub.s32 0, %v923
      %v983 = vsel %vm981, %v982, %v923
      %v984 = vshrl.u32 %v983, 4
      %v985 = vand.u32 %v983, 15
      %v986 = vsub.s32 0, %v985
      %v987 = vsel %vm981, %v986, %v985
      %vm988 = vcmp.lt.s32.totalorder %v924, 0
      %v989 = vsub.s32 0, %v924
      %v990 = vsel %vm988, %v989, %v924
      %v991 = vshrl.u32 %v990, 4
      %v992 = vand.u32 %v990, 15
      %v993 = vsub.s32 0, %v992
      %v994 = vsel %vm988, %v993, %v992
      %vm995 = vcmp.lt.s32.totalorder %v925, 0
      %v996 = vsub.s32 0, %v925
      %v997 = vsel %vm995, %v996, %v925
      %v998 = vshrl.u32 %v997, 4
      %v999 = vand.u32 %v997, 15
      %v1000 = vsub.s32 0, %v999
      %v1001 = vsel %vm995, %v1000, %v999
      %vm1002 = vcmp.lt.s32.totalorder %v926, 0
      %v1003 = vsub.s32 0, %v926
      %v1004 = vsel %vm1002, %v1003, %v926
      %v1005 = vshrl.u32 %v1004, 4
      %v1006 = vand.u32 %v1004, 15
      %v1007 = vsub.s32 0, %v1006
      %v1008 = vsel %vm1002, %v1007, %v1006
      %vm1009 = vcmp.lt.s32.totalorder %v927, 0
      %v1010 = vsub.s32 0, %v927
      %v1011 = vsel %vm1009, %v1010, %v927
      %v1012 = vshrl.u32 %v1011, 4
      %v1013 = vand.u32 %v1011, 15
      %v1014 = vsub.s32 0, %v1013
      %v1015 = vsel %vm1009, %v1014, %v1013
      %vm1016 = vcmp.lt.s32.totalorder %v928, 0
      %v1017 = vsub.s32 0, %v928
      %v1018 = vsel %vm1016, %v1017, %v928
      %v1019 = vshrl.u32 %v1018, 4
      %v1020 = vand.u32 %v1018, 15
      %v1021 = vsub.s32 0, %v1020
      %v1022 = vsel %vm1016, %v1021, %v1020
      %vm1023 = vcmp.lt.s32.totalorder %v929, 0
      %v1024 = vsub.s32 0, %v929
      %v1025 = vsel %vm1023, %v1024, %v929
      %v1026 = vshrl.u32 %v1025, 4
      %v1027 = vand.u32 %v1025, 15
      %v1028 = vsub.s32 0, %v1027
      %v1029 = vsel %vm1023, %v1028, %v1027
      %vm1030 = vcmp.lt.s32.totalorder %v930, 0
      %v1031 = vsub.s32 0, %v930
      %v1032 = vsel %vm1030, %v1031, %v930
      %v1033 = vshrl.u32 %v1032, 4
      %v1034 = vand.u32 %v1032, 15
      %v1035 = vsub.s32 0, %v1034
      %v1036 = vsel %vm1030, %v1035, %v1034
      %vm1037 = vcmp.lt.s32.totalorder %v931, 0
      %v1038 = vsub.s32 0, %v931
      %v1039 = vsel %vm1037, %v1038, %v931
      %v1040 = vshrl.u32 %v1039, 4
      %v1041 = vand.u32 %v1039, 15
      %v1042 = vsub.s32 0, %v1041
      %v1043 = vsel %vm1037, %v1042, %v1041
      %vm1044 = vcmp.ne.s32.totalorder %v938, 0
      %vm1045 = vcmp.ne.s32.totalorder %v945, 0
      %vm1046 = vcmp.ne.s32.totalorder %v952, 0
      %vm1047 = vcmp.ne.s32.totalorder %v959, 0
      %vm1048 = vcmp.ne.s32.totalorder %v966, 0
      %vm1049 = vcmp.ne.s32.totalorder %v973, 0
      %vm1050 = vcmp.ne.s32.totalorder %v980, 0
      %vm1051 = vcmp.ne.s32.totalorder %v987, 0
      %vm1052 = vcmp.ne.s32.totalorder %v994, 0
      %vm1053 = vcmp.ne.s32.totalorder %v1001, 0
      %vm1054 = vcmp.ne.s32.totalorder %v1008, 0
      %vm1055 = vcmp.ne.s32.totalorder %v1015, 0
      %vm1056 = vcmp.ne.s32.totalorder %v1022, 0
      %vm1057 = vcmp.ne.s32.totalorder %v1029, 0
      %vm1058 = vcmp.ne.s32.totalorder %v1036, 0
      %vm1059 = vcmp.ne.s32.totalorder %v1043, 0
      %vm1060 = vcmp.lt.s32.totalorder %v938, 0
      %vm1061 = vcmp.lt.s32.totalorder %v945, 0
      %vm1062 = vcmp.lt.s32.totalorder %v952, 0
      %vm1063 = vcmp.lt.s32.totalorder %v959, 0
      %vm1064 = vcmp.lt.s32.totalorder %v966, 0
      %vm1065 = vcmp.lt.s32.totalorder %v973, 0
      %vm1066 = vcmp.lt.s32.totalorder %v980, 0
      %vm1067 = vcmp.lt.s32.totalorder %v987, 0
      %vm1068 = vcmp.lt.s32.totalorder %v994, 0
      %vm1069 = vcmp.lt.s32.totalorder %v1001, 0
      %vm1070 = vcmp.lt.s32.totalorder %v1008, 0
      %vm1071 = vcmp.lt.s32.totalorder %v1015, 0
      %vm1072 = vcmp.lt.s32.totalorder %v1022, 0
      %vm1073 = vcmp.lt.s32.totalorder %v1029, 0
      %vm1074 = vcmp.lt.s32.totalorder %v1036, 0
      %vm1075 = vcmp.lt.s32.totalorder %v1043, 0
      %vm1076 = vmand %vm1060, %vm1044
      %vm1077 = vmand %vm1061, %vm1045
      %vm1078 = vmand %vm1062, %vm1046
      %vm1079 = vmand %vm1063, %vm1047
      %vm1080 = vmand %vm1064, %vm1048
      %vm1081 = vmand %vm1065, %vm1049
      %vm1082 = vmand %vm1066, %vm1050
      %vm1083 = vmand %vm1067, %vm1051
      %vm1084 = vmand %vm1068, %vm1052
      %vm1085 = vmand %vm1069, %vm1053
      %vm1086 = vmand %vm1070, %vm1054
      %vm1087 = vmand %vm1071, %vm1055
      %vm1088 = vmand %vm1072, %vm1056
      %vm1089 = vmand %vm1073, %vm1057
      %vm1090 = vmand %vm1074, %vm1058
      %vm1091 = vmand %vm1075, %vm1059
      %v1092 = vadd.s32 %v938, 16
      %v1093 = vadd.s32 %v945, 16
      %v1094 = vadd.s32 %v952, 16
      %v1095 = vadd.s32 %v959, 16
      %v1096 = vadd.s32 %v966, 16
      %v1097 = vadd.s32 %v973, 16
      %v1098 = vadd.s32 %v980, 16
      %v1099 = vadd.s32 %v987, 16
      %v1100 = vadd.s32 %v994, 16
      %v1101 = vadd.s32 %v1001, 16
      %v1102 = vadd.s32 %v1008, 16
      %v1103 = vadd.s32 %v1015, 16
      %v1104 = vadd.s32 %v1022, 16
      %v1105 = vadd.s32 %v1029, 16
      %v1106 = vadd.s32 %v1036, 16
      %v1107 = vadd.s32 %v1043, 16
      %v1108 = vsel %vm1076, %v1092, %v938
      %v1109 = vsel %vm1077, %v1093, %v945
      %v1110 = vsel %vm1078, %v1094, %v952
      %v1111 = vsel %vm1079, %v1095, %v959
      %v1112 = vsel %vm1080, %v1096, %v966
      %v1113 = vsel %vm1081, %v1097, %v973
      %v1114 = vsel %vm1082, %v1098, %v980
      %v1115 = vsel %vm1083, %v1099, %v987
      %v1116 = vsel %vm1084, %v1100, %v994
      %v1117 = vsel %vm1085, %v1101, %v1001
      %v1118 = vsel %vm1086, %v1102, %v1008
      %v1119 = vsel %vm1087, %v1103, %v1015
      %v1120 = vsel %vm1088, %v1104, %v1022
      %v1121 = vsel %vm1089, %v1105, %v1029
      %v1122 = vsel %vm1090, %v1106, %v1036
      %v1123 = vsel %vm1091, %v1107, %v1043
      %vm1124 = vcmp.gt.s32.totalorder %v1108, 0
      %vm1125 = vcmp.gt.s32.totalorder %v1109, 0
      %vm1126 = vcmp.gt.s32.totalorder %v1110, 0
      %vm1127 = vcmp.gt.s32.totalorder %v1111, 0
      %vm1128 = vcmp.gt.s32.totalorder %v1112, 0
      %vm1129 = vcmp.gt.s32.totalorder %v1113, 0
      %vm1130 = vcmp.gt.s32.totalorder %v1114, 0
      %vm1131 = vcmp.gt.s32.totalorder %v1115, 0
      %vm1132 = vcmp.gt.s32.totalorder %v1116, 0
      %vm1133 = vcmp.gt.s32.totalorder %v1117, 0
      %vm1134 = vcmp.gt.s32.totalorder %v1118, 0
      %vm1135 = vcmp.gt.s32.totalorder %v1119, 0
      %vm1136 = vcmp.gt.s32.totalorder %v1120, 0
      %vm1137 = vcmp.gt.s32.totalorder %v1121, 0
      %vm1138 = vcmp.gt.s32.totalorder %v1122, 0
      %vm1139 = vcmp.gt.s32.totalorder %v1123, 0
      %vm1140 = vcmp.lt.s32.totalorder %v1108, 15
      %vm1141 = vcmp.lt.s32.totalorder %v1109, 15
      %vm1142 = vcmp.lt.s32.totalorder %v1110, 15
      %vm1143 = vcmp.lt.s32.totalorder %v1111, 15
      %vm1144 = vcmp.lt.s32.totalorder %v1112, 15
      %vm1145 = vcmp.lt.s32.totalorder %v1113, 15
      %vm1146 = vcmp.lt.s32.totalorder %v1114, 15
      %vm1147 = vcmp.lt.s32.totalorder %v1115, 15
      %vm1148 = vcmp.lt.s32.totalorder %v1116, 15
      %vm1149 = vcmp.lt.s32.totalorder %v1117, 15
      %vm1150 = vcmp.lt.s32.totalorder %v1118, 15
      %vm1151 = vcmp.lt.s32.totalorder %v1119, 15
      %vm1152 = vcmp.lt.s32.totalorder %v1120, 15
      %vm1153 = vcmp.lt.s32.totalorder %v1121, 15
      %vm1154 = vcmp.lt.s32.totalorder %v1122, 15
      %vm1155 = vcmp.lt.s32.totalorder %v1123, 15
      loop: start=0, step=1, limit=2
      $region70: #{tpu_custom_call.1} parent=47 // loop_pre_header
        _
      $region71: #{tpu_custom_call.1} parent=47 // loop_header
        %s1157 = sphi 0, %s1161
        %p1158 = scmp.ge.s32.totalorder %s1157, 2
      $region72: #{tpu_custom_call.1} parent=47 // loop_header_branch
        %1160 = sbr.rel (%p1158) target = $region76
      $region73: #{tpu_custom_call.1} parent=47 // loop_body
        %s1162 = smul.u32 %s1157, 128
        %v1164 = vperm.slane %v914, 0
        %s1166 = scalar_lea.vmem [#allocation2], %s1162
        %v1167 = vld [vmem:[%s1166] sm:$0xff]
        %v1168 = vld [vmem:[%s1166 + $0x8] sm:$0xff]
        %v1169 = vld [vmem:[%s1166 + $0x10] sm:$0xff]
        %v1170 = vld [vmem:[%s1166 + $0x18] sm:$0xff]
        %v1171 = vld [vmem:[%s1166 + $0x20] sm:$0xff]
        %v1172 = vld [vmem:[%s1166 + $0x28] sm:$0xff]
        %v1173 = vld [vmem:[%s1166 + $0x30] sm:$0xff]
        %v1174 = vld [vmem:[%s1166 + $0x38] sm:$0xff]
        %v1175 = vld [vmem:[%s1166 + $0x40] sm:$0xff]
        %v1176 = vld [vmem:[%s1166 + $0x48] sm:$0xff]
        %v1177 = vld [vmem:[%s1166 + $0x50] sm:$0xff]
        %v1178 = vld [vmem:[%s1166 + $0x58] sm:$0xff]
        %v1179 = vld [vmem:[%s1166 + $0x60] sm:$0xff]
        %v1180 = vld [vmem:[%s1166 + $0x68] sm:$0xff]
        %v1181 = vld [vmem:[%s1166 + $0x70] sm:$0xff]
        %v1182 = vld [vmem:[%s1166 + $0x78] sm:$0xff]
        %v1183 = vld [vmem:[%s4] sm:$0xff]
        %v1184 = vld [vmem:[%s4 + $0x8] sm:$0xff]
        %v1185 = vld [vmem:[%s4 + $0x10] sm:$0xff]
        %v1186 = vld [vmem:[%s4 + $0x18] sm:$0xff]
        %v1187 = vld [vmem:[%s4 + $0x20] sm:$0xff]
        %v1188 = vld [vmem:[%s4 + $0x28] sm:$0xff]
        %v1189 = vld [vmem:[%s4 + $0x30] sm:$0xff]
        %v1190 = vld [vmem:[%s4 + $0x38] sm:$0xff]
        %v1192 = vsel %vm351, %v1167, 0
        %v1195 = vsel %vm351, %v1168, 0
        %v1198 = vsel %vm351, %v1169, 0
        %v1201 = vsel %vm351, %v1170, 0
        %v1204 = vsel %vm351, %v1171, 0
        %v1207 = vsel %vm351, %v1172, 0
        %v1210 = vsel %vm351, %v1173, 0
        %v1213 = vsel %vm351, %v1174, 0
        %v1216 = vsel %vm351, %v1175, 0
        %v1219 = vsel %vm351, %v1176, 0
        %v1222 = vsel %vm351, %v1177, 0
        %v1225 = vsel %vm351, %v1178, 0
        %v1228 = vsel %vm351, %v1179, 0
        %v1231 = vsel %vm351, %v1180, 0
        %v1234 = vsel %vm351, %v1181, 0
        %v1237 = vsel %vm351, %v1182, 0
        %1239 = vmatpush.msra.mxu0 0.0
        %1240 = vmatpush.msra.mxu0 0.0
        %1241 = vmatpush.msra.mxu0 0.0
        %1242 = vmatpush.msra.mxu0 0.0
        %1243 = vmatpush.msra.mxu0 0.0
        %1244 = vmatpush.msra.mxu0 0.0
        %1245 = vmatpush.msra.mxu0 0.0
        %1246 = vmatpush.msra.mxu0 0.0
        %1247 = vmatpush.msra.mxu0 %v1190
        %1248 = vmatpush.msra.mxu0 %v1189
        %1249 = vmatpush.msra.mxu0 %v1188
        %1250 = vmatpush.msra.mxu0 %v1187
        %1251 = vmatpush.msra.mxu0 %v1186
        %1252 = vmatpush.msra.mxu0 %v1185
        %1253 = vmatpush.msra.mxu0 %v1184
        %1254 = vmatpush.msra.mxu0 %v1183
        %1255 = vmatmul.f32.gmra.mxu0 %v1192
        %v1256 = vpop.f32.mrf.mxu0
        %v1257 = vadd.f32 0.0, %v1256
        %1258 = vmatmul.f32.gmra.mxu0 %v1195
        %v1259 = vpop.f32.mrf.mxu0
        %v1260 = vadd.f32 0.0, %v1259
        %1261 = vmatmul.f32.gmra.mxu0 %v1198
        %v1262 = vpop.f32.mrf.mxu0
        %v1263 = vadd.f32 0.0, %v1262
        %1264 = vmatmul.f32.gmra.mxu0 %v1201
        %v1265 = vpop.f32.mrf.mxu0
        %v1266 = vadd.f32 0.0, %v1265
        %1267 = vmatmul.f32.gmra.mxu0 %v1204
        %v1268 = vpop.f32.mrf.mxu0
        %v1269 = vadd.f32 0.0, %v1268
        %1270 = vmatmul.f32.gmra.mxu0 %v1207
        %v1271 = vpop.f32.mrf.mxu0
        %v1272 = vadd.f32 0.0, %v1271
        %1273 = vmatmul.f32.gmra.mxu0 %v1210
        %v1274 = vpop.f32.mrf.mxu0
        %v1275 = vadd.f32 0.0, %v1274
        %1276 = vmatmul.f32.gmra.mxu0 %v1213
        %v1277 = vpop.f32.mrf.mxu0
        %v1278 = vadd.f32 0.0, %v1277
        %1279 = vmatmul.f32.gmra.mxu0 %v1216
        %v1280 = vpop.f32.mrf.mxu0
        %v1281 = vadd.f32 0.0, %v1280
        %1282 = vmatmul.f32.gmra.mxu0 %v1219
        %v1283 = vpop.f32.mrf.mxu0
        %v1284 = vadd.f32 0.0, %v1283
        %1285 = vmatmul.f32.gmra.mxu0 %v1222
        %v1286 = vpop.f32.mrf.mxu0
        %v1287 = vadd.f32 0.0, %v1286
        %1288 = vmatmul.f32.gmra.mxu0 %v1225
        %v1289 = vpop.f32.mrf.mxu0
        %v1290 = vadd.f32 0.0, %v1289
        %1291 = vmatmul.f32.gmra.mxu0 %v1228
        %v1292 = vpop.f32.mrf.mxu0
        %v1293 = vadd.f32 0.0, %v1292
        %1294 = vmatmul.f32.gmra.mxu0 %v1231
        %v1295 = vpop.f32.mrf.mxu0
        %v1296 = vadd.f32 0.0, %v1295
        %1297 = vmatmul.f32.gmra.mxu0 %v1234
        %v1298 = vpop.f32.mrf.mxu0
        %v1299 = vadd.f32 0.0, %v1298
        %1300 = vmatmul.f32.gmra.mxu0 %v1237
        %v1301 = vpop.f32.mrf.mxu0
        %v1302 = vadd.f32 0.0, %v1301
        %1303 = vdwg.mxu0
        %v1304 = vadd.f32 %v1164, %v1257
        %v1305 = vadd.f32 %v1164, %v1260
        %v1306 = vadd.f32 %v1164, %v1263
        %v1307 = vadd.f32 %v1164, %v1266
        %v1308 = vadd.f32 %v1164, %v1269
        %v1309 = vadd.f32 %v1164, %v1272
        %v1310 = vadd.f32 %v1164, %v1275
        %v1311 = vadd.f32 %v1164, %v1278
        %v1312 = vadd.f32 %v1164, %v1281
        %v1313 = vadd.f32 %v1164, %v1284
        %v1314 = vadd.f32 %v1164, %v1287
        %v1315 = vadd.f32 %v1164, %v1290
        %v1316 = vadd.f32 %v1164, %v1293
        %v1317 = vadd.f32 %v1164, %v1296
        %v1318 = vadd.f32 %v1164, %v1299
        %v1319 = vadd.f32 %v1164, %v1302
        %v1320 = vld [vmem:[%s5] sm:$0xff]
        %v1321 = vld [vmem:[%s5 + $0x8] sm:$0xff]
        %v1322 = vld [vmem:[%s5 + $0x10] sm:$0xff]
        %v1323 = vld [vmem:[%s5 + $0x18] sm:$0xff]
        %v1324 = vld [vmem:[%s5 + $0x20] sm:$0xff]
        %v1325 = vld [vmem:[%s5 + $0x28] sm:$0xff]
        %v1326 = vld [vmem:[%s5 + $0x30] sm:$0xff]
        %v1327 = vld [vmem:[%s5 + $0x38] sm:$0xff]
        %v1328 = vld [vmem:[%s5 + $0x40] sm:$0xff]
        %v1329 = vld [vmem:[%s5 + $0x48] sm:$0xff]
        %v1330 = vld [vmem:[%s5 + $0x50] sm:$0xff]
        %v1331 = vld [vmem:[%s5 + $0x58] sm:$0xff]
        %v1332 = vld [vmem:[%s5 + $0x60] sm:$0xff]
        %v1333 = vld [vmem:[%s5 + $0x68] sm:$0xff]
        %v1334 = vld [vmem:[%s5 + $0x70] sm:$0xff]
        %v1335 = vld [vmem:[%s5 + $0x78] sm:$0xff]
        %1336 = vmatpush.msra.mxu0 0.0
        %1337 = vmatpush.msra.mxu0 0.0
        %1338 = vmatpush.msra.mxu0 0.0
        %1339 = vmatpush.msra.mxu0 0.0
        %1340 = vmatpush.msra.mxu0 0.0
        %1341 = vmatpush.msra.mxu0 0.0
        %1342 = vmatpush.msra.mxu0 0.0
        %1343 = vmatpush.msra.mxu0 0.0
        %1344 = vmatpush.msra.mxu0 %v1334
        %1345 = vmatpush.msra.mxu0 %v1332
        %1346 = vmatpush.msra.mxu0 %v1330
        %1347 = vmatpush.msra.mxu0 %v1328
        %1348 = vmatpush.msra.mxu0 %v1326
        %1349 = vmatpush.msra.mxu0 %v1324
        %1350 = vmatpush.msra.mxu0 %v1322
        %1351 = vmatpush.msra.mxu0 %v1320
        %1352 = vmatmul.f32.gmra.mxu0 %v1192
        %v1353 = vpop.f32.mrf.mxu0
        %v1354 = vadd.f32 0.0, %v1353
        %1355 = vmatmul.f32.gmra.mxu0 %v1195
        %v1356 = vpop.f32.mrf.mxu0
        %v1357 = vadd.f32 0.0, %v1356
        %1358 = vmatmul.f32.gmra.mxu0 %v1198
        %v1359 = vpop.f32.mrf.mxu0
        %v1360 = vadd.f32 0.0, %v1359
        %1361 = vmatmul.f32.gmra.mxu0 %v1201
        %v1362 = vpop.f32.mrf.mxu0
        %v1363 = vadd.f32 0.0, %v1362
        %1364 = vmatmul.f32.gmra.mxu0 %v1204
        %v1365 = vpop.f32.mrf.mxu0
        %v1366 = vadd.f32 0.0, %v1365
        %1367 = vmatmul.f32.gmra.mxu0 %v1207
        %v1368 = vpop.f32.mrf.mxu0
        %v1369 = vadd.f32 0.0, %v1368
        %1370 = vmatmul.f32.gmra.mxu0 %v1210
        %v1371 = vpop.f32.mrf.mxu0
        %v1372 = vadd.f32 0.0, %v1371
        %1373 = vmatmul.f32.gmra.mxu0 %v1213
        %v1374 = vpop.f32.mrf.mxu0
        %v1375 = vadd.f32 0.0, %v1374
        %1376 = vmatmul.f32.gmra.mxu0 %v1216
        %v1377 = vpop.f32.mrf.mxu0
        %v1378 = vadd.f32 0.0, %v1377
        %1379 = vmatmul.f32.gmra.mxu0 %v1219
        %v1380 = vpop.f32.mrf.mxu0
        %v1381 = vadd.f32 0.0, %v1380
        %1382 = vmatmul.f32.gmra.mxu0 %v1222
        %v1383 = vpop.f32.mrf.mxu0
        %v1384 = vadd.f32 0.0, %v1383
        %1385 = vmatmul.f32.gmra.mxu0 %v1225
        %v1386 = vpop.f32.mrf.mxu0
        %v1387 = vadd.f32 0.0, %v1386
        %1388 = vmatmul.f32.gmra.mxu0 %v1228
        %v1389 = vpop.f32.mrf.mxu0
        %v1390 = vadd.f32 0.0, %v1389
        %1391 = vmatmul.f32.gmra.mxu0 %v1231
        %v1392 = vpop.f32.mrf.mxu0
        %v1393 = vadd.f32 0.0, %v1392
        %1394 = vmatmul.f32.gmra.mxu0 %v1234
        %v1395 = vpop.f32.mrf.mxu0
        %v1396 = vadd.f32 0.0, %v1395
        %1397 = vmatmul.f32.gmra.mxu0 %v1237
        %v1398 = vpop.f32.mrf.mxu0
        %v1399 = vadd.f32 0.0, %v1398
        %1400 = vdwg.mxu0
        %1401 = vmatpush.msra.mxu0 0.0
        %1402 = vmatpush.msra.mxu0 0.0
        %1403 = vmatpush.msra.mxu0 0.0
        %1404 = vmatpush.msra.mxu0 0.0
        %1405 = vmatpush.msra.mxu0 0.0
        %1406 = vmatpush.msra.mxu0 0.0
        %1407 = vmatpush.msra.mxu0 0.0
        %1408 = vmatpush.msra.mxu0 0.0
        %1409 = vmatpush.msra.mxu0 %v1335
        %1410 = vmatpush.msra.mxu0 %v1333
        %1411 = vmatpush.msra.mxu0 %v1331
        %1412 = vmatpush.msra.mxu0 %v1329
        %1413 = vmatpush.msra.mxu0 %v1327
        %1414 = vmatpush.msra.mxu0 %v1325
        %1415 = vmatpush.msra.mxu0 %v1323
        %1416 = vmatpush.msra.mxu0 %v1321
        %1417 = vmatmul.f32.gmra.mxu0 %v1192
        %v1418 = vpop.f32.mrf.mxu0
        %v1419 = vadd.f32 0.0, %v1418
        %1420 = vmatmul.f32.gmra.mxu0 %v1195
        %v1421 = vpop.f32.mrf.mxu0
        %v1422 = vadd.f32 0.0, %v1421
        %1423 = vmatmul.f32.gmra.mxu0 %v1198
        %v1424 = vpop.f32.mrf.mxu0
        %v1425 = vadd.f32 0.0, %v1424
        %1426 = vmatmul.f32.gmra.mxu0 %v1201
        %v1427 = vpop.f32.mrf.mxu0
        %v1428 = vadd.f32 0.0, %v1427
        %1429 = vmatmul.f32.gmra.mxu0 %v1204
        %v1430 = vpop.f32.mrf.mxu0
        %v1431 = vadd.f32 0.0, %v1430
        %1432 = vmatmul.f32.gmra.mxu0 %v1207
        %v1433 = vpop.f32.mrf.mxu0
        %v1434 = vadd.f32 0.0, %v1433
        %1435 = vmatmul.f32.gmra.mxu0 %v1210
        %v1436 = vpop.f32.mrf.mxu0
        %v1437 = vadd.f32 0.0, %v1436
        %1438 = vmatmul.f32.gmra.mxu0 %v1213
        %v1439 = vpop.f32.mrf.mxu0
        %v1440 = vadd.f32 0.0, %v1439
        %1441 = vmatmul.f32.gmra.mxu0 %v1216
        %v1442 = vpop.f32.mrf.mxu0
        %v1443 = vadd.f32 0.0, %v1442
        %1444 = vmatmul.f32.gmra.mxu0 %v1219
        %v1445 = vpop.f32.mrf.mxu0
        %v1446 = vadd.f32 0.0, %v1445
        %1447 = vmatmul.f32.gmra.mxu0 %v1222
        %v1448 = vpop.f32.mrf.mxu0
        %v1449 = vadd.f32 0.0, %v1448
        %1450 = vmatmul.f32.gmra.mxu0 %v1225
        %v1451 = vpop.f32.mrf.mxu0
        %v1452 = vadd.f32 0.0, %v1451
        %1453 = vmatmul.f32.gmra.mxu0 %v1228
        %v1454 = vpop.f32.mrf.mxu0
        %v1455 = vadd.f32 0.0, %v1454
        %1456 = vmatmul.f32.gmra.mxu0 %v1231
        %v1457 = vpop.f32.mrf.mxu0
        %v1458 = vadd.f32 0.0, %v1457
        %1459 = vmatmul.f32.gmra.mxu0 %v1234
        %v1460 = vpop.f32.mrf.mxu0
        %v1461 = vadd.f32 0.0, %v1460
        %1462 = vmatmul.f32.gmra.mxu0 %v1237
        %v1463 = vpop.f32.mrf.mxu0
        %v1464 = vadd.f32 0.0, %v1463
        %1465 = vdwg.mxu0
        %v1466 = vrot.slane %v1354, 7
        %v1467 = vrot.slane %v1357, 7
        %v1468 = vrot.slane %v1360, 7
        %v1469 = vrot.slane %v1363, 7
        %v1470 = vrot.slane %v1366, 7
        %v1471 = vrot.slane %v1369, 7
        %v1472 = vrot.slane %v1372, 7
        %v1473 = vrot.slane %v1375, 7
        %v1474 = vrot.slane %v1378, 7
        %v1475 = vrot.slane %v1381, 7
        %v1476 = vrot.slane %v1384, 7
        %v1477 = vrot.slane %v1387, 7
        %v1478 = vrot.slane %v1390, 7
        %v1479 = vrot.slane %v1393, 7
        %v1480 = vrot.slane %v1396, 7
        %v1481 = vrot.slane %v1399, 7
        %vm1482 = vcmp.lt.s32.totalorder %v916, 1
        %v1483 = vsel %vm1482, %v1480, %v1481
        %v1484 = vsel %vm1482, %v1479, %v1480
        %v1485 = vsel %vm1482, %v1478, %v1479
        %v1486 = vsel %vm1482, %v1477, %v1478
        %v1487 = vsel %vm1482, %v1476, %v1477
        %v1488 = vsel %vm1482, %v1475, %v1476
        %v1489 = vsel %vm1482, %v1474, %v1475
        %v1490 = vsel %vm1482, %v1473, %v1474
        %v1491 = vsel %vm1482, %v1472, %v1473
        %v1492 = vsel %vm1482, %v1471, %v1472
        %v1493 = vsel %vm1482, %v1470, %v1471
        %v1494 = vsel %vm1482, %v1469, %v1470
        %v1495 = vsel %vm1482, %v1468, %v1469
        %v1496 = vsel %vm1482, %v1467, %v1468
        %v1497 = vsel %vm1482, %v1466, %v1467
        %v1498 = vsel %vm1482, %v1481, %v1466
        %v1499 = vsel %vm1124, 1, 0
        %v1500 = vsel %vm1125, 1, 0
        %v1501 = vsel %vm1126, 1, 0
        %v1502 = vsel %vm1127, 1, 0
        %v1503 = vsel %vm1128, 1, 0
        %v1504 = vsel %vm1129, 1, 0
        %v1505 = vsel %vm1130, 1, 0
        %v1506 = vsel %vm1131, 1, 0
        %v1507 = vsel %vm1132, 1, 0
        %v1508 = vsel %vm1133, 1, 0
        %v1509 = vsel %vm1134, 1, 0
        %v1510 = vsel %vm1135, 1, 0
        %v1511 = vsel %vm1136, 1, 0
        %v1512 = vsel %vm1137, 1, 0
        %v1513 = vsel %vm1138, 1, 0
        %v1514 = vsel %vm1139, 1, 0
        %vm1515 = vcmp.eq.s32.totalorder %v1499, 1
        %vm1516 = vcmp.eq.s32.totalorder %v1500, 1
        %vm1517 = vcmp.eq.s32.totalorder %v1501, 1
        %vm1518 = vcmp.eq.s32.totalorder %v1502, 1
        %vm1519 = vcmp.eq.s32.totalorder %v1503, 1
        %vm1520 = vcmp.eq.s32.totalorder %v1504, 1
        %vm1521 = vcmp.eq.s32.totalorder %v1505, 1
        %vm1522 = vcmp.eq.s32.totalorder %v1506, 1
        %vm1523 = vcmp.eq.s32.totalorder %v1507, 1
        %vm1524 = vcmp.eq.s32.totalorder %v1508, 1
        %vm1525 = vcmp.eq.s32.totalorder %v1509, 1
        %vm1526 = vcmp.eq.s32.totalorder %v1510, 1
        %vm1527 = vcmp.eq.s32.totalorder %v1511, 1
        %vm1528 = vcmp.eq.s32.totalorder %v1512, 1
        %vm1529 = vcmp.eq.s32.totalorder %v1513, 1
        %vm1530 = vcmp.eq.s32.totalorder %v1514, 1
        %v1531 = vsel %vm1515, %v1498, 0.0
        %v1532 = vsel %vm1516, %v1497, 0.0
        %v1533 = vsel %vm1517, %v1496, 0.0
        %v1534 = vsel %vm1518, %v1495, 0.0
        %v1535 = vsel %vm1519, %v1494, 0.0
        %v1536 = vsel %vm1520, %v1493, 0.0
        %v1537 = vsel %vm1521, %v1492, 0.0
        %v1538 = vsel %vm1522, %v1491, 0.0
        %v1539 = vsel %vm1523, %v1490, 0.0
        %v1540 = vsel %vm1524, %v1489, 0.0
        %v1541 = vsel %vm1525, %v1488, 0.0
        %v1542 = vsel %vm1526, %v1487, 0.0
        %v1543 = vsel %vm1527, %v1486, 0.0
        %v1544 = vsel %vm1528, %v1485, 0.0
        %v1545 = vsel %vm1529, %v1484, 0.0
        %v1546 = vsel %vm1530, %v1483, 0.0
        %v1547 = vadd.f32 %v1304, %v1531
        %v1548 = vadd.f32 %v1305, %v1532
        %v1549 = vadd.f32 %v1306, %v1533
        %v1550 = vadd.f32 %v1307, %v1534
        %v1551 = vadd.f32 %v1308, %v1535
        %v1552 = vadd.f32 %v1309, %v1536
        %v1553 = vadd.f32 %v1310, %v1537
        %v1554 = vadd.f32 %v1311, %v1538
        %v1555 = vadd.f32 %v1312, %v1539
        %v1556 = vadd.f32 %v1313, %v1540
        %v1557 = vadd.f32 %v1314, %v1541
        %v1558 = vadd.f32 %v1315, %v1542
        %v1559 = vadd.f32 %v1316, %v1543
        %v1560 = vadd.f32 %v1317, %v1544
        %v1561 = vadd.f32 %v1318, %v1545
        %v1562 = vadd.f32 %v1319, %v1546
        %v1563 = vrot.slane %v1419, 1
        %v1564 = vrot.slane %v1422, 1
        %v1565 = vrot.slane %v1425, 1
        %v1566 = vrot.slane %v1428, 1
        %v1567 = vrot.slane %v1431, 1
        %v1568 = vrot.slane %v1434, 1
        %v1569 = vrot.slane %v1437, 1
        %v1570 = vrot.slane %v1440, 1
        %v1571 = vrot.slane %v1443, 1
        %v1572 = vrot.slane %v1446, 1
        %v1573 = vrot.slane %v1449, 1
        %v1574 = vrot.slane %v1452, 1
        %v1575 = vrot.slane %v1455, 1
        %v1576 = vrot.slane %v1458, 1
        %v1577 = vrot.slane %v1461, 1
        %v1578 = vrot.slane %v1464, 1
        %vm1579 = vcmp.lt.s32.totalorder %v916, 7
        %v1580 = vsel %vm1579, %v1577, %v1578
        %v1581 = vsel %vm1579, %v1576, %v1577
        %v1582 = vsel %vm1579, %v1575, %v1576
        %v1583 = vsel %vm1579, %v1574, %v1575
        %v1584 = vsel %vm1579, %v1573, %v1574
        %v1585 = vsel %vm1579, %v1572, %v1573
        %v1586 = vsel %vm1579, %v1571, %v1572
        %v1587 = vsel %vm1579, %v1570, %v1571
        %v1588 = vsel %vm1579, %v1569, %v1570
        %v1589 = vsel %vm1579, %v1568, %v1569
        %v1590 = vsel %vm1579, %v1567, %v1568
        %v1591 = vsel %vm1579, %v1566, %v1567
        %v1592 = vsel %vm1579, %v1565, %v1566
        %v1593 = vsel %vm1579, %v1564, %v1565
        %v1594 = vsel %vm1579, %v1563, %v1564
        %v1595 = vsel %vm1579, %v1578, %v1563
        %v1596 = vsel %vm1140, 1, 0
        %v1597 = vsel %vm1141, 1, 0
        %v1598 = vsel %vm1142, 1, 0
        %v1599 = vsel %vm1143, 1, 0
        %v1600 = vsel %vm1144, 1, 0
        %v1601 = vsel %vm1145, 1, 0
        %v1602 = vsel %vm1146, 1, 0
        %v1603 = vsel %vm1147, 1, 0
        %v1604 = vsel %vm1148, 1, 0
        %v1605 = vsel %vm1149, 1, 0
        %v1606 = vsel %vm1150, 1, 0
        %v1607 = vsel %vm1151, 1, 0
        %v1608 = vsel %vm1152, 1, 0
        %v1609 = vsel %vm1153, 1, 0
        %v1610 = vsel %vm1154, 1, 0
        %v1611 = vsel %vm1155, 1, 0
        %vm1612 = vcmp.eq.s32.totalorder %v1596, 1
        %vm1613 = vcmp.eq.s32.totalorder %v1597, 1
        %vm1614 = vcmp.eq.s32.totalorder %v1598, 1
        %vm1615 = vcmp.eq.s32.totalorder %v1599, 1
        %vm1616 = vcmp.eq.s32.totalorder %v1600, 1
        %vm1617 = vcmp.eq.s32.totalorder %v1601, 1
        %vm1618 = vcmp.eq.s32.totalorder %v1602, 1
        %vm1619 = vcmp.eq.s32.totalorder %v1603, 1
        %vm1620 = vcmp.eq.s32.totalorder %v1604, 1
        %vm1621 = vcmp.eq.s32.totalorder %v1605, 1
        %vm1622 = vcmp.eq.s32.totalorder %v1606, 1
        %vm1623 = vcmp.eq.s32.totalorder %v1607, 1
        %vm1624 = vcmp.eq.s32.totalorder %v1608, 1
        %vm1625 = vcmp.eq.s32.totalorder %v1609, 1
        %vm1626 = vcmp.eq.s32.totalorder %v1610, 1
        %vm1627 = vcmp.eq.s32.totalorder %v1611, 1
        %v1628 = vsel %vm1612, %v1594, 0.0
        %v1629 = vsel %vm1613, %v1593, 0.0
        %v1630 = vsel %vm1614, %v1592, 0.0
        %v1631 = vsel %vm1615, %v1591, 0.0
        %v1632 = vsel %vm1616, %v1590, 0.0
        %v1633 = vsel %vm1617, %v1589, 0.0
        %v1634 = vsel %vm1618, %v1588, 0.0
        %v1635 = vsel %vm1619, %v1587, 0.0
        %v1636 = vsel %vm1620, %v1586, 0.0
        %v1637 = vsel %vm1621, %v1585, 0.0
        %v1638 = vsel %vm1622, %v1584, 0.0
        %v1639 = vsel %vm1623, %v1583, 0.0
        %v1640 = vsel %vm1624, %v1582, 0.0
        %v1641 = vsel %vm1625, %v1581, 0.0
        %v1642 = vsel %vm1626, %v1580, 0.0
        %v1643 = vsel %vm1627, %v1595, 0.0
        %v1644 = vadd.f32 %v1547, %v1628
        %v1645 = vadd.f32 %v1548, %v1629
        %v1646 = vadd.f32 %v1549, %v1630
        %v1647 = vadd.f32 %v1550, %v1631
        %v1648 = vadd.f32 %v1551, %v1632
        %v1649 = vadd.f32 %v1552, %v1633
        %v1650 = vadd.f32 %v1553, %v1634
        %v1651 = vadd.f32 %v1554, %v1635
        %v1652 = vadd.f32 %v1555, %v1636
        %v1653 = vadd.f32 %v1556, %v1637
        %v1654 = vadd.f32 %v1557, %v1638
        %v1655 = vadd.f32 %v1558, %v1639
        %v1656 = vadd.f32 %v1559, %v1640
        %v1657 = vadd.f32 %v1560, %v1641
        %v1658 = vadd.f32 %v1561, %v1642
        %v1659 = vadd.f32 %v1562, %v1643
        %s1660 = sadd.s32 %s1162, 16
        %s1661 = scalar_lea.vmem [#allocation2], %s1660
        %v1662 = vld [vmem:[%s1661] sm:$0xff]
        %v1663 = vld [vmem:[%s1661 + $0x8] sm:$0xff]
        %v1664 = vld [vmem:[%s1661 + $0x10] sm:$0xff]
        %v1665 = vld [vmem:[%s1661 + $0x18] sm:$0xff]
        %v1666 = vld [vmem:[%s1661 + $0x20] sm:$0xff]
        %v1667 = vld [vmem:[%s1661 + $0x28] sm:$0xff]
        %v1668 = vld [vmem:[%s1661 + $0x30] sm:$0xff]
        %v1669 = vld [vmem:[%s1661 + $0x38] sm:$0xff]
        %v1670 = vld [vmem:[%s1661 + $0x40] sm:$0xff]
        %v1671 = vld [vmem:[%s1661 + $0x48] sm:$0xff]
        %v1672 = vld [vmem:[%s1661 + $0x50] sm:$0xff]
        %v1673 = vld [vmem:[%s1661 + $0x58] sm:$0xff]
        %v1674 = vld [vmem:[%s1661 + $0x60] sm:$0xff]
        %v1675 = vld [vmem:[%s1661 + $0x68] sm:$0xff]
        %v1676 = vld [vmem:[%s1661 + $0x70] sm:$0xff]
        %v1677 = vld [vmem:[%s1661 + $0x78] sm:$0xff]
        %s1678 = scalar_lea.vmem %s4, 64
        %v1679 = vld [vmem:[%s1678] sm:$0xff]
        %v1680 = vld [vmem:[%s1678 + $0x8] sm:$0xff]
        %v1681 = vld [vmem:[%s1678 + $0x10] sm:$0xff]
        %v1682 = vld [vmem:[%s1678 + $0x18] sm:$0xff]
        %v1683 = vld [vmem:[%s1678 + $0x20] sm:$0xff]
        %v1684 = vld [vmem:[%s1678 + $0x28] sm:$0xff]
        %v1685 = vld [vmem:[%s1678 + $0x30] sm:$0xff]
        %v1686 = vld [vmem:[%s1678 + $0x38] sm:$0xff]
        %v1688 = vsel %vm351, %v1662, 0
        %v1691 = vsel %vm351, %v1663, 0
        %v1694 = vsel %vm351, %v1664, 0
        %v1697 = vsel %vm351, %v1665, 0
        %v1700 = vsel %vm351, %v1666, 0
        %v1703 = vsel %vm351, %v1667, 0
        %v1706 = vsel %vm351, %v1668, 0
        %v1709 = vsel %vm351, %v1669, 0
        %v1712 = vsel %vm351, %v1670, 0
        %v1715 = vsel %vm351, %v1671, 0
        %v1718 = vsel %vm351, %v1672, 0
        %v1721 = vsel %vm351, %v1673, 0
        %v1724 = vsel %vm351, %v1674, 0
        %v1727 = vsel %vm351, %v1675, 0
        %v1730 = vsel %vm351, %v1676, 0
        %v1733 = vsel %vm351, %v1677, 0
        %1735 = vmatpush.msra.mxu0 0.0
        %1736 = vmatpush.msra.mxu0 0.0
        %1737 = vmatpush.msra.mxu0 0.0
        %1738 = vmatpush.msra.mxu0 0.0
        %1739 = vmatpush.msra.mxu0 0.0
        %1740 = vmatpush.msra.mxu0 0.0
        %1741 = vmatpush.msra.mxu0 0.0
        %1742 = vmatpush.msra.mxu0 0.0
        %1743 = vmatpush.msra.mxu0 %v1686
        %1744 = vmatpush.msra.mxu0 %v1685
        %1745 = vmatpush.msra.mxu0 %v1684
        %1746 = vmatpush.msra.mxu0 %v1683
        %1747 = vmatpush.msra.mxu0 %v1682
        %1748 = vmatpush.msra.mxu0 %v1681
        %1749 = vmatpush.msra.mxu0 %v1680
        %1750 = vmatpush.msra.mxu0 %v1679
        %1751 = vmatmul.f32.gmra.mxu0 %v1688
        %v1752 = vpop.f32.mrf.mxu0
        %v1753 = vadd.f32 0.0, %v1752
        %1754 = vmatmul.f32.gmra.mxu0 %v1691
        %v1755 = vpop.f32.mrf.mxu0
        %v1756 = vadd.f32 0.0, %v1755
        %1757 = vmatmul.f32.gmra.mxu0 %v1694
        %v1758 = vpop.f32.mrf.mxu0
        %v1759 = vadd.f32 0.0, %v1758
        %1760 = vmatmul.f32.gmra.mxu0 %v1697
        %v1761 = vpop.f32.mrf.mxu0
        %v1762 = vadd.f32 0.0, %v1761
        %1763 = vmatmul.f32.gmra.mxu0 %v1700
        %v1764 = vpop.f32.mrf.mxu0
        %v1765 = vadd.f32 0.0, %v1764
        %1766 = vmatmul.f32.gmra.mxu0 %v1703
        %v1767 = vpop.f32.mrf.mxu0
        %v1768 = vadd.f32 0.0, %v1767
        %1769 = vmatmul.f32.gmra.mxu0 %v1706
        %v1770 = vpop.f32.mrf.mxu0
        %v1771 = vadd.f32 0.0, %v1770
        %1772 = vmatmul.f32.gmra.mxu0 %v1709
        %v1773 = vpop.f32.mrf.mxu0
        %v1774 = vadd.f32 0.0, %v1773
        %1775 = vmatmul.f32.gmra.mxu0 %v1712
        %v1776 = vpop.f32.mrf.mxu0
        %v1777 = vadd.f32 0.0, %v1776
        %1778 = vmatmul.f32.gmra.mxu0 %v1715
        %v1779 = vpop.f32.mrf.mxu0
        %v1780 = vadd.f32 0.0, %v1779
        %1781 = vmatmul.f32.gmra.mxu0 %v1718
        %v1782 = vpop.f32.mrf.mxu0
        %v1783 = vadd.f32 0.0, %v1782
        %1784 = vmatmul.f32.gmra.mxu0 %v1721
        %v1785 = vpop.f32.mrf.mxu0
        %v1786 = vadd.f32 0.0, %v1785
        %1787 = vmatmul.f32.gmra.mxu0 %v1724
        %v1788 = vpop.f32.mrf.mxu0
        %v1789 = vadd.f32 0.0, %v1788
        %1790 = vmatmul.f32.gmra.mxu0 %v1727
        %v1791 = vpop.f32.mrf.mxu0
        %v1792 = vadd.f32 0.0, %v1791
        %1793 = vmatmul.f32.gmra.mxu0 %v1730
        %v1794 = vpop.f32.mrf.mxu0
        %v1795 = vadd.f32 0.0, %v1794
        %1796 = vmatmul.f32.gmra.mxu0 %v1733
        %v1797 = vpop.f32.mrf.mxu0
        %v1798 = vadd.f32 0.0, %v1797
        %1799 = vdwg.mxu0
        %v1800 = vadd.f32 %v1644, %v1753
        %v1801 = vadd.f32 %v1645, %v1756
        %v1802 = vadd.f32 %v1646, %v1759
        %v1803 = vadd.f32 %v1647, %v1762
        %v1804 = vadd.f32 %v1648, %v1765
        %v1805 = vadd.f32 %v1649, %v1768
        %v1806 = vadd.f32 %v1650, %v1771
        %v1807 = vadd.f32 %v1651, %v1774
        %v1808 = vadd.f32 %v1652, %v1777
        %v1809 = vadd.f32 %v1653, %v1780
        %v1810 = vadd.f32 %v1654, %v1783
        %v1811 = vadd.f32 %v1655, %v1786
        %v1812 = vadd.f32 %v1656, %v1789
        %v1813 = vadd.f32 %v1657, %v1792
        %v1814 = vadd.f32 %v1658, %v1795
        %v1815 = vadd.f32 %v1659, %v1798
        %s1816 = scalar_lea.vmem %s5, 128
        %v1817 = vld [vmem:[%s1816] sm:$0xff]
        %v1818 = vld [vmem:[%s1816 + $0x8] sm:$0xff]
        %v1819 = vld [vmem:[%s1816 + $0x10] sm:$0xff]
        %v1820 = vld [vmem:[%s1816 + $0x18] sm:$0xff]
        %v1821 = vld [vmem:[%s1816 + $0x20] sm:$0xff]
        %v1822 = vld [vmem:[%s1816 + $0x28] sm:$0xff]
        %v1823 = vld [vmem:[%s1816 + $0x30] sm:$0xff]
        %v1824 = vld [vmem:[%s1816 + $0x38] sm:$0xff]
        %v1825 = vld [vmem:[%s1816 + $0x40] sm:$0xff]
        %v1826 = vld [vmem:[%s1816 + $0x48] sm:$0xff]
        %v1827 = vld [vmem:[%s1816 + $0x50] sm:$0xff]
        %v1828 = vld [vmem:[%s1816 + $0x58] sm:$0xff]
        %v1829 = vld [vmem:[%s1816 + $0x60] sm:$0xff]
        %v1830 = vld [vmem:[%s1816 + $0x68] sm:$0xff]
        %v1831 = vld [vmem:[%s1816 + $0x70] sm:$0xff]
        %v1832 = vld [vmem:[%s1816 + $0x78] sm:$0xff]
        %1833 = vmatpush.msra.mxu0 0.0
        %1834 = vmatpush.msra.mxu0 0.0
        %1835 = vmatpush.msra.mxu0 0.0
        %1836 = vmatpush.msra.mxu0 0.0
        %1837 = vmatpush.msra.mxu0 0.0
        %1838 = vmatpush.msra.mxu0 0.0
        %1839 = vmatpush.msra.mxu0 0.0
        %1840 = vmatpush.msra.mxu0 0.0
        %1841 = vmatpush.msra.mxu0 %v1831
        %1842 = vmatpush.msra.mxu0 %v1829
        %1843 = vmatpush.msra.mxu0 %v1827
        %1844 = vmatpush.msra.mxu0 %v1825
        %1845 = vmatpush.msra.mxu0 %v1823
        %1846 = vmatpush.msra.mxu0 %v1821
        %1847 = vmatpush.msra.mxu0 %v1819
        %1848 = vmatpush.msra.mxu0 %v1817
        %1849 = vmatmul.f32.gmra.mxu0 %v1688
        %v1850 = vpop.f32.mrf.mxu0
        %v1851 = vadd.f32 0.0, %v1850
        %1852 = vmatmul.f32.gmra.mxu0 %v1691
        %v1853 = vpop.f32.mrf.mxu0
        %v1854 = vadd.f32 0.0, %v1853
        %1855 = vmatmul.f32.gmra.mxu0 %v1694
        %v1856 = vpop.f32.mrf.mxu0
        %v1857 = vadd.f32 0.0, %v1856
        %1858 = vmatmul.f32.gmra.mxu0 %v1697
        %v1859 = vpop.f32.mrf.mxu0
        %v1860 = vadd.f32 0.0, %v1859
        %1861 = vmatmul.f32.gmra.mxu0 %v1700
        %v1862 = vpop.f32.mrf.mxu0
        %v1863 = vadd.f32 0.0, %v1862
        %1864 = vmatmul.f32.gmra.mxu0 %v1703
        %v1865 = vpop.f32.mrf.mxu0
        %v1866 = vadd.f32 0.0, %v1865
        %1867 = vmatmul.f32.gmra.mxu0 %v1706
        %v1868 = vpop.f32.mrf.mxu0
        %v1869 = vadd.f32 0.0, %v1868
        %1870 = vmatmul.f32.gmra.mxu0 %v1709
        %v1871 = vpop.f32.mrf.mxu0
        %v1872 = vadd.f32 0.0, %v1871
        %1873 = vmatmul.f32.gmra.mxu0 %v1712
        %v1874 = vpop.f32.mrf.mxu0
        %v1875 = vadd.f32 0.0, %v1874
        %1876 = vmatmul.f32.gmra.mxu0 %v1715
        %v1877 = vpop.f32.mrf.mxu0
        %v1878 = vadd.f32 0.0, %v1877
        %1879 = vmatmul.f32.gmra.mxu0 %v1718
        %v1880 = vpop.f32.mrf.mxu0
        %v1881 = vadd.f32 0.0, %v1880
        %1882 = vmatmul.f32.gmra.mxu0 %v1721
        %v1883 = vpop.f32.mrf.mxu0
        %v1884 = vadd.f32 0.0, %v1883
        %1885 = vmatmul.f32.gmra.mxu0 %v1724
        %v1886 = vpop.f32.mrf.mxu0
        %v1887 = vadd.f32 0.0, %v1886
        %1888 = vmatmul.f32.gmra.mxu0 %v1727
        %v1889 = vpop.f32.mrf.mxu0
        %v1890 = vadd.f32 0.0, %v1889
        %1891 = vmatmul.f32.gmra.mxu0 %v1730
        %v1892 = vpop.f32.mrf.mxu0
        %v1893 = vadd.f32 0.0, %v1892
        %1894 = vmatmul.f32.gmra.mxu0 %v1733
        %v1895 = vpop.f32.mrf.mxu0
        %v1896 = vadd.f32 0.0, %v1895
        %1897 = vdwg.mxu0
        %1898 = vmatpush.msra.mxu0 0.0
        %1899 = vmatpush.msra.mxu0 0.0
        %1900 = vmatpush.msra.mxu0 0.0
        %1901 = vmatpush.msra.mxu0 0.0
        %1902 = vmatpush.msra.mxu0 0.0
        %1903 = vmatpush.msra.mxu0 0.0
        %1904 = vmatpush.msra.mxu0 0.0
        %1905 = vmatpush.msra.mxu0 0.0
        %1906 = vmatpush.msra.mxu0 %v1832
        %1907 = vmatpush.msra.mxu0 %v1830
        %1908 = vmatpush.msra.mxu0 %v1828
        %1909 = vmatpush.msra.mxu0 %v1826
        %1910 = vmatpush.msra.mxu0 %v1824
        %1911 = vmatpush.msra.mxu0 %v1822
        %1912 = vmatpush.msra.mxu0 %v1820
        %1913 = vmatpush.msra.mxu0 %v1818
        %1914 = vmatmul.f32.gmra.mxu0 %v1688
        %v1915 = vpop.f32.mrf.mxu0
        %v1916 = vadd.f32 0.0, %v1915
        %1917 = vmatmul.f32.gmra.mxu0 %v1691
        %v1918 = vpop.f32.mrf.mxu0
        %v1919 = vadd.f32 0.0, %v1918
        %1920 = vmatmul.f32.gmra.mxu0 %v1694
        %v1921 = vpop.f32.mrf.mxu0
        %v1922 = vadd.f32 0.0, %v1921
        %1923 = vmatmul.f32.gmra.mxu0 %v1697
        %v1924 = vpop.f32.mrf.mxu0
        %v1925 = vadd.f32 0.0, %v1924
        %1926 = vmatmul.f32.gmra.mxu0 %v1700
        %v1927 = vpop.f32.mrf.mxu0
        %v1928 = vadd.f32 0.0, %v1927
        %1929 = vmatmul.f32.gmra.mxu0 %v1703
        %v1930 = vpop.f32.mrf.mxu0
        %v1931 = vadd.f32 0.0, %v1930
        %1932 = vmatmul.f32.gmra.mxu0 %v1706
        %v1933 = vpop.f32.mrf.mxu0
        %v1934 = vadd.f32 0.0, %v1933
        %1935 = vmatmul.f32.gmra.mxu0 %v1709
        %v1936 = vpop.f32.mrf.mxu0
        %v1937 = vadd.f32 0.0, %v1936
        %1938 = vmatmul.f32.gmra.mxu0 %v1712
        %v1939 = vpop.f32.mrf.mxu0
        %v1940 = vadd.f32 0.0, %v1939
        %1941 = vmatmul.f32.gmra.mxu0 %v1715
        %v1942 = vpop.f32.mrf.mxu0
        %v1943 = vadd.f32 0.0, %v1942
        %1944 = vmatmul.f32.gmra.mxu0 %v1718
        %v1945 = vpop.f32.mrf.mxu0
        %v1946 = vadd.f32 0.0, %v1945
        %1947 = vmatmul.f32.gmra.mxu0 %v1721
        %v1948 = vpop.f32.mrf.mxu0
        %v1949 = vadd.f32 0.0, %v1948
        %1950 = vmatmul.f32.gmra.mxu0 %v1724
        %v1951 = vpop.f32.mrf.mxu0
        %v1952 = vadd.f32 0.0, %v1951
        %1953 = vmatmul.f32.gmra.mxu0 %v1727
        %v1954 = vpop.f32.mrf.mxu0
        %v1955 = vadd.f32 0.0, %v1954
        %1956 = vmatmul.f32.gmra.mxu0 %v1730
        %v1957 = vpop.f32.mrf.mxu0
        %v1958 = vadd.f32 0.0, %v1957
        %1959 = vmatmul.f32.gmra.mxu0 %v1733
        %v1960 = vpop.f32.mrf.mxu0
        %v1961 = vadd.f32 0.0, %v1960
        %1962 = vdwg.mxu0
        %v1963 = vrot.slane %v1851, 7
        %v1964 = vrot.slane %v1854, 7
        %v1965 = vrot.slane %v1857, 7
        %v1966 = vrot.slane %v1860, 7
        %v1967 = vrot.slane %v1863, 7
        %v1968 = vrot.slane %v1866, 7
        %v1969 = vrot.slane %v1869, 7
        %v1970 = vrot.slane %v1872, 7
        %v1971 = vrot.slane %v1875, 7
        %v1972 = vrot.slane %v1878, 7
        %v1973 = vrot.slane %v1881, 7
        %v1974 = vrot.slane %v1884, 7
        %v1975 = vrot.slane %v1887, 7
        %v1976 = vrot.slane %v1890, 7
        %v1977 = vrot.slane %v1893, 7
        %v1978 = vrot.slane %v1896, 7
        %v1979 = vsel %vm1482, %v1977, %v1978
        %v1980 = vsel %vm1482, %v1976, %v1977
        %v1981 = vsel %vm1482, %v1975, %v1976
        %v1982 = vsel %vm1482, %v1974, %v1975
        %v1983 = vsel %vm1482, %v1973, %v1974
        %v1984 = vsel %vm1482, %v1972, %v1973
        %v1985 = vsel %vm1482, %v1971, %v1972
        %v1986 = vsel %vm1482, %v1970, %v1971
        %v1987 = vsel %vm1482, %v1969, %v1970
        %v1988 = vsel %vm1482, %v1968, %v1969
        %v1989 = vsel %vm1482, %v1967, %v1968
        %v1990 = vsel %vm1482, %v1966, %v1967
        %v1991 = vsel %vm1482, %v1965, %v1966
        %v1992 = vsel %vm1482, %v1964, %v1965
        %v1993 = vsel %vm1482, %v1963, %v1964
        %v1994 = vsel %vm1482, %v1978, %v1963
        %v1995 = vsel %vm1515, %v1994, 0.0
        %v1996 = vsel %vm1516, %v1993, 0.0
        %v1997 = vsel %vm1517, %v1992, 0.0
        %v1998 = vsel %vm1518, %v1991, 0.0
        %v1999 = vsel %vm1519, %v1990, 0.0
        %v2000 = vsel %vm1520, %v1989, 0.0
        %v2001 = vsel %vm1521, %v1988, 0.0
        %v2002 = vsel %vm1522, %v1987, 0.0
        %v2003 = vsel %vm1523, %v1986, 0.0
        %v2004 = vsel %vm1524, %v1985, 0.0
        %v2005 = vsel %vm1525, %v1984, 0.0
        %v2006 = vsel %vm1526, %v1983, 0.0
        %v2007 = vsel %vm1527, %v1982, 0.0
        %v2008 = vsel %vm1528, %v1981, 0.0
        %v2009 = vsel %vm1529, %v1980, 0.0
        %v2010 = vsel %vm1530, %v1979, 0.0
        %v2011 = vadd.f32 %v1800, %v1995
        %v2012 = vadd.f32 %v1801, %v1996
        %v2013 = vadd.f32 %v1802, %v1997
        %v2014 = vadd.f32 %v1803, %v1998
        %v2015 = vadd.f32 %v1804, %v1999
        %v2016 = vadd.f32 %v1805, %v2000
        %v2017 = vadd.f32 %v1806, %v2001
        %v2018 = vadd.f32 %v1807, %v2002
        %v2019 = vadd.f32 %v1808, %v2003
        %v2020 = vadd.f32 %v1809, %v2004
        %v2021 = vadd.f32 %v1810, %v2005
        %v2022 = vadd.f32 %v1811, %v2006
        %v2023 = vadd.f32 %v1812, %v2007
        %v2024 = vadd.f32 %v1813, %v2008
        %v2025 = vadd.f32 %v1814, %v2009
        %v2026 = vadd.f32 %v1815, %v2010
        %v2027 = vrot.slane %v1916, 1
        %v2028 = vrot.slane %v1919, 1
        %v2029 = vrot.slane %v1922, 1
        %v2030 = vrot.slane %v1925, 1
        %v2031 = vrot.slane %v1928, 1
        %v2032 = vrot.slane %v1931, 1
        %v2033 = vrot.slane %v1934, 1
        %v2034 = vrot.slane %v1937, 1
        %v2035 = vrot.slane %v1940, 1
        %v2036 = vrot.slane %v1943, 1
        %v2037 = vrot.slane %v1946, 1
        %v2038 = vrot.slane %v1949, 1
        %v2039 = vrot.slane %v1952, 1
        %v2040 = vrot.slane %v1955, 1
        %v2041 = vrot.slane %v1958, 1
        %v2042 = vrot.slane %v1961, 1
        %v2043 = vsel %vm1579, %v2041, %v2042
        %v2044 = vsel %vm1579, %v2040, %v2041
        %v2045 = vsel %vm1579, %v2039, %v2040
        %v2046 = vsel %vm1579, %v2038, %v2039
        %v2047 = vsel %vm1579, %v2037, %v2038
        %v2048 = vsel %vm1579, %v2036, %v2037
        %v2049 = vsel %vm1579, %v2035, %v2036
        %v2050 = vsel %vm1579, %v2034, %v2035
        %v2051 = vsel %vm1579, %v2033, %v2034
        %v2052 = vsel %vm1579, %v2032, %v2033
        %v2053 = vsel %vm1579, %v2031, %v2032
        %v2054 = vsel %vm1579, %v2030, %v2031
        %v2055 = vsel %vm1579, %v2029, %v2030
        %v2056 = vsel %vm1579, %v2028, %v2029
        %v2057 = vsel %vm1579, %v2027, %v2028
        %v2058 = vsel %vm1579, %v2042, %v2027
        %v2059 = vsel %vm1612, %v2057, 0.0
        %v2060 = vsel %vm1613, %v2056, 0.0
        %v2061 = vsel %vm1614, %v2055, 0.0
        %v2062 = vsel %vm1615, %v2054, 0.0
        %v2063 = vsel %vm1616, %v2053, 0.0
        %v2064 = vsel %vm1617, %v2052, 0.0
        %v2065 = vsel %vm1618, %v2051, 0.0
        %v2066 = vsel %vm1619, %v2050, 0.0
        %v2067 = vsel %vm1620, %v2049, 0.0
        %v2068 = vsel %vm1621, %v2048, 0.0
        %v2069 = vsel %vm1622, %v2047, 0.0
        %v2070 = vsel %vm1623, %v2046, 0.0
        %v2071 = vsel %vm1624, %v2045, 0.0
        %v2072 = vsel %vm1625, %v2044, 0.0
        %v2073 = vsel %vm1626, %v2043, 0.0
        %v2074 = vsel %vm1627, %v2058, 0.0
        %v2075 = vadd.f32 %v2011, %v2059
        %v2076 = vadd.f32 %v2012, %v2060
        %v2077 = vadd.f32 %v2013, %v2061
        %v2078 = vadd.f32 %v2014, %v2062
        %v2079 = vadd.f32 %v2015, %v2063
        %v2080 = vadd.f32 %v2016, %v2064
        %v2081 = vadd.f32 %v2017, %v2065
        %v2082 = vadd.f32 %v2018, %v2066
        %v2083 = vadd.f32 %v2019, %v2067
        %v2084 = vadd.f32 %v2020, %v2068
        %v2085 = vadd.f32 %v2021, %v2069
        %v2086 = vadd.f32 %v2022, %v2070
        %v2087 = vadd.f32 %v2023, %v2071
        %v2088 = vadd.f32 %v2024, %v2072
        %v2089 = vadd.f32 %v2025, %v2073
        %v2090 = vadd.f32 %v2026, %v2074
        %s2091 = sadd.s32 %s1162, 32
        %s2092 = scalar_lea.vmem [#allocation2], %s2091
        %v2093 = vld [vmem:[%s2092] sm:$0xff]
        %v2094 = vld [vmem:[%s2092 + $0x8] sm:$0xff]
        %v2095 = vld [vmem:[%s2092 + $0x10] sm:$0xff]
        %v2096 = vld [vmem:[%s2092 + $0x18] sm:$0xff]
        %v2097 = vld [vmem:[%s2092 + $0x20] sm:$0xff]
        %v2098 = vld [vmem:[%s2092 + $0x28] sm:$0xff]
        %v2099 = vld [vmem:[%s2092 + $0x30] sm:$0xff]
        %v2100 = vld [vmem:[%s2092 + $0x38] sm:$0xff]
        %v2101 = vld [vmem:[%s2092 + $0x40] sm:$0xff]
        %v2102 = vld [vmem:[%s2092 + $0x48] sm:$0xff]
        %v2103 = vld [vmem:[%s2092 + $0x50] sm:$0xff]
        %v2104 = vld [vmem:[%s2092 + $0x58] sm:$0xff]
        %v2105 = vld [vmem:[%s2092 + $0x60] sm:$0xff]
        %v2106 = vld [vmem:[%s2092 + $0x68] sm:$0xff]
        %v2107 = vld [vmem:[%s2092 + $0x70] sm:$0xff]
        %v2108 = vld [vmem:[%s2092 + $0x78] sm:$0xff]
        %s2109 = scalar_lea.vmem %s4, 128
        %v2110 = vld [vmem:[%s2109] sm:$0xff]
        %v2111 = vld [vmem:[%s2109 + $0x8] sm:$0xff]
        %v2112 = vld [vmem:[%s2109 + $0x10] sm:$0xff]
        %v2113 = vld [vmem:[%s2109 + $0x18] sm:$0xff]
        %v2114 = vld [vmem:[%s2109 + $0x20] sm:$0xff]
        %v2115 = vld [vmem:[%s2109 + $0x28] sm:$0xff]
        %v2116 = vld [vmem:[%s2109 + $0x30] sm:$0xff]
        %v2117 = vld [vmem:[%s2109 + $0x38] sm:$0xff]
        %v2119 = vsel %vm351, %v2093, 0
        %v2122 = vsel %vm351, %v2094, 0
        %v2125 = vsel %vm351, %v2095, 0
        %v2128 = vsel %vm351, %v2096, 0
        %v2131 = vsel %vm351, %v2097, 0
        %v2134 = vsel %vm351, %v2098, 0
        %v2137 = vsel %vm351, %v2099, 0
        %v2140 = vsel %vm351, %v2100, 0
        %v2143 = vsel %vm351, %v2101, 0
        %v2146 = vsel %vm351, %v2102, 0
        %v2149 = vsel %vm351, %v2103, 0
        %v2152 = vsel %vm351, %v2104, 0
        %v2155 = vsel %vm351, %v2105, 0
        %v2158 = vsel %vm351, %v2106, 0
        %v2161 = vsel %vm351, %v2107, 0
        %v2164 = vsel %vm351, %v2108, 0
        %2166 = vmatpush.msra.mxu0 0.0
        %2167 = vmatpush.msra.mxu0 0.0
        %2168 = vmatpush.msra.mxu0 0.0
        %2169 = vmatpush.msra.mxu0 0.0
        %2170 = vmatpush.msra.mxu0 0.0
        %2171 = vmatpush.msra.mxu0 0.0
        %2172 = vmatpush.msra.mxu0 0.0
        %2173 = vmatpush.msra.mxu0 0.0
        %2174 = vmatpush.msra.mxu0 %v2117
        %2175 = vmatpush.msra.mxu0 %v2116
        %2176 = vmatpush.msra.mxu0 %v2115
        %2177 = vmatpush.msra.mxu0 %v2114
        %2178 = vmatpush.msra.mxu0 %v2113
        %2179 = vmatpush.msra.mxu0 %v2112
        %2180 = vmatpush.msra.mxu0 %v2111
        %2181 = vmatpush.msra.mxu0 %v2110
        %2182 = vmatmul.f32.gmra.mxu0 %v2119
        %v2183 = vpop.f32.mrf.mxu0
        %v2184 = vadd.f32 0.0, %v2183
        %2185 = vmatmul.f32.gmra.mxu0 %v2122
        %v2186 = vpop.f32.mrf.mxu0
        %v2187 = vadd.f32 0.0, %v2186
        %2188 = vmatmul.f32.gmra.mxu0 %v2125
        %v2189 = vpop.f32.mrf.mxu0
        %v2190 = vadd.f32 0.0, %v2189
        %2191 = vmatmul.f32.gmra.mxu0 %v2128
        %v2192 = vpop.f32.mrf.mxu0
        %v2193 = vadd.f32 0.0, %v2192
        %2194 = vmatmul.f32.gmra.mxu0 %v2131
        %v2195 = vpop.f32.mrf.mxu0
        %v2196 = vadd.f32 0.0, %v2195
        %2197 = vmatmul.f32.gmra.mxu0 %v2134
        %v2198 = vpop.f32.mrf.mxu0
        %v2199 = vadd.f32 0.0, %v2198
        %2200 = vmatmul.f32.gmra.mxu0 %v2137
        %v2201 = vpop.f32.mrf.mxu0
        %v2202 = vadd.f32 0.0, %v2201
        %2203 = vmatmul.f32.gmra.mxu0 %v2140
        %v2204 = vpop.f32.mrf.mxu0
        %v2205 = vadd.f32 0.0, %v2204
        %2206 = vmatmul.f32.gmra.mxu0 %v2143
        %v2207 = vpop.f32.mrf.mxu0
        %v2208 = vadd.f32 0.0, %v2207
        %2209 = vmatmul.f32.gmra.mxu0 %v2146
        %v2210 = vpop.f32.mrf.mxu0
        %v2211 = vadd.f32 0.0, %v2210
        %2212 = vmatmul.f32.gmra.mxu0 %v2149
        %v2213 = vpop.f32.mrf.mxu0
        %v2214 = vadd.f32 0.0, %v2213
        %2215 = vmatmul.f32.gmra.mxu0 %v2152
        %v2216 = vpop.f32.mrf.mxu0
        %v2217 = vadd.f32 0.0, %v2216
        %2218 = vmatmul.f32.gmra.mxu0 %v2155
        %v2219 = vpop.f32.mrf.mxu0
        %v2220 = vadd.f32 0.0, %v2219
        %2221 = vmatmul.f32.gmra.mxu0 %v2158
        %v2222 = vpop.f32.mrf.mxu0
        %v2223 = vadd.f32 0.0, %v2222
        %2224 = vmatmul.f32.gmra.mxu0 %v2161
        %v2225 = vpop.f32.mrf.mxu0
        %v2226 = vadd.f32 0.0, %v2225
        %2227 = vmatmul.f32.gmra.mxu0 %v2164
        %v2228 = vpop.f32.mrf.mxu0
        %v2229 = vadd.f32 0.0, %v2228
        %2230 = vdwg.mxu0
        %v2231 = vadd.f32 %v2075, %v2184
        %v2232 = vadd.f32 %v2076, %v2187
        %v2233 = vadd.f32 %v2077, %v2190
        %v2234 = vadd.f32 %v2078, %v2193
        %v2235 = vadd.f32 %v2079, %v2196
        %v2236 = vadd.f32 %v2080, %v2199
        %v2237 = vadd.f32 %v2081, %v2202
        %v2238 = vadd.f32 %v2082, %v2205
        %v2239 = vadd.f32 %v2083, %v2208
        %v2240 = vadd.f32 %v2084, %v2211
        %v2241 = vadd.f32 %v2085, %v2214
        %v2242 = vadd.f32 %v2086, %v2217
        %v2243 = vadd.f32 %v2087, %v2220
        %v2244 = vadd.f32 %v2088, %v2223
        %v2245 = vadd.f32 %v2089, %v2226
        %v2246 = vadd.f32 %v2090, %v2229
        %s2247 = scalar_lea.vmem %s5, 256
        %v2248 = vld [vmem:[%s2247] sm:$0xff]
        %v2249 = vld [vmem:[%s2247 + $0x8] sm:$0xff]
        %v2250 = vld [vmem:[%s2247 + $0x10] sm:$0xff]
        %v2251 = vld [vmem:[%s2247 + $0x18] sm:$0xff]
        %v2252 = vld [vmem:[%s2247 + $0x20] sm:$0xff]
        %v2253 = vld [vmem:[%s2247 + $0x28] sm:$0xff]
        %v2254 = vld [vmem:[%s2247 + $0x30] sm:$0xff]
        %v2255 = vld [vmem:[%s2247 + $0x38] sm:$0xff]
        %v2256 = vld [vmem:[%s2247 + $0x40] sm:$0xff]
        %v2257 = vld [vmem:[%s2247 + $0x48] sm:$0xff]
        %v2258 = vld [vmem:[%s2247 + $0x50] sm:$0xff]
        %v2259 = vld [vmem:[%s2247 + $0x58] sm:$0xff]
        %v2260 = vld [vmem:[%s2247 + $0x60] sm:$0xff]
        %v2261 = vld [vmem:[%s2247 + $0x68] sm:$0xff]
        %v2262 = vld [vmem:[%s2247 + $0x70] sm:$0xff]
        %v2263 = vld [vmem:[%s2247 + $0x78] sm:$0xff]
        %2264 = vmatpush.msra.mxu0 0.0
        %2265 = vmatpush.msra.mxu0 0.0
        %2266 = vmatpush.msra.mxu0 0.0
        %2267 = vmatpush.msra.mxu0 0.0
        %2268 = vmatpush.msra.mxu0 0.0
        %2269 = vmatpush.msra.mxu0 0.0
        %2270 = vmatpush.msra.mxu0 0.0
        %2271 = vmatpush.msra.mxu0 0.0
        %2272 = vmatpush.msra.mxu0 %v2262
        %2273 = vmatpush.msra.mxu0 %v2260
        %2274 = vmatpush.msra.mxu0 %v2258
        %2275 = vmatpush.msra.mxu0 %v2256
        %2276 = vmatpush.msra.mxu0 %v2254
        %2277 = vmatpush.msra.mxu0 %v2252
        %2278 = vmatpush.msra.mxu0 %v2250
        %2279 = vmatpush.msra.mxu0 %v2248
        %2280 = vmatmul.f32.gmra.mxu0 %v2119
        %v2281 = vpop.f32.mrf.mxu0
        %v2282 = vadd.f32 0.0, %v2281
        %2283 = vmatmul.f32.gmra.mxu0 %v2122
        %v2284 = vpop.f32.mrf.mxu0
        %v2285 = vadd.f32 0.0, %v2284
        %2286 = vmatmul.f32.gmra.mxu0 %v2125
        %v2287 = vpop.f32.mrf.mxu0
        %v2288 = vadd.f32 0.0, %v2287
        %2289 = vmatmul.f32.gmra.mxu0 %v2128
        %v2290 = vpop.f32.mrf.mxu0
        %v2291 = vadd.f32 0.0, %v2290
        %2292 = vmatmul.f32.gmra.mxu0 %v2131
        %v2293 = vpop.f32.mrf.mxu0
        %v2294 = vadd.f32 0.0, %v2293
        %2295 = vmatmul.f32.gmra.mxu0 %v2134
        %v2296 = vpop.f32.mrf.mxu0
        %v2297 = vadd.f32 0.0, %v2296
        %2298 = vmatmul.f32.gmra.mxu0 %v2137
        %v2299 = vpop.f32.mrf.mxu0
        %v2300 = vadd.f32 0.0, %v2299
        %2301 = vmatmul.f32.gmra.mxu0 %v2140
        %v2302 = vpop.f32.mrf.mxu0
        %v2303 = vadd.f32 0.0, %v2302
        %2304 = vmatmul.f32.gmra.mxu0 %v2143
        %v2305 = vpop.f32.mrf.mxu0
        %v2306 = vadd.f32 0.0, %v2305
        %2307 = vmatmul.f32.gmra.mxu0 %v2146
        %v2308 = vpop.f32.mrf.mxu0
        %v2309 = vadd.f32 0.0, %v2308
        %2310 = vmatmul.f32.gmra.mxu0 %v2149
        %v2311 = vpop.f32.mrf.mxu0
        %v2312 = vadd.f32 0.0, %v2311
        %2313 = vmatmul.f32.gmra.mxu0 %v2152
        %v2314 = vpop.f32.mrf.mxu0
        %v2315 = vadd.f32 0.0, %v2314
        %2316 = vmatmul.f32.gmra.mxu0 %v2155
        %v2317 = vpop.f32.mrf.mxu0
        %v2318 = vadd.f32 0.0, %v2317
        %2319 = vmatmul.f32.gmra.mxu0 %v2158
        %v2320 = vpop.f32.mrf.mxu0
        %v2321 = vadd.f32 0.0, %v2320
        %2322 = vmatmul.f32.gmra.mxu0 %v2161
        %v2323 = vpop.f32.mrf.mxu0
        %v2324 = vadd.f32 0.0, %v2323
        %2325 = vmatmul.f32.gmra.mxu0 %v2164
        %v2326 = vpop.f32.mrf.mxu0
        %v2327 = vadd.f32 0.0, %v2326
        %2328 = vdwg.mxu0
        %2329 = vmatpush.msra.mxu0 0.0
        %2330 = vmatpush.msra.mxu0 0.0
        %2331 = vmatpush.msra.mxu0 0.0
        %2332 = vmatpush.msra.mxu0 0.0
        %2333 = vmatpush.msra.mxu0 0.0
        %2334 = vmatpush.msra.mxu0 0.0
        %2335 = vmatpush.msra.mxu0 0.0
        %2336 = vmatpush.msra.mxu0 0.0
        %2337 = vmatpush.msra.mxu0 %v2263
        %2338 = vmatpush.msra.mxu0 %v2261
        %2339 = vmatpush.msra.mxu0 %v2259
        %2340 = vmatpush.msra.mxu0 %v2257
        %2341 = vmatpush.msra.mxu0 %v2255
        %2342 = vmatpush.msra.mxu0 %v2253
        %2343 = vmatpush.msra.mxu0 %v2251
        %2344 = vmatpush.msra.mxu0 %v2249
        %2345 = vmatmul.f32.gmra.mxu0 %v2119
        %v2346 = vpop.f32.mrf.mxu0
        %v2347 = vadd.f32 0.0, %v2346
        %2348 = vmatmul.f32.gmra.mxu0 %v2122
        %v2349 = vpop.f32.mrf.mxu0
        %v2350 = vadd.f32 0.0, %v2349
        %2351 = vmatmul.f32.gmra.mxu0 %v2125
        %v2352 = vpop.f32.mrf.mxu0
        %v2353 = vadd.f32 0.0, %v2352
        %2354 = vmatmul.f32.gmra.mxu0 %v2128
        %v2355 = vpop.f32.mrf.mxu0
        %v2356 = vadd.f32 0.0, %v2355
        %2357 = vmatmul.f32.gmra.mxu0 %v2131
        %v2358 = vpop.f32.mrf.mxu0
        %v2359 = vadd.f32 0.0, %v2358
        %2360 = vmatmul.f32.gmra.mxu0 %v2134
        %v2361 = vpop.f32.mrf.mxu0
        %v2362 = vadd.f32 0.0, %v2361
        %2363 = vmatmul.f32.gmra.mxu0 %v2137
        %v2364 = vpop.f32.mrf.mxu0
        %v2365 = vadd.f32 0.0, %v2364
        %2366 = vmatmul.f32.gmra.mxu0 %v2140
        %v2367 = vpop.f32.mrf.mxu0
        %v2368 = vadd.f32 0.0, %v2367
        %2369 = vmatmul.f32.gmra.mxu0 %v2143
        %v2370 = vpop.f32.mrf.mxu0
        %v2371 = vadd.f32 0.0, %v2370
        %2372 = vmatmul.f32.gmra.mxu0 %v2146
        %v2373 = vpop.f32.mrf.mxu0
        %v2374 = vadd.f32 0.0, %v2373
        %2375 = vmatmul.f32.gmra.mxu0 %v2149
        %v2376 = vpop.f32.mrf.mxu0
        %v2377 = vadd.f32 0.0, %v2376
        %2378 = vmatmul.f32.gmra.mxu0 %v2152
        %v2379 = vpop.f32.mrf.mxu0
        %v2380 = vadd.f32 0.0, %v2379
        %2381 = vmatmul.f32.gmra.mxu0 %v2155
        %v2382 = vpop.f32.mrf.mxu0
        %v2383 = vadd.f32 0.0, %v2382
        %2384 = vmatmul.f32.gmra.mxu0 %v2158
        %v2385 = vpop.f32.mrf.mxu0
        %v2386 = vadd.f32 0.0, %v2385
        %2387 = vmatmul.f32.gmra.mxu0 %v2161
        %v2388 = vpop.f32.mrf.mxu0
        %v2389 = vadd.f32 0.0, %v2388
        %2390 = vmatmul.f32.gmra.mxu0 %v2164
        %v2391 = vpop.f32.mrf.mxu0
        %v2392 = vadd.f32 0.0, %v2391
        %2393 = vdwg.mxu0
        %v2394 = vrot.slane %v2282, 7
        %v2395 = vrot.slane %v2285, 7
        %v2396 = vrot.slane %v2288, 7
        %v2397 = vrot.slane %v2291, 7
        %v2398 = vrot.slane %v2294, 7
        %v2399 = vrot.slane %v2297, 7
        %v2400 = vrot.slane %v2300, 7
        %v2401 = vrot.slane %v2303, 7
        %v2402 = vrot.slane %v2306, 7
        %v2403 = vrot.slane %v2309, 7
        %v2404 = vrot.slane %v2312, 7
        %v2405 = vrot.slane %v2315, 7
        %v2406 = vrot.slane %v2318, 7
        %v2407 = vrot.slane %v2321, 7
        %v2408 = vrot.slane %v2324, 7
        %v2409 = vrot.slane %v2327, 7
        %v2410 = vsel %vm1482, %v2408, %v2409
        %v2411 = vsel %vm1482, %v2407, %v2408
        %v2412 = vsel %vm1482, %v2406, %v2407
        %v2413 = vsel %vm1482, %v2405, %v2406
        %v2414 = vsel %vm1482, %v2404, %v2405
        %v2415 = vsel %vm1482, %v2403, %v2404
        %v2416 = vsel %vm1482, %v2402, %v2403
        %v2417 = vsel %vm1482, %v2401, %v2402
        %v2418 = vsel %vm1482, %v2400, %v2401
        %v2419 = vsel %vm1482, %v2399, %v2400
        %v2420 = vsel %vm1482, %v2398, %v2399
        %v2421 = vsel %vm1482, %v2397, %v2398
        %v2422 = vsel %vm1482, %v2396, %v2397
        %v2423 = vsel %vm1482, %v2395, %v2396
        %v2424 = vsel %vm1482, %v2394, %v2395
        %v2425 = vsel %vm1482, %v2409, %v2394
        %v2426 = vsel %vm1515, %v2425, 0.0
        %v2427 = vsel %vm1516, %v2424, 0.0
        %v2428 = vsel %vm1517, %v2423, 0.0
        %v2429 = vsel %vm1518, %v2422, 0.0
        %v2430 = vsel %vm1519, %v2421, 0.0
        %v2431 = vsel %vm1520, %v2420, 0.0
        %v2432 = vsel %vm1521, %v2419, 0.0
        %v2433 = vsel %vm1522, %v2418, 0.0
        %v2434 = vsel %vm1523, %v2417, 0.0
        %v2435 = vsel %vm1524, %v2416, 0.0
        %v2436 = vsel %vm1525, %v2415, 0.0
        %v2437 = vsel %vm1526, %v2414, 0.0
        %v2438 = vsel %vm1527, %v2413, 0.0
        %v2439 = vsel %vm1528, %v2412, 0.0
        %v2440 = vsel %vm1529, %v2411, 0.0
        %v2441 = vsel %vm1530, %v2410, 0.0
        %v2442 = vadd.f32 %v2231, %v2426
        %v2443 = vadd.f32 %v2232, %v2427
        %v2444 = vadd.f32 %v2233, %v2428
        %v2445 = vadd.f32 %v2234, %v2429
        %v2446 = vadd.f32 %v2235, %v2430
        %v2447 = vadd.f32 %v2236, %v2431
        %v2448 = vadd.f32 %v2237, %v2432
        %v2449 = vadd.f32 %v2238, %v2433
        %v2450 = vadd.f32 %v2239, %v2434
        %v2451 = vadd.f32 %v2240, %v2435
        %v2452 = vadd.f32 %v2241, %v2436
        %v2453 = vadd.f32 %v2242, %v2437
        %v2454 = vadd.f32 %v2243, %v2438
        %v2455 = vadd.f32 %v2244, %v2439
        %v2456 = vadd.f32 %v2245, %v2440
        %v2457 = vadd.f32 %v2246, %v2441
        %v2458 = vrot.slane %v2347, 1
        %v2459 = vrot.slane %v2350, 1
        %v2460 = vrot.slane %v2353, 1
        %v2461 = vrot.slane %v2356, 1
        %v2462 = vrot.slane %v2359, 1
        %v2463 = vrot.slane %v2362, 1
        %v2464 = vrot.slane %v2365, 1
        %v2465 = vrot.slane %v2368, 1
        %v2466 = vrot.slane %v2371, 1
        %v2467 = vrot.slane %v2374, 1
        %v2468 = vrot.slane %v2377, 1
        %v2469 = vrot.slane %v2380, 1
        %v2470 = vrot.slane %v2383, 1
        %v2471 = vrot.slane %v2386, 1
        %v2472 = vrot.slane %v2389, 1
        %v2473 = vrot.slane %v2392, 1
        %v2474 = vsel %vm1579, %v2472, %v2473
        %v2475 = vsel %vm1579, %v2471, %v2472
        %v2476 = vsel %vm1579, %v2470, %v2471
        %v2477 = vsel %vm1579, %v2469, %v2470
        %v2478 = vsel %vm1579, %v2468, %v2469
        %v2479 = vsel %vm1579, %v2467, %v2468
        %v2480 = vsel %vm1579, %v2466, %v2467
        %v2481 = vsel %vm1579, %v2465, %v2466
        %v2482 = vsel %vm1579, %v2464, %v2465
        %v2483 = vsel %vm1579, %v2463, %v2464
        %v2484 = vsel %vm1579, %v2462, %v2463
        %v2485 = vsel %vm1579, %v2461, %v2462
        %v2486 = vsel %vm1579, %v2460, %v2461
        %v2487 = vsel %vm1579, %v2459, %v2460
        %v2488 = vsel %vm1579, %v2458, %v2459
        %v2489 = vsel %vm1579, %v2473, %v2458
        %v2490 = vsel %vm1612, %v2488, 0.0
        %v2491 = vsel %vm1613, %v2487, 0.0
        %v2492 = vsel %vm1614, %v2486, 0.0
        %v2493 = vsel %vm1615, %v2485, 0.0
        %v2494 = vsel %vm1616, %v2484, 0.0
        %v2495 = vsel %vm1617, %v2483, 0.0
        %v2496 = vsel %vm1618, %v2482, 0.0
        %v2497 = vsel %vm1619, %v2481, 0.0
        %v2498 = vsel %vm1620, %v2480, 0.0
        %v2499 = vsel %vm1621, %v2479, 0.0
        %v2500 = vsel %vm1622, %v2478, 0.0
        %v2501 = vsel %vm1623, %v2477, 0.0
        %v2502 = vsel %vm1624, %v2476, 0.0
        %v2503 = vsel %vm1625, %v2475, 0.0
        %v2504 = vsel %vm1626, %v2474, 0.0
        %v2505 = vsel %vm1627, %v2489, 0.0
        %v2506 = vadd.f32 %v2442, %v2490
        %v2507 = vadd.f32 %v2443, %v2491
        %v2508 = vadd.f32 %v2444, %v2492
        %v2509 = vadd.f32 %v2445, %v2493
        %v2510 = vadd.f32 %v2446, %v2494
        %v2511 = vadd.f32 %v2447, %v2495
        %v2512 = vadd.f32 %v2448, %v2496
        %v2513 = vadd.f32 %v2449, %v2497
        %v2514 = vadd.f32 %v2450, %v2498
        %v2515 = vadd.f32 %v2451, %v2499
        %v2516 = vadd.f32 %v2452, %v2500
        %v2517 = vadd.f32 %v2453, %v2501
        %v2518 = vadd.f32 %v2454, %v2502
        %v2519 = vadd.f32 %v2455, %v2503
        %v2520 = vadd.f32 %v2456, %v2504
        %v2521 = vadd.f32 %v2457, %v2505
        %s2522 = scalar_lea.vmem %s278, %s1162
        %vm2523 = vcmask 64512
        %2524 = vst.msk [vmem:[%s2522] sm:$0xff] %vm2523, %v2506
        %2525 = vst.msk [vmem:[%s2522 + $0x8] sm:$0xff] %vm2523, %v2507
        %2526 = vst.msk [vmem:[%s2522 + $0x10] sm:$0xff] %vm2523, %v2508
        %2527 = vst.msk [vmem:[%s2522 + $0x18] sm:$0xff] %vm2523, %v2509
        %2528 = vst.msk [vmem:[%s2522 + $0x20] sm:$0xff] %vm2523, %v2510
        %2529 = vst.msk [vmem:[%s2522 + $0x28] sm:$0xff] %vm2523, %v2511
        %2530 = vst.msk [vmem:[%s2522 + $0x30] sm:$0xff] %vm2523, %v2512
        %2531 = vst.msk [vmem:[%s2522 + $0x38] sm:$0xff] %vm2523, %v2513
        %2532 = vst.msk [vmem:[%s2522 + $0x40] sm:$0xff] %vm2523, %v2514
        %2533 = vst.msk [vmem:[%s2522 + $0x48] sm:$0xff] %vm2523, %v2515
        %2534 = vst.msk [vmem:[%s2522 + $0x50] sm:$0xff] %vm2523, %v2516
        %2535 = vst.msk [vmem:[%s2522 + $0x58] sm:$0xff] %vm2523, %v2517
        %2536 = vst.msk [vmem:[%s2522 + $0x60] sm:$0xff] %vm2523, %v2518
        %2537 = vst.msk [vmem:[%s2522 + $0x68] sm:$0xff] %vm2523, %v2519
        %2538 = vst.msk [vmem:[%s2522 + $0x70] sm:$0xff] %vm2523, %v2520
        %2539 = vst.msk [vmem:[%s2522 + $0x78] sm:$0xff] %vm2523, %v2521
      $region74: #{tpu_custom_call.1} parent=47 // loop_footer
        %s1161 = sadd.s32 1, %s1157
      $region75: #{tpu_custom_call.1} parent=47 // loop_footer_branch
        %1156 = sbr.rel target = $region71
      $region76: #{tpu_custom_call.1} parent=47 // loop_exit
        _
      %p2540 = scmp.lt.s32.totalorder %s18, 1
      %s2541 = scalar_select %p2540, %s18, 1
      %s2542 = smul.addr %s2541, 32
      %s2543 = smul.addr %s2542, 8
      %s2544 = scalar_lea.vmem %s7, %s2543
      // Predicated region
      $region77: #{tpu_custom_call.1} parent=47 // pred_check
        %p2545 = pneg %p188
      $region78: #{tpu_custom_call.1} parent=47 // pred_check_branch
        %2547 = sbr.rel (%p2545) target = $region80
      $region79: #{tpu_custom_call.1} parent=47 // pred_region
        _
      $region80: #{tpu_custom_call.1} parent=47 // pred_fallthru
        _
    $region48: #{tpu_custom_call.1} parent=5 // pred_fallthru
      _
    %p2548 = scmp.le.s32.totalorder 2, %s13
    // Predicated region
    $region81: #{tpu_custom_call.1} parent=5 // pred_check
      %p2549 = pneg %p2548
    $region82: #{tpu_custom_call.1} parent=5 // pred_check_branch
      %2551 = sbr.rel (%p2549) target = $region84
    $region83: #{tpu_custom_call.1} parent=5 // pred_region
      %s2552 = ssub.s32 %s13, 2
      // Predicated region
      $region85: #{tpu_custom_call.1} parent=83 // pred_check
        %p2553 = pneg %p194
      $region86: #{tpu_custom_call.1} parent=83 // pred_check_branch
        %2555 = sbr.rel (%p2553) target = $region88
      $region87: #{tpu_custom_call.1} parent=83 // pred_region
        %p2556 = scmp.lt.s32.totalorder %s19, 1
        %s2557 = scalar_select %p2556, %s19, 1
        %s2558 = smul.addr %s2557, 32
        %s2559 = smul.addr %s2558, 8
        %s2560 = scalar_lea.vmem %s7, %s2559
      $region88: #{tpu_custom_call.1} parent=83 // pred_fallthru
        _
    $region84: #{tpu_custom_call.1} parent=5 // pred_fallthru
      _
  $region6: #{tpu_custom_call.1} parent=0 // loop_footer
    %s17 = sadd.s32 1, %s13
  $region7: #{tpu_custom_call.1} parent=0 // loop_footer_branch
    %12 = sbr.rel target = $region3
  $region8: #{tpu_custom_call.1} parent=0 // loop_exit
    _

</llo_original>
